<compile_context>
chip_gen: v7x
topology: tpu7x:2x2x1
jax: 0.10.0
libtpu: 0.0.40
codegen_flags: <defaults>
</compile_context>

<pallas_src>
import functools

import jax
import jax.numpy as jnp
import numpy as np
from jax.experimental import pallas as pl
from jax.experimental.pallas import tpu as pltpu


# ----------------------------------------------------------------------------
# Fused forward kernel (NB samples stacked per grid step)
# ----------------------------------------------------------------------------

def _fused_forward_kernel(feature_op, feature_param, H, W, C1, NB,
                          xp_ref, w0_ref, w1_ref, w2_ref,
                          bn_s_ref, bn_b_ref, mask_ref, gap_ref, pool_ref,
                          whead_ref, bhead_ref, out_ref, hp_ref):
    """Whole FinetuneNet_icarl forward for a block of NB samples.

    Activations are a single 2-D slab: NB samples stacked along rows, each
    sample = [pad row, H rows, pad row], lanes = W*C (+2 zero column blocks in
    the scratch).  A 3x3 'same' conv is 3 banded bf16 matmuls (one per kernel
    row tap, column taps folded into banded weights).  Rows that are padding in
    the stacked layout are kept zero via a row mask so they keep acting as
    spatial zero-padding for the next conv.
    """
    WC = W * C1
    R = NB * (H + 2)
    M = R - 2
    f32, bf16 = jnp.float32, jnp.bfloat16

    # Zero the padded scratch every step (cheap) so pad rows / pad column
    # blocks are zero on every core even when megacore shards the grid.
    hp_ref[...] = jnp.zeros_like(hp_ref)
    mask = mask_ref[...]                                  # (M, 1) row-validity

    def banded_conv(load, w_ref, layer):
        acc = jnp.zeros((M, WC), f32)
        for di in range(3):                               # 3 kernel-row taps
            acc = acc + jnp.dot(load(di), w_ref[di],
                                preferred_element_type=f32)
        return acc * bn_s_ref[layer] + bn_b_ref[layer]    # folded BatchNorm

    stem_load = lambda di: xp_ref[0, di:di + M, :]                   # bf16
    body_load = lambda di: hp_ref[di:di + M, :].astype(bf16)

    # ---- stem: conv3x3(Cin -> C1) + BN + ReLU --------------------------------
    h = jnp.maximum(banded_conv(stem_load, w0_ref, 0), 0.0)          # (M, WC)
    hp_ref[1:M + 1, 0:WC] = h * mask

    # ---- residual block, conv 1 ----------------------------------------------
    r = jnp.maximum(banded_conv(body_load, w1_ref, 1), 0.0)
    hp_ref[1:M + 1, 0:WC] = r * mask

    # ---- residual block, conv 2 + skip + ReLU --------------------------------
    y = jnp.maximum(banded_conv(body_load, w2_ref, 2) + h, 0.0)      # (M, WC)

    # ---- global average pool: per-sample selector matmul + grouped-lane pool -
    feats_wc = jnp.dot(gap_ref[...], y, preferred_element_type=f32)  # (NB, WC)
    feats = jnp.dot(feats_wc, pool_ref[...],
                    preferred_element_type=f32)                      # (NB, C1)

    # ---- feature operate (T2FNorm) -------------------------------------------
    if feature_op == "T2FNorm_train":
        nrm = jnp.sqrt(jnp.sum(feats * feats, axis=-1, keepdims=True))
        feats = feats / jnp.maximum(nrm, 1e-12) / feature_param
    elif feature_op == "T2FNorm_test":
        feats = feats * (1.0 / feature_param)

    # ---- fused head: [features | fc logits | aux_fc logits | 0-pad] ----------
    out_ref[...] = (jnp.dot(feats, whead_ref[...],
                            preferred_element_type=f32) + bhead_ref[...])


@functools.partial(jax.jit, static_argnames=("feature_op", "feature_param",
                                             "nb_classes", "nb_block"))
def _fused_forward(x_nchw, w0, w1, w2, bn_s, bn_b, pool, whead, bhead, *,
                   feature_op=None, feature_param=1.0, nb_classes=10,
                   nb_block=8):
    N, Cin, H, W = x_nchw.shape
    C1 = pool.shape[1]
    HEAD = whead.shape[1]
    NB = min(nb_block, N)
    NBLK = -(-N // NB)
    NPAD = NBLK * NB
    R = NB * (H + 2)
    M = R - 2

    # Glue (inside the jit): NCHW -> lane-dense row slabs, one zero padding row
    # per sample top/bottom, two zero column blocks at the end (spatial columns
    # -1 and W for the banded weights), NB samples stacked per grid block.
    # bf16 so tap loads feed the MXU directly and input DMA is halved.
    x_rows = jnp.transpose(x_nchw, (0, 2, 3, 1)).reshape(N, H, W * Cin)
    x_rows = jnp.pad(x_rows.astype(jnp.float32),
                     ((0, NPAD - N), (1, 1), (0, 2 * Cin)))
    xp = x_rows.reshape(NBLK, R, (W + 2) * Cin).astype(jnp.bfloat16)

    # Compile-time constants: row-validity mask (keeps scratch pad rows zero)
    # and per-sample GAP selector with the 1/(H*W) mean folded in.
    mask_np = np.zeros((M, 1), np.float32)
    gap_np = np.zeros((NB, M), np.float32)
    for s in range(NB):
        o0 = s * (H + 2)
        mask_np[o0:o0 + H, 0] = 1.0
        gap_np[s, o0:o0 + H] = 1.0 / (H * W)
    mask = jnp.asarray(mask_np)
    gap = jnp.asarray(gap_np)

    kernel = functools.partial(_fused_forward_kernel, feature_op,
                               float(feature_param), H, W, C1, NB)

    out = pl.pallas_call(
        kernel,
        grid=(NBLK,),
        in_specs=[
            pl.BlockSpec((1, R, (W + 2) * Cin), lambda i: (i, 0, 0)),
            pl.BlockSpec(w0.shape, lambda i: (0, 0, 0)),
            pl.BlockSpec(w1.shape, lambda i: (0, 0, 0)),
            pl.BlockSpec(w2.shape, lambda i: (0, 0, 0)),
            pl.BlockSpec(bn_s.shape, lambda i: (0, 0, 0)),
            pl.BlockSpec(bn_b.shape, lambda i: (0, 0, 0)),
            pl.BlockSpec(mask.shape, lambda i: (0, 0)),
            pl.BlockSpec(gap.shape, lambda i: (0, 0)),
            pl.BlockSpec(pool.shape, lambda i: (0, 0)),
            pl.BlockSpec(whead.shape, lambda i: (0, 0)),
            pl.BlockSpec(bhead.shape, lambda i: (0, 0)),
        ],
        out_specs=pl.BlockSpec((NB, HEAD), lambda i: (i, 0)),
        out_shape=jax.ShapeDtypeStruct((NPAD, HEAD), jnp.float32),
        scratch_shapes=[pltpu.VMEM((R, (W + 2) * C1), jnp.float32)],
        compiler_params=pltpu.CompilerParams(
            # Batch-block axis: feeds both TensorCores on v7x; the extra grid
            # step is negligible on single-TC v5e / v6e.
            dimension_semantics=("parallel",)),
    )(xp, w0, w1, w2, bn_s, bn_b, mask, gap, pool, whead, bhead)

    feats = out[:N, :C1]
    logits = out[:N, C1:C1 + nb_classes]
    aux = out[:N, C1 + nb_classes:C1 + 2 * nb_classes]
    return feats, logits, aux


# ----------------------------------------------------------------------------
# Parameter construction (all done once at init, hoisted out of forward())
# ----------------------------------------------------------------------------

def _init_bn(key, c):
    k1, k2, k3, k4 = jax.random.split(key, 4)
    gamma = 1.0 + 0.1 * jax.random.normal(k1, (c,), jnp.float32)
    beta = 0.1 * jax.random.normal(k2, (c,), jnp.float32)
    mean = 0.1 * jax.random.normal(k3, (c,), jnp.float32)
    var = 1.0 + 0.1 * jax.random.uniform(k4, (c,), jnp.float32)
    eps = 1e-5
    scale = gamma / jnp.sqrt(var + eps)
    bias = beta - mean * scale
    return scale, bias


def _init_linear(key, in_dim, out_dim):
    kw, kb = jax.random.split(key)
    w = 0.1 * jax.random.normal(kw, (out_dim, in_dim), jnp.float32)
    b = 0.01 * jax.random.normal(kb, (out_dim,), jnp.float32)
    return w, b


def _banded_conv_weight(w_oihw, W):
    """Fold im2col + the 3 column taps (dj) into a block-banded weight.

    Returns (3, (W+2)*Cin, W*Cout): for row-tap di, the padded row strip
    (rows, (W+2)*Cin) @ big[di] gives the conv output strip (rows, W*Cout).
    Column blocks 0..W-1 hold spatial columns 0..W-1; blocks W and W+1 are the
    zero padding (spatial -1 and W), so activation stores stay lane-aligned.
    """
    w = np.asarray(w_oihw, dtype=np.float32)            # (Cout, Cin, 3, 3)
    Cout, Cin = w.shape[0], w.shape[1]
    big = np.zeros((3, (W + 2) * Cin, W * Cout), np.float32)
    for di in range(3):
        for dj in range(3):
            blk = w[:, :, di, dj].T                     # (Cin, Cout)
            for j in range(W):
                p = j + dj - 1                          # input spatial column
                cb = W if p == -1 else (W + 1 if p == W else p)
                big[di, cb * Cin:(cb + 1) * Cin, j * Cout:(j + 1) * Cout] = blk
    return big


# ----------------------------------------------------------------------------
# FinetuneNet_icarl
# ----------------------------------------------------------------------------

class FinetuneNetIcarlPallas:
    """FinetuneNet_icarl: backbone.forward_cil + fc + aux_fc, one Pallas kernel."""

    def __init__(self, key, cin=4, out_dim=16, nb_classes=10, H=16, W=16):
        self.out_dim = out_dim
        self.nb_classes = nb_classes

        ks = jax.random.split(key, 8)
        # Backbone (stand-in for resnet32 with the forward_cil contract).
        w_stem = 0.1 * jax.random.normal(ks[0], (out_dim, cin, 3, 3), jnp.float32)
        bn0 = _init_bn(ks[1], out_dim)
        w_b1 = 0.1 * jax.random.normal(ks[2], (out_dim, out_dim, 3, 3), jnp.float32)
        bn1 = _init_bn(ks[3], out_dim)
        w_b2 = 0.1 * jax.random.normal(ks[4], (out_dim, out_dim, 3, 3), jnp.float32)
        bn2 = _init_bn(ks[5], out_dim)
        # Heads over feature_dim = convnet.out_dim (update_fc analogue).
        fc_w, fc_b = _init_linear(ks[6], out_dim, nb_classes)
        aux_w, aux_b = _init_linear(ks[7], out_dim, nb_classes)

        self.raw = dict(w_stem=w_stem, bn0=bn0, w_b1=w_b1, bn1=bn1,
                        w_b2=w_b2, bn2=bn2, fc_w=fc_w, fc_b=fc_b,
                        aux_w=aux_w, aux_b=aux_b)

        # --- kernel-ready parameters, built once ------------------------------
        w0 = jnp.asarray(_banded_conv_weight(w_stem, W), jnp.bfloat16)
        w1 = jnp.asarray(_banded_conv_weight(w_b1, W), jnp.bfloat16)
        w2 = jnp.asarray(_banded_conv_weight(w_b2, W), jnp.bfloat16)
        bn_s = jnp.stack([jnp.tile(bn0[0], W), jnp.tile(bn1[0], W),
                          jnp.tile(bn2[0], W)])[:, None, :].astype(jnp.float32)
        bn_b = jnp.stack([jnp.tile(bn0[1], W), jnp.tile(bn1[1], W),
                          jnp.tile(bn2[1], W)])[:, None, :].astype(jnp.float32)
        # GAP over the W column blocks (row/W mean folded into the in-kernel
        # GAP selector, so this is a pure 0/1 sum).
        pool = jnp.asarray(np.kron(np.ones((W, 1), np.float32),
                                   np.eye(out_dim, dtype=np.float32)))
        # Fused head: [identity (features) | fc.T | aux_fc.T | 0], lane-padded
        # to a multiple of 128 so the kernel output is a single unmasked slab.
        nb = nb_classes
        head = ((out_dim + 2 * nb + 127) // 128) * 128
        whead_np = np.zeros((out_dim, head), np.float32)
        whead_np[:, :out_dim] = np.eye(out_dim, dtype=np.float32)
        whead_np[:, out_dim:out_dim + nb] = np.asarray(fc_w).T
        whead_np[:, out_dim + nb:out_dim + 2 * nb] = np.asarray(aux_w).T
        bhead_np = np.zeros((1, head), np.float32)
        bhead_np[0, out_dim:out_dim + nb] = np.asarray(fc_b)
        bhead_np[0, out_dim + nb:out_dim + 2 * nb] = np.asarray(aux_b)

        self.kparams = dict(w0=w0, w1=w1, w2=w2, bn_s=bn_s, bn_b=bn_b,
                            pool=pool, whead=jnp.asarray(whead_np),
                            bhead=jnp.asarray(bhead_np))

    @property
    def feature_dim(self):
        return self.out_dim

    def extract_vector(self, x):
        return self.forward(x)["features"]

    def forward(self, x, return_feature=False, return_feature_list=False,
                feature_operate=None, feature_operate_parameter=None):
        fp = (1.0 if feature_operate_parameter is None
              else float(feature_operate_parameter))
        p = self.kparams
        feats, logits, aux = _fused_forward(
            x, p["w0"], p["w1"], p["w2"], p["bn_s"], p["bn_b"],
            p["pool"], p["whead"], p["bhead"],
            feature_op=feature_operate, feature_param=fp,
            nb_classes=self.nb_classes)
        out = {"logits": logits,          # self.fc(features)['logits']
               "features": feats,         # out.update(x)
               "aux_logits": aux}         # self.aux_fc(features)['logits']
        # TODO(synk): return_feature_list needs backbone-internal fmaps /
        # feature_list, which the provided module source (resnet32) does not define.
        if return_feature:
            out["features"] = feats
        return out


# ----------------------------------------------------------------------------
# Pure-JAX f32 reference (self-check)
# ----------------------------------------------------------------------------

def _reference_forward(raw, x_nchw, feature_op=None, feature_param=None):
    x = jnp.transpose(x_nchw, (0, 2, 3, 1)).astype(jnp.float32)

    def conv_bn(z, w, bn):
        s, b = bn
        w_hwio = jnp.transpose(w, (2, 3, 1, 0))
        y = jax.lax.conv_general_dilated(
            z, w_hwio, window_strides=(1, 1), padding="SAME",
            dimension_numbers=("NHWC", "HWIO", "NHWC"))
        return y * s.reshape(1, 1, 1, -1) + b.reshape(1, 1, 1, -1)

    h = jax.nn.relu(conv_bn(x, raw["w_stem"], raw["bn0"]))
    r = jax.nn.relu(conv_bn(h, raw["w_b1"], raw["bn1"]))
    y = jax.nn.relu(conv_bn(r, raw["w_b2"], raw["bn2"]) + h)
    feats = jnp.mean(y, axis=(1, 2))
    if feature_op == "T2FNorm_train":
        nrm = jnp.linalg.norm(feats, axis=-1, keepdims=True)
        feats = feats / jnp.maximum(nrm, 1e-12) / feature_param
    elif feature_op == "T2FNorm_test":
        feats = feats / feature_param
    logits = feats @ raw["fc_w"].T + raw["fc_b"]
    aux = feats @ raw["aux_w"].T + raw["aux_b"]
    return feats, logits, aux


# ----------------------------------------------------------------------------
# Main
# ----------------------------------------------------------------------------

if __name__ == "__main__":
    key = jax.random.PRNGKey(0)
    kx, kp = jax.random.split(key)
    x = jax.random.normal(kx, (2, 4, 16, 16), jnp.float32)   # NCHW input

    net = FinetuneNetIcarlPallas(kp, cin=4, out_dim=16, nb_classes=10)

    out = net.forward(x)
    out = jax.tree_util.tree_map(jax.block_until_ready, out)

    # Exercise the T2FNorm feature-operate epilogues as well.
    out_tr = net.forward(x, feature_operate="T2FNorm_train",
                         feature_operate_parameter=0.5)
    out_te = net.forward(x, feature_operate="T2FNorm_test",
                         feature_operate_parameter=2.0)
    jax.block_until_ready(out_tr["logits"])
    jax.block_until_ready(out_te["logits"])

    assert out["features"].shape == (2, 16)
    assert out["logits"].shape == (2, 10)
    assert out["aux_logits"].shape == (2, 10)
    assert all(bool(jnp.all(jnp.isfinite(v)))
               for v in (out["features"], out["logits"], out["aux_logits"],
                         out_tr["logits"], out_te["logits"]))

    # Numerical self-check against a pure-JAX f32 reference (bf16 MXU tolerance).
    ref_f, ref_l, ref_a = _reference_forward(net.raw, x)
    assert bool(jnp.allclose(out["features"], ref_f, atol=5e-2, rtol=5e-2))
    assert bool(jnp.allclose(out["logits"], ref_l, atol=5e-2, rtol=5e-2))
    assert bool(jnp.allclose(out["aux_logits"], ref_a, atol=5e-2, rtol=5e-2))

    ref_f_tr, ref_l_tr, _ = _reference_forward(net.raw, x, "T2FNorm_train", 0.5)
    ref_f_te, ref_l_te, _ = _reference_forward(net.raw, x, "T2FNorm_test", 2.0)
    assert bool(jnp.allclose(out_tr["features"], ref_f_tr, atol=5e-2, rtol=5e-2))
    assert bool(jnp.allclose(out_tr["logits"], ref_l_tr, atol=5e-2, rtol=5e-2))
    assert bool(jnp.allclose(out_te["features"], ref_f_te, atol=5e-2, rtol=5e-2))
    assert bool(jnp.allclose(out_te["logits"], ref_l_te, atol=5e-2, rtol=5e-2))

    print("KERNEL_OK")
</pallas_src>

<mosaic_0001>
module attributes {stable_mosaic.version = 11 : i64} {
  func.func @_fused_forward_kernel(%arg0: i32, %arg1: memref<1x36x72xbf16, #tpu.memory_space<vmem>>, %arg2: memref<3x72x256xbf16, #tpu.memory_space<vmem>>, %arg3: memref<3x288x256xbf16, #tpu.memory_space<vmem>>, %arg4: memref<3x288x256xbf16, #tpu.memory_space<vmem>>, %arg5: memref<3x1x256xf32, #tpu.memory_space<vmem>>, %arg6: memref<3x1x256xf32, #tpu.memory_space<vmem>>, %arg7: memref<34x1xf32, #tpu.memory_space<vmem>>, %arg8: memref<2x34xf32, #tpu.memory_space<vmem>>, %arg9: memref<256x16xf32, #tpu.memory_space<vmem>>, %arg10: memref<16x128xf32, #tpu.memory_space<vmem>>, %arg11: memref<1x128xf32, #tpu.memory_space<vmem>>, %arg12: memref<2x128xf32, #tpu.memory_space<vmem>>, %arg13: memref<36x288xf32, #tpu.memory_space<vmem>>) attributes {dimension_semantics = [#tpu.dimension_semantics<parallel>], iteration_bounds = array<i64: 1>, scalar_prefetch = 0 : i64, scratch_operands = 1 : i64, tpu.core_type = #tpu.core_type<tc>, window_params = [{transform_indices = @transform_0, window_bounds = array<i64: 1, 36, 72>}, {pipeline_mode = #tpu.pipeline_mode<synchronous>, transform_indices = @transform_1, window_bounds = array<i64: 3, 72, 256>}, {pipeline_mode = #tpu.pipeline_mode<synchronous>, transform_indices = @transform_2, window_bounds = array<i64: 3, 288, 256>}, {pipeline_mode = #tpu.pipeline_mode<synchronous>, transform_indices = @transform_3, window_bounds = array<i64: 3, 288, 256>}, {pipeline_mode = #tpu.pipeline_mode<synchronous>, transform_indices = @transform_4, window_bounds = array<i64: 3, 1, 256>}, {pipeline_mode = #tpu.pipeline_mode<synchronous>, transform_indices = @transform_5, window_bounds = array<i64: 3, 1, 256>}, {pipeline_mode = #tpu.pipeline_mode<synchronous>, transform_indices = @transform_6, window_bounds = array<i64: 34, 1>}, {pipeline_mode = #tpu.pipeline_mode<synchronous>, transform_indices = @transform_7, window_bounds = array<i64: 2, 34>}, {pipeline_mode = #tpu.pipeline_mode<synchronous>, transform_indices = @transform_8, window_bounds = array<i64: 256, 16>}, {pipeline_mode = #tpu.pipeline_mode<synchronous>, transform_indices = @transform_9, window_bounds = array<i64: 16, 128>}, {pipeline_mode = #tpu.pipeline_mode<synchronous>, transform_indices = @transform_10, window_bounds = array<i64: 1, 128>}, {transform_indices = @transform_11, window_bounds = array<i64: 2, 128>}]} {
    %cst = arith.constant 0.000000e+00 : f32
    %0 = vector.broadcast %cst : f32 to vector<36x288xf32>
    %c0 = arith.constant 0 : index
    %c0_0 = arith.constant 0 : index
    %1 = vector.load %arg13[%c0, %c0_0] : memref<36x288xf32, #tpu.memory_space<vmem>>, vector<36x288xf32>
    tpu.vector_store %arg13[%c0, %c0_0], %0 {strides = array<i32>} : memref<36x288xf32, #tpu.memory_space<vmem>>, vector<36x288xf32>,
    %c0_1 = arith.constant 0 : index
    %c0_2 = arith.constant 0 : index
    %2 = vector.load %arg7[%c0_1, %c0_2] : memref<34x1xf32, #tpu.memory_space<vmem>>, vector<34x1xf32>
    %cst_3 = arith.constant 0.000000e+00 : f32
    %3 = vector.broadcast %cst_3 : f32 to vector<34x256xf32>
    %c0_4 = arith.constant 0 : index
    %c0_5 = arith.constant 0 : index
    %c0_6 = arith.constant 0 : index
    %4 = vector.load %arg1[%c0_4, %c0_5, %c0_6] : memref<1x36x72xbf16, #tpu.memory_space<vmem>>, vector<1x34x72xbf16>
    %5 = vector.shape_cast %4 : vector<1x34x72xbf16> to vector<34x72xbf16>
    %c0_7 = arith.constant 0 : index
    %c0_8 = arith.constant 0 : index
    %c0_9 = arith.constant 0 : index
    %6 = vector.load %arg2[%c0_7, %c0_8, %c0_9] : memref<3x72x256xbf16, #tpu.memory_space<vmem>>, vector<1x72x256xbf16>
    %7 = vector.shape_cast %6 : vector<1x72x256xbf16> to vector<72x256xbf16>
    %cst_10 = arith.constant dense<0.000000e+00> : vector<34x256xf32>
    %8 = tpu.matmul %5, %7, %cst_10 {dimension_numbers = #tpu.dot_dimension_numbers<[1], [0], [0], [1], [0, 0, 1, 1], [], []>} : vector<34x72xbf16>, vector<72x256xbf16>, vector<34x256xf32> -> vector<34x256xf32>
    %9 = arith.addf %3, %8 : vector<34x256xf32>
    %c0_11 = arith.constant 0 : index
    %c1 = arith.constant 1 : index
    %c0_12 = arith.constant 0 : index
    %10 = vector.load %arg1[%c0_11, %c1, %c0_12] : memref<1x36x72xbf16, #tpu.memory_space<vmem>>, vector<1x34x72xbf16>
    %11 = vector.shape_cast %10 : vector<1x34x72xbf16> to vector<34x72xbf16>
    %c1_13 = arith.constant 1 : index
    %c0_14 = arith.constant 0 : index
    %c0_15 = arith.constant 0 : index
    %12 = vector.load %arg2[%c1_13, %c0_14, %c0_15] : memref<3x72x256xbf16, #tpu.memory_space<vmem>>, vector<1x72x256xbf16>
    %13 = vector.shape_cast %12 : vector<1x72x256xbf16> to vector<72x256xbf16>
    %cst_16 = arith.constant dense<0.000000e+00> : vector<34x256xf32>
    %14 = tpu.matmul %11, %13, %cst_16 {dimension_numbers = #tpu.dot_dimension_numbers<[1], [0], [0], [1], [0, 0, 1, 1], [], []>} : vector<34x72xbf16>, vector<72x256xbf16>, vector<34x256xf32> -> vector<34x256xf32>
    %15 = arith.addf %9, %14 : vector<34x256xf32>
    %c0_17 = arith.constant 0 : index
    %c2 = arith.constant 2 : index
    %c0_18 = arith.constant 0 : index
    %16 = vector.load %arg1[%c0_17, %c2, %c0_18] : memref<1x36x72xbf16, #tpu.memory_space<vmem>>, vector<1x34x72xbf16>
    %17 = vector.shape_cast %16 : vector<1x34x72xbf16> to vector<34x72xbf16>
    %c2_19 = arith.constant 2 : index
    %c0_20 = arith.constant 0 : index
    %c0_21 = arith.constant 0 : index
    %18 = vector.load %arg2[%c2_19, %c0_20, %c0_21] : memref<3x72x256xbf16, #tpu.memory_space<vmem>>, vector<1x72x256xbf16>
    %19 = vector.shape_cast %18 : vector<1x72x256xbf16> to vector<72x256xbf16>
    %cst_22 = arith.constant dense<0.000000e+00> : vector<34x256xf32>
    %20 = tpu.matmul %17, %19, %cst_22 {dimension_numbers = #tpu.dot_dimension_numbers<[1], [0], [0], [1], [0, 0, 1, 1], [], []>} : vector<34x72xbf16>, vector<72x256xbf16>, vector<34x256xf32> -> vector<34x256xf32>
    %21 = arith.addf %15, %20 : vector<34x256xf32>
    %c0_23 = arith.constant 0 : index
    %c0_24 = arith.constant 0 : index
    %c0_25 = arith.constant 0 : index
    %22 = vector.load %arg5[%c0_23, %c0_24, %c0_25] : memref<3x1x256xf32, #tpu.memory_space<vmem>>, vector<1x1x256xf32>
    %23 = vector.shape_cast %22 : vector<1x1x256xf32> to vector<1x256xf32>
    %24 = vector.broadcast %23 : vector<1x256xf32> to vector<34x256xf32>
    %25 = arith.mulf %21, %24 : vector<34x256xf32>
    %c0_26 = arith.constant 0 : index
    %c0_27 = arith.constant 0 : index
    %c0_28 = arith.constant 0 : index
    %26 = vector.load %arg6[%c0_26, %c0_27, %c0_28] : memref<3x1x256xf32, #tpu.memory_space<vmem>>, vector<1x1x256xf32>
    %27 = vector.shape_cast %26 : vector<1x1x256xf32> to vector<1x256xf32>
    %28 = vector.broadcast %27 : vector<1x256xf32> to vector<34x256xf32>
    %29 = arith.addf %25, %28 : vector<34x256xf32>
    %cst_29 = arith.constant 0.000000e+00 : f32
    %30 = vector.broadcast %cst_29 : f32 to vector<34x256xf32>
    %31 = arith.maximumf %29, %30 : vector<34x256xf32>
    %32 = vector.broadcast %2 : vector<34x1xf32> to vector<34x256xf32>
    %33 = arith.mulf %31, %32 : vector<34x256xf32>
    %c1_30 = arith.constant 1 : index
    %c0_31 = arith.constant 0 : index
    %34 = vector.load %arg13[%c1_30, %c0_31] : memref<36x288xf32, #tpu.memory_space<vmem>>, vector<34x256xf32>
    tpu.vector_store %arg13[%c1_30, %c0_31], %33 {strides = array<i32>} : memref<36x288xf32, #tpu.memory_space<vmem>>, vector<34x256xf32>,
    %cst_32 = arith.constant 0.000000e+00 : f32
    %35 = vector.broadcast %cst_32 : f32 to vector<34x256xf32>
    %c0_33 = arith.constant 0 : index
    %c0_34 = arith.constant 0 : index
    %36 = vector.load %arg13[%c0_33, %c0_34] : memref<36x288xf32, #tpu.memory_space<vmem>>, vector<34x288xf32>
    %37 = arith.truncf %36 : vector<34x288xf32> to vector<34x288xbf16>
    %c0_35 = arith.constant 0 : index
    %c0_36 = arith.constant 0 : index
    %c0_37 = arith.constant 0 : index
    %38 = vector.load %arg3[%c0_35, %c0_36, %c0_37] : memref<3x288x256xbf16, #tpu.memory_space<vmem>>, vector<1x288x256xbf16>
    %39 = vector.shape_cast %38 : vector<1x288x256xbf16> to vector<288x256xbf16>
    %cst_38 = arith.constant dense<0.000000e+00> : vector<34x256xf32>
    %40 = tpu.matmul %37, %39, %cst_38 {dimension_numbers = #tpu.dot_dimension_numbers<[1], [0], [0], [1], [0, 0, 1, 1], [], []>} : vector<34x288xbf16>, vector<288x256xbf16>, vector<34x256xf32> -> vector<34x256xf32>
    %41 = arith.addf %35, %40 : vector<34x256xf32>
    %c1_39 = arith.constant 1 : index
    %c0_40 = arith.constant 0 : index
    %42 = vector.load %arg13[%c1_39, %c0_40] : memref<36x288xf32, #tpu.memory_space<vmem>>, vector<34x288xf32>
    %43 = arith.truncf %42 : vector<34x288xf32> to vector<34x288xbf16>
    %c1_41 = arith.constant 1 : index
    %c0_42 = arith.constant 0 : index
    %c0_43 = arith.constant 0 : index
    %44 = vector.load %arg3[%c1_41, %c0_42, %c0_43] : memref<3x288x256xbf16, #tpu.memory_space<vmem>>, vector<1x288x256xbf16>
    %45 = vector.shape_cast %44 : vector<1x288x256xbf16> to vector<288x256xbf16>
    %cst_44 = arith.constant dense<0.000000e+00> : vector<34x256xf32>
    %46 = tpu.matmul %43, %45, %cst_44 {dimension_numbers = #tpu.dot_dimension_numbers<[1], [0], [0], [1], [0, 0, 1, 1], [], []>} : vector<34x288xbf16>, vector<288x256xbf16>, vector<34x256xf32> -> vector<34x256xf32>
    %47 = arith.addf %41, %46 : vector<34x256xf32>
    %c2_45 = arith.constant 2 : index
    %c0_46 = arith.constant 0 : index
    %48 = vector.load %arg13[%c2_45, %c0_46] : memref<36x288xf32, #tpu.memory_space<vmem>>, vector<34x288xf32>
    %49 = arith.truncf %48 : vector<34x288xf32> to vector<34x288xbf16>
    %c2_47 = arith.constant 2 : index
    %c0_48 = arith.constant 0 : index
    %c0_49 = arith.constant 0 : index
    %50 = vector.load %arg3[%c2_47, %c0_48, %c0_49] : memref<3x288x256xbf16, #tpu.memory_space<vmem>>, vector<1x288x256xbf16>
    %51 = vector.shape_cast %50 : vector<1x288x256xbf16> to vector<288x256xbf16>
    %cst_50 = arith.constant dense<0.000000e+00> : vector<34x256xf32>
    %52 = tpu.matmul %49, %51, %cst_50 {dimension_numbers = #tpu.dot_dimension_numbers<[1], [0], [0], [1], [0, 0, 1, 1], [], []>} : vector<34x288xbf16>, vector<288x256xbf16>, vector<34x256xf32> -> vector<34x256xf32>
    %53 = arith.addf %47, %52 : vector<34x256xf32>
    %c1_51 = arith.constant 1 : index
    %c0_52 = arith.constant 0 : index
    %c0_53 = arith.constant 0 : index
    %54 = vector.load %arg5[%c1_51, %c0_52, %c0_53] : memref<3x1x256xf32, #tpu.memory_space<vmem>>, vector<1x1x256xf32>
    %55 = vector.shape_cast %54 : vector<1x1x256xf32> to vector<1x256xf32>
    %56 = vector.broadcast %55 : vector<1x256xf32> to vector<34x256xf32>
    %57 = arith.mulf %53, %56 : vector<34x256xf32>
    %c1_54 = arith.constant 1 : index
    %c0_55 = arith.constant 0 : index
    %c0_56 = arith.constant 0 : index
    %58 = vector.load %arg6[%c1_54, %c0_55, %c0_56] : memref<3x1x256xf32, #tpu.memory_space<vmem>>, vector<1x1x256xf32>
    %59 = vector.shape_cast %58 : vector<1x1x256xf32> to vector<1x256xf32>
    %60 = vector.broadcast %59 : vector<1x256xf32> to vector<34x256xf32>
    %61 = arith.addf %57, %60 : vector<34x256xf32>
    %cst_57 = arith.constant 0.000000e+00 : f32
    %62 = vector.broadcast %cst_57 : f32 to vector<34x256xf32>
    %63 = arith.maximumf %61, %62 : vector<34x256xf32>
    %64 = vector.broadcast %2 : vector<34x1xf32> to vector<34x256xf32>
    %65 = arith.mulf %63, %64 : vector<34x256xf32>
    %c1_58 = arith.constant 1 : index
    %c0_59 = arith.constant 0 : index
    %66 = vector.load %arg13[%c1_58, %c0_59] : memref<36x288xf32, #tpu.memory_space<vmem>>, vector<34x256xf32>
    tpu.vector_store %arg13[%c1_58, %c0_59], %65 {strides = array<i32>} : memref<36x288xf32, #tpu.memory_space<vmem>>, vector<34x256xf32>,
    %cst_60 = arith.constant 0.000000e+00 : f32
    %67 = vector.broadcast %cst_60 : f32 to vector<34x256xf32>
    %c0_61 = arith.constant 0 : index
    %c0_62 = arith.constant 0 : index
    %68 = vector.load %arg13[%c0_61, %c0_62] : memref<36x288xf32, #tpu.memory_space<vmem>>, vector<34x288xf32>
    %69 = arith.truncf %68 : vector<34x288xf32> to vector<34x288xbf16>
    %c0_63 = arith.constant 0 : index
    %c0_64 = arith.constant 0 : index
    %c0_65 = arith.constant 0 : index
    %70 = vector.load %arg4[%c0_63, %c0_64, %c0_65] : memref<3x288x256xbf16, #tpu.memory_space<vmem>>, vector<1x288x256xbf16>
    %71 = vector.shape_cast %70 : vector<1x288x256xbf16> to vector<288x256xbf16>
    %cst_66 = arith.constant dense<0.000000e+00> : vector<34x256xf32>
    %72 = tpu.matmul %69, %71, %cst_66 {dimension_numbers = #tpu.dot_dimension_numbers<[1], [0], [0], [1], [0, 0, 1, 1], [], []>} : vector<34x288xbf16>, vector<288x256xbf16>, vector<34x256xf32> -> vector<34x256xf32>
    %73 = arith.addf %67, %72 : vector<34x256xf32>
    %c1_67 = arith.constant 1 : index
    %c0_68 = arith.constant 0 : index
    %74 = vector.load %arg13[%c1_67, %c0_68] : memref<36x288xf32, #tpu.memory_space<vmem>>, vector<34x288xf32>
    %75 = arith.truncf %74 : vector<34x288xf32> to vector<34x288xbf16>
    %c1_69 = arith.constant 1 : index
    %c0_70 = arith.constant 0 : index
    %c0_71 = arith.constant 0 : index
    %76 = vector.load %arg4[%c1_69, %c0_70, %c0_71] : memref<3x288x256xbf16, #tpu.memory_space<vmem>>, vector<1x288x256xbf16>
    %77 = vector.shape_cast %76 : vector<1x288x256xbf16> to vector<288x256xbf16>
    %cst_72 = arith.constant dense<0.000000e+00> : vector<34x256xf32>
    %78 = tpu.matmul %75, %77, %cst_72 {dimension_numbers = #tpu.dot_dimension_numbers<[1], [0], [0], [1], [0, 0, 1, 1], [], []>} : vector<34x288xbf16>, vector<288x256xbf16>, vector<34x256xf32> -> vector<34x256xf32>
    %79 = arith.addf %73, %78 : vector<34x256xf32>
    %c2_73 = arith.constant 2 : index
    %c0_74 = arith.constant 0 : index
    %80 = vector.load %arg13[%c2_73, %c0_74] : memref<36x288xf32, #tpu.memory_space<vmem>>, vector<34x288xf32>
    %81 = arith.truncf %80 : vector<34x288xf32> to vector<34x288xbf16>
    %c2_75 = arith.constant 2 : index
    %c0_76 = arith.constant 0 : index
    %c0_77 = arith.constant 0 : index
    %82 = vector.load %arg4[%c2_75, %c0_76, %c0_77] : memref<3x288x256xbf16, #tpu.memory_space<vmem>>, vector<1x288x256xbf16>
    %83 = vector.shape_cast %82 : vector<1x288x256xbf16> to vector<288x256xbf16>
    %cst_78 = arith.constant dense<0.000000e+00> : vector<34x256xf32>
    %84 = tpu.matmul %81, %83, %cst_78 {dimension_numbers = #tpu.dot_dimension_numbers<[1], [0], [0], [1], [0, 0, 1, 1], [], []>} : vector<34x288xbf16>, vector<288x256xbf16>, vector<34x256xf32> -> vector<34x256xf32>
    %85 = arith.addf %79, %84 : vector<34x256xf32>
    %c2_79 = arith.constant 2 : index
    %c0_80 = arith.constant 0 : index
    %c0_81 = arith.constant 0 : index
    %86 = vector.load %arg5[%c2_79, %c0_80, %c0_81] : memref<3x1x256xf32, #tpu.memory_space<vmem>>, vector<1x1x256xf32>
    %87 = vector.shape_cast %86 : vector<1x1x256xf32> to vector<1x256xf32>
    %88 = vector.broadcast %87 : vector<1x256xf32> to vector<34x256xf32>
    %89 = arith.mulf %85, %88 : vector<34x256xf32>
    %c2_82 = arith.constant 2 : index
    %c0_83 = arith.constant 0 : index
    %c0_84 = arith.constant 0 : index
    %90 = vector.load %arg6[%c2_82, %c0_83, %c0_84] : memref<3x1x256xf32, #tpu.memory_space<vmem>>, vector<1x1x256xf32>
    %91 = vector.shape_cast %90 : vector<1x1x256xf32> to vector<1x256xf32>
    %92 = vector.broadcast %91 : vector<1x256xf32> to vector<34x256xf32>
    %93 = arith.addf %89, %92 : vector<34x256xf32>
    %94 = arith.addf %93, %31 : vector<34x256xf32>
    %cst_85 = arith.constant 0.000000e+00 : f32
    %95 = vector.broadcast %cst_85 : f32 to vector<34x256xf32>
    %96 = arith.maximumf %94, %95 : vector<34x256xf32>
    %c0_86 = arith.constant 0 : index
    %c0_87 = arith.constant 0 : index
    %97 = vector.load %arg8[%c0_86, %c0_87] : memref<2x34xf32, #tpu.memory_space<vmem>>, vector<2x34xf32>
    %cst_88 = arith.constant dense<0.000000e+00> : vector<2x256xf32>
    %98 = tpu.matmul %97, %96, %cst_88 {dimension_numbers = #tpu.dot_dimension_numbers<[1], [0], [0], [1], [0, 0, 1, 1], [], []>} : vector<2x34xf32>, vector<34x256xf32>, vector<2x256xf32> -> vector<2x256xf32>
    %c0_89 = arith.constant 0 : index
    %c0_90 = arith.constant 0 : index
    %99 = vector.load %arg9[%c0_89, %c0_90] : memref<256x16xf32, #tpu.memory_space<vmem>>, vector<256x16xf32>
    %cst_91 = arith.constant dense<0.000000e+00> : vector<2x16xf32>
    %100 = tpu.matmul %98, %99, %cst_91 {dimension_numbers = #tpu.dot_dimension_numbers<[1], [0], [0], [1], [0, 0, 1, 1], [], []>} : vector<2x256xf32>, vector<256x16xf32>, vector<2x16xf32> -> vector<2x16xf32>
    %c0_92 = arith.constant 0 : index
    %c0_93 = arith.constant 0 : index
    %101 = vector.load %arg10[%c0_92, %c0_93] : memref<16x128xf32, #tpu.memory_space<vmem>>, vector<16x128xf32>
    %cst_94 = arith.constant dense<0.000000e+00> : vector<2x128xf32>
    %102 = tpu.matmul %100, %101, %cst_94 {dimension_numbers = #tpu.dot_dimension_numbers<[1], [0], [0], [1], [0, 0, 1, 1], [], []>} : vector<2x16xf32>, vector<16x128xf32>, vector<2x128xf32> -> vector<2x128xf32>
    %c0_95 = arith.constant 0 : index
    %c0_96 = arith.constant 0 : index
    %103 = vector.load %arg11[%c0_95, %c0_96] : memref<1x128xf32, #tpu.memory_space<vmem>>, vector<1x128xf32>
    %104 = vector.broadcast %103 : vector<1x128xf32> to vector<2x128xf32>
    %105 = arith.addf %102, %104 : vector<2x128xf32>
    %c0_97 = arith.constant 0 : index
    %c0_98 = arith.constant 0 : index
    %106 = vector.load %arg12[%c0_97, %c0_98] : memref<2x128xf32, #tpu.memory_space<vmem>>, vector<2x128xf32>
    tpu.vector_store %arg12[%c0_97, %c0_98], %105 {strides = array<i32>} : memref<2x128xf32, #tpu.memory_space<vmem>>, vector<2x128xf32>,
    return
  }
  func.func @transform_0(%arg0: i32) -> (i32, i32, i32) {
    %c0_i32 = arith.constant 0 : i32
    %c0_i32_0 = arith.constant 0 : i32
    %c0_i32_1 = arith.constant 0 : i32
    return %arg0, %c0_i32, %c0_i32_0 : i32, i32, i32
  }
  func.func @transform_1(%arg0: i32) -> (i32, i32, i32) {
    %c0_i32 = arith.constant 0 : i32
    %c0_i32_0 = arith.constant 0 : i32
    %c0_i32_1 = arith.constant 0 : i32
    %c0_i32_2 = arith.constant 0 : i32
    return %c0_i32, %c0_i32_0, %c0_i32_1 : i32, i32, i32
  }
  func.func @transform_2(%arg0: i32) -> (i32, i32, i32) {
    %c0_i32 = arith.constant 0 : i32
    %c0_i32_0 = arith.constant 0 : i32
    %c0_i32_1 = arith.constant 0 : i32
    %c0_i32_2 = arith.constant 0 : i32
    return %c0_i32, %c0_i32_0, %c0_i32_1 : i32, i32, i32
  }
  func.func @transform_3(%arg0: i32) -> (i32, i32, i32) {
    %c0_i32 = arith.constant 0 : i32
    %c0_i32_0 = arith.constant 0 : i32
    %c0_i32_1 = arith.constant 0 : i32
    %c0_i32_2 = arith.constant 0 : i32
    return %c0_i32, %c0_i32_0, %c0_i32_1 : i32, i32, i32
  }
  func.func @transform_4(%arg0: i32) -> (i32, i32, i32) {
    %c0_i32 = arith.constant 0 : i32
    %c0_i32_0 = arith.constant 0 : i32
    %c0_i32_1 = arith.constant 0 : i32
    %c0_i32_2 = arith.constant 0 : i32
    return %c0_i32, %c0_i32_0, %c0_i32_1 : i32, i32, i32
  }
  func.func @transform_5(%arg0: i32) -> (i32, i32, i32) {
    %c0_i32 = arith.constant 0 : i32
    %c0_i32_0 = arith.constant 0 : i32
    %c0_i32_1 = arith.constant 0 : i32
    %c0_i32_2 = arith.constant 0 : i32
    return %c0_i32, %c0_i32_0, %c0_i32_1 : i32, i32, i32
  }
  func.func @transform_6(%arg0: i32) -> (i32, i32) {
    %c0_i32 = arith.constant 0 : i32
    %c0_i32_0 = arith.constant 0 : i32
    %c0_i32_1 = arith.constant 0 : i32
    return %c0_i32, %c0_i32_0 : i32, i32
  }
  func.func @transform_7(%arg0: i32) -> (i32, i32) {
    %c0_i32 = arith.constant 0 : i32
    %c0_i32_0 = arith.constant 0 : i32
    %c0_i32_1 = arith.constant 0 : i32
    return %c0_i32, %c0_i32_0 : i32, i32
  }
  func.func @transform_8(%arg0: i32) -> (i32, i32) {
    %c0_i32 = arith.constant 0 : i32
    %c0_i32_0 = arith.constant 0 : i32
    %c0_i32_1 = arith.constant 0 : i32
    return %c0_i32, %c0_i32_0 : i32, i32
  }
  func.func @transform_9(%arg0: i32) -> (i32, i32) {
    %c0_i32 = arith.constant 0 : i32
    %c0_i32_0 = arith.constant 0 : i32
    %c0_i32_1 = arith.constant 0 : i32
    return %c0_i32, %c0_i32_0 : i32, i32
  }
  func.func @transform_10(%arg0: i32) -> (i32, i32) {
    %c0_i32 = arith.constant 0 : i32
    %c0_i32_0 = arith.constant 0 : i32
    %c0_i32_1 = arith.constant 0 : i32
    return %c0_i32, %c0_i32_0 : i32, i32
  }
  func.func @transform_11(%arg0: i32) -> (i32, i32) {
    %c0_i32 = arith.constant 0 : i32
    %c0_i32_0 = arith.constant 0 : i32
    return %arg0, %c0_i32 : i32, i32
  }
}

</mosaic_0001>

<llo_original>
// kernel: _fused_forward.1
$region0: #{_fused_forward.1}
  #allocation0 [shape = 'u32[]', space=smem, size = 0x4, offset = 0x4, fixed_abs, tag = 'smem constant byte address 0x4 - core index']
  #allocation1 [shape = 'u32[144,128]{1,0:T(1,128)}', space=vmem, size = 0x12000, scoped, tag = 'internal scratch']
  #allocation2 [shape = 'f32[36,288]{1,0:T(8,128)}', space=vmem, size = 0xf000, scoped, tag = 'scratch operand']
  %s0 = inlined_call_operand.vmem [shape: bf16[1,36,72], index: 0, kind: input, shape index: {}]
  %s1 = inlined_call_operand.vmem [shape: bf16[3,72,256], index: 1, kind: input, shape index: {}]
  %s2 = inlined_call_operand.hbm [shape: bf16[3,288,256], index: 2, kind: input, shape index: {}]
  %s3 = inlined_call_operand.hbm [shape: bf16[3,288,256], index: 3, kind: input, shape index: {}]
  %s4 = inlined_call_operand.vmem [shape: f32[3,1,256], index: 4, kind: input, shape index: {}]
  %s5 = inlined_call_operand.vmem [shape: f32[3,1,256], index: 5, kind: input, shape index: {}]
  %s6 = inlined_call_operand.vmem [shape: f32[34,1], index: 6, kind: input, shape index: {}]
  %s7 = inlined_call_operand.vmem [shape: f32[2,34], index: 7, kind: input, shape index: {}]
  %s8 = inlined_call_operand.vmem [shape: f32[256,16], index: 8, kind: input, shape index: {}]
  %s9 = inlined_call_operand.vmem [shape: f32[16,128], index: 9, kind: input, shape index: {}]
  %s10 = inlined_call_operand.vmem [shape: f32[1,128], index: 10, kind: input, shape index: {}]
  %s11 = inlined_call_operand.vmem [shape: f32[2,128], index: 11, kind: output, shape index: {}]
  %s12 = sld [smem:[#allocation0]]
  $region62: #{_fused_forward.1} parent=0
    _
  %s14 = ssub.s32 1, %s12
  %s15 = scalar_select 0, %s14, %s12
  $region1: #{_fused_forward.1} parent=0
    #allocation3 [shape = 'u8[442368]{0}', space=vmem, size = 0x6c000, scoped, tag = 'input window, operand 2, single buffered']
    #allocation4 [shape = 's32[1]{0}', space=sflag, size = 0x4, scoped, tag = 'scoped memory for _fused_forward.1']
    #allocation5 [shape = 'u8[442368]{0}', space=vmem, size = 0x6c000, scoped, tag = 'input window, operand 3, single buffered']
    #allocation6 [shape = 's32[1]{0}', space=sflag, size = 0x4, scoped, tag = 'scoped memory for _fused_forward.1']
    %16 = vsyncpa [#allocation4], 0
    %17 = vsyncpa [#allocation6], 0
    // Predicated region
    $region2: #{_fused_forward.1} parent=1 // pred_check
      _
    $region3: #{_fused_forward.1} parent=1 // pred_check_branch
      %19 = sbr.rel (0) target = $region5
    $region4: #{_fused_forward.1} parent=1 // pred_region
      _
    $region5: #{_fused_forward.1} parent=1 // pred_fallthru
      _
    // Predicated region
    $region6: #{_fused_forward.1} parent=1 // pred_check
      _
    $region7: #{_fused_forward.1} parent=1 // pred_check_branch
      %21 = sbr.rel (0) target = $region9
    $region8: #{_fused_forward.1} parent=1 // pred_region
      _
    $region9: #{_fused_forward.1} parent=1 // pred_fallthru
      _
    // Predicated region
    $region10: #{_fused_forward.1} parent=1 // pred_check
      _
    $region11: #{_fused_forward.1} parent=1 // pred_check_branch
      %23 = sbr.rel (0) target = $region13
    $region12: #{_fused_forward.1} parent=1 // pred_region
      %s25 = ssub.s32 13824, 13824
      %26 = vsyncadd [#allocation4], %s25
      %s27 = sshll.u32 [#allocation3], 4
      %s28 = int_to_ptr.vmem [resolvable:$true] %s27
      %33 = dma.hbm_to_vmem [thread:$0]  %s2, 13824, %s28, [#allocation4], 128, 128, 8
    $region13: #{_fused_forward.1} parent=1 // pred_fallthru
      _
    // Predicated region
    $region14: #{_fused_forward.1} parent=1 // pred_check
      _
    $region15: #{_fused_forward.1} parent=1 // pred_check_branch
      %35 = sbr.rel (0) target = $region17
    $region16: #{_fused_forward.1} parent=1 // pred_region
      %s37 = ssub.s32 13824, 13824
      %38 = vsyncadd [#allocation6], %s37
      %s39 = sshll.u32 [#allocation5], 4
      %s40 = int_to_ptr.vmem [resolvable:$true] %s39
      %45 = dma.hbm_to_vmem [thread:$0]  %s3, 13824, %s40, [#allocation6], 128, 128, 8
    $region17: #{_fused_forward.1} parent=1 // pred_fallthru
      _
    // Predicated region
    $region18: #{_fused_forward.1} parent=1 // pred_check
      _
    $region19: #{_fused_forward.1} parent=1 // pred_check_branch
      %47 = sbr.rel (0) target = $region21
    $region20: #{_fused_forward.1} parent=1 // pred_region
      _
    $region21: #{_fused_forward.1} parent=1 // pred_fallthru
      _
    // Predicated region
    $region22: #{_fused_forward.1} parent=1 // pred_check
      _
    $region23: #{_fused_forward.1} parent=1 // pred_check_branch
      %49 = sbr.rel (0) target = $region25
    $region24: #{_fused_forward.1} parent=1 // pred_region
      _
    $region25: #{_fused_forward.1} parent=1 // pred_fallthru
      _
    // Predicated region
    $region26: #{_fused_forward.1} parent=1 // pred_check
      _
    $region27: #{_fused_forward.1} parent=1 // pred_check_branch
      %51 = sbr.rel (0) target = $region29
    $region28: #{_fused_forward.1} parent=1 // pred_region
      _
    $region29: #{_fused_forward.1} parent=1 // pred_fallthru
      _
    // Predicated region
    $region30: #{_fused_forward.1} parent=1 // pred_check
      _
    $region31: #{_fused_forward.1} parent=1 // pred_check_branch
      %53 = sbr.rel (0) target = $region33
    $region32: #{_fused_forward.1} parent=1 // pred_region
      _
    $region33: #{_fused_forward.1} parent=1 // pred_fallthru
      _
    // Predicated region
    $region34: #{_fused_forward.1} parent=1 // pred_check
      _
    $region35: #{_fused_forward.1} parent=1 // pred_check_branch
      %55 = sbr.rel (0) target = $region37
    $region36: #{_fused_forward.1} parent=1 // pred_region
      _
    $region37: #{_fused_forward.1} parent=1 // pred_fallthru
      _
    // Predicated region
    $region38: #{_fused_forward.1} parent=1 // pred_check
      _
    $region39: #{_fused_forward.1} parent=1 // pred_check_branch
      %57 = sbr.rel (0) target = $region41
    $region40: #{_fused_forward.1} parent=1 // pred_region
      _
    $region41: #{_fused_forward.1} parent=1 // pred_fallthru
      _
    // Predicated region
    $region42: #{_fused_forward.1} parent=1 // pred_check
      _
    $region43: #{_fused_forward.1} parent=1 // pred_check_branch
      %59 = sbr.rel (0) target = $region45
    $region44: #{_fused_forward.1} parent=1 // pred_region
      _
    $region45: #{_fused_forward.1} parent=1 // pred_fallthru
      _
    // Predicated region
    $region46: #{_fused_forward.1} parent=1 // pred_check
      _
    $region47: #{_fused_forward.1} parent=1 // pred_check_branch
      %61 = sbr.rel (0) target = $region49
    $region48: #{_fused_forward.1} parent=1 // pred_region
      %62 = dma.done [#allocation4], 13824
    $region49: #{_fused_forward.1} parent=1 // pred_fallthru
      _
    // Predicated region
    $region50: #{_fused_forward.1} parent=1 // pred_check
      _
    $region51: #{_fused_forward.1} parent=1 // pred_check_branch
      %64 = sbr.rel (0) target = $region53
    $region52: #{_fused_forward.1} parent=1 // pred_region
      %65 = dma.done [#allocation6], 13824
    $region53: #{_fused_forward.1} parent=1 // pred_fallthru
      _
    %67 = vst [vmem:[#allocation2] sm:$0xff] 0.0
    %68 = vst [vmem:[#allocation2 + $0x8] sm:$0xff] 0.0
    %vm69 = vcmask 261120
    %70 = vst.msk [vmem:[#allocation2 + $0x10] sm:$0xff] %vm69, 0.0
    %71 = vst [vmem:[#allocation2 + $0x18] sm:$0xff] 0.0
    %72 = vst [vmem:[#allocation2 + $0x20] sm:$0xff] 0.0
    %73 = vst.msk [vmem:[#allocation2 + $0x28] sm:$0xff] %vm69, 0.0
    %74 = vst [vmem:[#allocation2 + $0x30] sm:$0xff] 0.0
    %75 = vst [vmem:[#allocation2 + $0x38] sm:$0xff] 0.0
    %76 = vst.msk [vmem:[#allocation2 + $0x40] sm:$0xff] %vm69, 0.0
    %77 = vst [vmem:[#allocation2 + $0x48] sm:$0xff] 0.0
    %78 = vst [vmem:[#allocation2 + $0x50] sm:$0xff] 0.0
    %79 = vst.msk [vmem:[#allocation2 + $0x58] sm:$0xff] %vm69, 0.0
    %80 = vst [vmem:[#allocation2 + $0x60] sm:$0xf] 0.0
    %81 = vst [vmem:[#allocation2 + $0x68] sm:$0xf] 0.0
    %vm82 = vcmask 257024
    %83 = vst.msk [vmem:[#allocation2 + $0x70] sm:$0xf] %vm82, 0.0
    %v84 = vld [vmem:[%s6] sm:$0xff]
    %v85 = vld [vmem:[%s6 + $0x8] sm:$0xff]
    %v86 = vld [vmem:[%s6 + $0x10] sm:$0xff]
    %v87 = vld [vmem:[%s6 + $0x18] sm:$0xff]
    %v88 = vld [vmem:[%s6 + $0x20] sm:$0x3]
    %v89 = vld [vmem:[%s0] sm:$0xf]
    %v90 = vld [vmem:[%s0 + $0x4] sm:$0xf]
    %v91 = vld [vmem:[%s0 + $0x8] sm:$0xf]
    %v92 = vld [vmem:[%s0 + $0xc] sm:$0xf]
    %v93 = vld [vmem:[%s0 + $0x10] sm:$0x1]
    %v94 = vld [vmem:[%s1] sm:$0xff]
    %v95 = vld [vmem:[%s1 + $0x8] sm:$0xff]
    %v96 = vld [vmem:[%s1 + $0x10] sm:$0xff]
    %v97 = vld [vmem:[%s1 + $0x18] sm:$0xff]
    %v98 = vld [vmem:[%s1 + $0x20] sm:$0xff]
    %v99 = vld [vmem:[%s1 + $0x28] sm:$0xff]
    %v100 = vld [vmem:[%s1 + $0x30] sm:$0xff]
    %v101 = vld [vmem:[%s1 + $0x38] sm:$0xff]
    %v102 = vld [vmem:[%s1 + $0x40] sm:$0xff]
    %v103 = vld [vmem:[%s0 + $0x10] sm:$0x3]
    %s104 = scalar_lea.vmem %s1, 72
    %v105 = vld [vmem:[%s104] sm:$0xff]
    %v106 = vld [vmem:[%s104 + $0x8] sm:$0xff]
    %v107 = vld [vmem:[%s104 + $0x10] sm:$0xff]
    %v108 = vld [vmem:[%s104 + $0x18] sm:$0xff]
    %v109 = vld [vmem:[%s104 + $0x20] sm:$0xff]
    %v110 = vld [vmem:[%s104 + $0x28] sm:$0xff]
    %v111 = vld [vmem:[%s104 + $0x30] sm:$0xff]
    %v112 = vld [vmem:[%s104 + $0x38] sm:$0xff]
    %v113 = vld [vmem:[%s104 + $0x40] sm:$0xff]
    %v119 = vunpack.c.l.b16 %v89
    %v120 = vunpack.c.l.b16 %v90
    %v121 = vunpack.c.l.b16 %v91
    %v122 = vunpack.c.l.b16 %v92
    %v123 = vunpack.c.l.b16 %v103
    %v124 = vpack.c.b16 %v120, %v119
    %v125 = vpack.c.b16 %v122, %v121
    %v126 = vpack.c.b16 %v123, %v123
    %vm127 = vsmask.f32 7424
    %v129 = vshrl.u32 %v124, 16
    %v131 = vshll.u32 %v124, 16
    %v133 = vrot.slane %v131, 1
    %v134 = vor.u32 %v129, %v133
    %v136 = vshll.u32 %v125, 16
    %v138 = vrot.slane %v136, 1
    %v139 = vsel %vm127, %v134, %v138
    %v140 = vshrl.u32 %v125, 16
    %v142 = vor.u32 %v140, %v138
    %v144 = vshll.u32 %v126, 16
    %v146 = vrot.slane %v144, 1
    %v147 = vsel %vm127, %v142, %v146
    %v148 = vshrl.u32 %v126, 16
    %v150 = vor.u32 %v148, %v146
    %v160 = vunpack.c.l.b16 %v105
    %v161 = vunpack.c.h.b16 %v105
    %v162 = vunpack.c.l.b16 %v106
    %v163 = vunpack.c.h.b16 %v106
    %v164 = vunpack.c.l.b16 %v107
    %v165 = vunpack.c.h.b16 %v107
    %v166 = vunpack.c.l.b16 %v108
    %v167 = vunpack.c.h.b16 %v108
    %v168 = vunpack.c.l.b16 %v109
    %v169 = vunpack.c.h.b16 %v109
    %v170 = vunpack.c.l.b16 %v110
    %v171 = vunpack.c.h.b16 %v110
    %v172 = vunpack.c.l.b16 %v111
    %v173 = vunpack.c.h.b16 %v111
    %v174 = vunpack.c.l.b16 %v112
    %v175 = vunpack.c.h.b16 %v112
    %v176 = vunpack.c.l.b16 %v113
    %v177 = vunpack.c.h.b16 %v113
    %v178 = vpack.c.b16 %v162, %v160
    %v179 = vpack.c.b16 %v163, %v161
    %v180 = vpack.c.b16 %v166, %v164
    %v181 = vpack.c.b16 %v167, %v165
    %v182 = vpack.c.b16 %v170, %v168
    %v183 = vpack.c.b16 %v171, %v169
    %v184 = vpack.c.b16 %v174, %v172
    %v185 = vpack.c.b16 %v175, %v173
    %v186 = vpack.c.b16 %v176, %v176
    %v187 = vpack.c.b16 %v177, %v177
    %vm196 = vcmask 588800
    %v198 = vsel %vm196, %v139, 0
    %v201 = vsel %vm196, %v147, 0
    %v204 = vsel %vm196, %v150, 0
    %vm206 = vcmask 1043456
    %v208 = vsel %vm206, %v186, 0
    %v211 = vsel %vm206, %v187, 0
    %213 = vmatprep.subr.bf16.mxu0 %v179
    %214 = vmatpush1.bf16.msra.mxu0 %v178
    %215 = vmatprep.subr.bf16.mxu0 %v181
    %216 = vmatpush1.bf16.msra.mxu0 %v180
    %217 = vmatprep.subr.bf16.mxu0 %v183
    %218 = vmatpush1.bf16.msra.mxu0 %v182
    %219 = vmatprep.subr.bf16.mxu0 %v185
    %220 = vmatpush1.bf16.msra.mxu0 %v184
    %221 = vmatprep.subr.bf16.mxu0 %v211
    %222 = vmatpush1.bf16.msra.mxu0 %v208
    %223 = vmatprep.subr.bf16.mxu0 0
    %224 = vmatpush1.bf16.msra.mxu0 0
    %225 = vmatprep.subr.bf16.mxu0 0
    %226 = vmatpush1.bf16.msra.mxu0 0
    %227 = vmatprep.subr.bf16.mxu0 0
    %228 = vmatpush1.bf16.msra.mxu0 0
    %229 = vmatprep.subr.bf16.mxu0 0
    %230 = vmatpush1.bf16.msra.mxu0 0
    %231 = vmatprep.subr.bf16.mxu0 0
    %232 = vmatpush1.bf16.msra.mxu0 0
    %233 = vmatprep.subr.bf16.mxu0 0
    %234 = vmatpush1.bf16.msra.mxu0 0
    %235 = vmatprep.subr.bf16.mxu0 0
    %236 = vmatpush1.bf16.msra.mxu0 0
    %237 = vmatprep.subr.bf16.mxu0 0
    %238 = vmatpush1.bf16.msra.mxu0 0
    %239 = vmatprep.subr.bf16.mxu0 0
    %240 = vmatpush1.bf16.msra.mxu0 0
    %241 = vmatprep.subr.bf16.mxu0 0
    %242 = vmatpush1.bf16.msra.mxu0 0
    %243 = vmatprep.subr.bf16.mxu0 0
    %244 = vmatpush1.bf16.msra.mxu0 0
    %245 = vmatprep.mubr.bf16.mxu0 0
    %246 = vmatmul.mubr.bf16.gmra.mrb[0].mxu0 %v198
    %v247 = vpop.f32.mrb[0].mxu0
    %v248 = vadd.f32 0.0, %v247
    %v249 = vpop.f32.mrb[0].mxu0
    %v250 = vadd.f32 0.0, %v249
    %v251 = vpop.f32.mrb[0].mxu0
    %v252 = vadd.f32 0.0, %v251
    %v253 = vpop.f32.mrb[0].mxu0
    %v254 = vadd.f32 0.0, %v253
    %255 = vmatprep.mubr.bf16.mxu0 0
    %256 = vmatmul.mubr.bf16.gmra.mrb[0].mxu0 %v201
    %v257 = vpop.f32.mrb[0].mxu0
    %v258 = vadd.f32 0.0, %v257
    %v259 = vpop.f32.mrb[0].mxu0
    %v260 = vadd.f32 0.0, %v259
    %v261 = vpop.f32.mrb[0].mxu0
    %v262 = vadd.f32 0.0, %v261
    %v263 = vpop.f32.mrb[0].mxu0
    %v264 = vadd.f32 0.0, %v263
    %265 = vmatprep.mubr.bf16.mxu0 0
    %266 = vmatmul.mubr.bf16.gmra.mrb[0].mxu0 %v204
    %v267 = vpop.f32.mrb[0].mxu0
    %v268 = vadd.f32 0.0, %v267
    %v269 = vpop.f32.mrb[0].mxu0
    %v270 = vadd.f32 0.0, %v269
    %v271 = vpop.f32.mrb[0].mxu0
    %v272 = vpop.f32.mrb[0].mxu0
    %273 = vdwg.mxu0
    %v275 = vunpack.c.l.b16 %v93
    %v276 = vpack.c.b16 %v275, %v275
    %v286 = vunpack.c.l.b16 %v94
    %v287 = vunpack.c.h.b16 %v94
    %v288 = vunpack.c.l.b16 %v95
    %v289 = vunpack.c.h.b16 %v95
    %v290 = vunpack.c.l.b16 %v96
    %v291 = vunpack.c.h.b16 %v96
    %v292 = vunpack.c.l.b16 %v97
    %v293 = vunpack.c.h.b16 %v97
    %v294 = vunpack.c.l.b16 %v98
    %v295 = vunpack.c.h.b16 %v98
    %v296 = vunpack.c.l.b16 %v99
    %v297 = vunpack.c.h.b16 %v99
    %v298 = vunpack.c.l.b16 %v100
    %v299 = vunpack.c.h.b16 %v100
    %v300 = vunpack.c.l.b16 %v101
    %v301 = vunpack.c.h.b16 %v101
    %v302 = vunpack.c.l.b16 %v102
    %v303 = vunpack.c.h.b16 %v102
    %v304 = vpack.c.b16 %v288, %v286
    %v305 = vpack.c.b16 %v289, %v287
    %v306 = vpack.c.b16 %v292, %v290
    %v307 = vpack.c.b16 %v293, %v291
    %v308 = vpack.c.b16 %v296, %v294
    %v309 = vpack.c.b16 %v297, %v295
    %v310 = vpack.c.b16 %v300, %v298
    %v311 = vpack.c.b16 %v301, %v299
    %v312 = vpack.c.b16 %v302, %v302
    %v313 = vpack.c.b16 %v303, %v303
    %v322 = vsel %vm196, %v124, 0
    %v324 = vsel %vm196, %v125, 0
    %v327 = vsel %vm196, %v276, 0
    %v330 = vsel %vm206, %v312, 0
    %v333 = vsel %vm206, %v313, 0
    %335 = vmatprep.subr.bf16.mxu0 %v305
    %336 = vmatpush1.bf16.msra.mxu0 %v304
    %337 = vmatprep.subr.bf16.mxu0 %v307
    %338 = vmatpush1.bf16.msra.mxu0 %v306
    %339 = vmatprep.subr.bf16.mxu0 %v309
    %340 = vmatpush1.bf16.msra.mxu0 %v308
    %341 = vmatprep.subr.bf16.mxu0 %v311
    %342 = vmatpush1.bf16.msra.mxu0 %v310
    %343 = vmatprep.subr.bf16.mxu0 %v333
    %344 = vmatpush1.bf16.msra.mxu0 %v330
    %345 = vmatprep.subr.bf16.mxu0 0
    %346 = vmatpush1.bf16.msra.mxu0 0
    %347 = vmatprep.subr.bf16.mxu0 0
    %348 = vmatpush1.bf16.msra.mxu0 0
    %349 = vmatprep.subr.bf16.mxu0 0
    %350 = vmatpush1.bf16.msra.mxu0 0
    %351 = vmatprep.subr.bf16.mxu0 0
    %352 = vmatpush1.bf16.msra.mxu0 0
    %353 = vmatprep.subr.bf16.mxu0 0
    %354 = vmatpush1.bf16.msra.mxu0 0
    %355 = vmatprep.subr.bf16.mxu0 0
    %356 = vmatpush1.bf16.msra.mxu0 0
    %357 = vmatprep.subr.bf16.mxu0 0
    %358 = vmatpush1.bf16.msra.mxu0 0
    %359 = vmatprep.subr.bf16.mxu0 0
    %360 = vmatpush1.bf16.msra.mxu0 0
    %361 = vmatprep.subr.bf16.mxu0 0
    %362 = vmatpush1.bf16.msra.mxu0 0
    %363 = vmatprep.subr.bf16.mxu0 0
    %364 = vmatpush1.bf16.msra.mxu0 0
    %365 = vmatprep.subr.bf16.mxu0 0
    %366 = vmatpush1.bf16.msra.mxu0 0
    %367 = vmatprep.mubr.bf16.mxu0 0
    %368 = vmatmul.mubr.bf16.gmra.mrb[0].mxu0 %v322
    %v369 = vpop.f32.mrb[0].mxu0
    %v370 = vadd.f32 %v248, %v369
    %v371 = vpop.f32.mrb[0].mxu0
    %v372 = vadd.f32 %v250, %v371
    %v373 = vpop.f32.mrb[0].mxu0
    %v374 = vadd.f32 %v252, %v373
    %v375 = vpop.f32.mrb[0].mxu0
    %v376 = vadd.f32 %v254, %v375
    %377 = vmatprep.mubr.bf16.mxu0 0
    %378 = vmatmul.mubr.bf16.gmra.mrb[0].mxu0 %v324
    %v379 = vpop.f32.mrb[0].mxu0
    %v380 = vadd.f32 %v258, %v379
    %v381 = vpop.f32.mrb[0].mxu0
    %v382 = vadd.f32 %v260, %v381
    %v383 = vpop.f32.mrb[0].mxu0
    %v384 = vadd.f32 %v262, %v383
    %v385 = vpop.f32.mrb[0].mxu0
    %v386 = vadd.f32 %v264, %v385
    %387 = vmatprep.mubr.bf16.mxu0 0
    %388 = vmatmul.mubr.bf16.gmra.mrb[0].mxu0 %v327
    %v389 = vpop.f32.mrb[0].mxu0
    %v390 = vadd.f32 %v268, %v389
    %v391 = vpop.f32.mrb[0].mxu0
    %v392 = vadd.f32 %v270, %v391
    %v393 = vpop.f32.mrb[0].mxu0
    %v394 = vpop.f32.mrb[0].mxu0
    %395 = vdwg.mxu0
    %v396 = vld [vmem:[%s0] sm:$0xe]
    %s397 = scalar_lea.vmem %s1, 144
    %v398 = vld [vmem:[%s397] sm:$0xff]
    %v399 = vld [vmem:[%s397 + $0x8] sm:$0xff]
    %v400 = vld [vmem:[%s397 + $0x10] sm:$0xff]
    %v401 = vld [vmem:[%s397 + $0x18] sm:$0xff]
    %v402 = vld [vmem:[%s397 + $0x20] sm:$0xff]
    %v403 = vld [vmem:[%s397 + $0x28] sm:$0xff]
    %v404 = vld [vmem:[%s397 + $0x30] sm:$0xff]
    %v405 = vld [vmem:[%s397 + $0x38] sm:$0xff]
    %v406 = vld [vmem:[%s397 + $0x40] sm:$0xff]
    %v408 = vunpack.c.l.b16 %v396
    %v409 = vpack.c.b16 %v120, %v408
    %vm410 = vcmask 1046528
    %v411 = vrot.slane %v409, 1
    %v412 = vrot.slane %v125, 1
    %v413 = vsel %vm410, %v411, %v412
    %v414 = vrot.slane %v126, 1
    %v415 = vsel %vm410, %v412, %v414
    %v425 = vunpack.c.l.b16 %v398
    %v426 = vunpack.c.h.b16 %v398
    %v427 = vunpack.c.l.b16 %v399
    %v428 = vunpack.c.h.b16 %v399
    %v429 = vunpack.c.l.b16 %v400
    %v430 = vunpack.c.h.b16 %v400
    %v431 = vunpack.c.l.b16 %v401
    %v432 = vunpack.c.h.b16 %v401
    %v433 = vunpack.c.l.b16 %v402
    %v434 = vunpack.c.h.b16 %v402
    %v435 = vunpack.c.l.b16 %v403
    %v436 = vunpack.c.h.b16 %v403
    %v437 = vunpack.c.l.b16 %v404
    %v438 = vunpack.c.h.b16 %v404
    %v439 = vunpack.c.l.b16 %v405
    %v440 = vunpack.c.h.b16 %v405
    %v441 = vunpack.c.l.b16 %v406
    %v442 = vunpack.c.h.b16 %v406
    %v443 = vpack.c.b16 %v427, %v425
    %v444 = vpack.c.b16 %v428, %v426
    %v445 = vpack.c.b16 %v431, %v429
    %v446 = vpack.c.b16 %v432, %v430
    %v447 = vpack.c.b16 %v435, %v433
    %v448 = vpack.c.b16 %v436, %v434
    %v449 = vpack.c.b16 %v439, %v437
    %v450 = vpack.c.b16 %v440, %v438
    %v451 = vpack.c.b16 %v441, %v441
    %v452 = vpack.c.b16 %v442, %v442
    %v462 = vsel %vm196, %v413, 0
    %v465 = vsel %vm196, %v415, 0
    %v468 = vsel %vm196, %v414, 0
    %v471 = vsel %vm206, %v451, 0
    %v474 = vsel %vm206, %v452, 0
    %476 = vmatprep.subr.bf16.mxu0 %v444
    %477 = vmatpush1.bf16.msra.mxu0 %v443
    %478 = vmatprep.subr.bf16.mxu0 %v446
    %479 = vmatpush1.bf16.msra.mxu0 %v445
    %480 = vmatprep.subr.bf16.mxu0 %v448
    %481 = vmatpush1.bf16.msra.mxu0 %v447
    %482 = vmatprep.subr.bf16.mxu0 %v450
    %483 = vmatpush1.bf16.msra.mxu0 %v449
    %484 = vmatprep.subr.bf16.mxu0 %v474
    %485 = vmatpush1.bf16.msra.mxu0 %v471
    %486 = vmatprep.subr.bf16.mxu0 0
    %487 = vmatpush1.bf16.msra.mxu0 0
    %488 = vmatprep.subr.bf16.mxu0 0
    %489 = vmatpush1.bf16.msra.mxu0 0
    %490 = vmatprep.subr.bf16.mxu0 0
    %491 = vmatpush1.bf16.msra.mxu0 0
    %492 = vmatprep.subr.bf16.mxu0 0
    %493 = vmatpush1.bf16.msra.mxu0 0
    %494 = vmatprep.subr.bf16.mxu0 0
    %495 = vmatpush1.bf16.msra.mxu0 0
    %496 = vmatprep.subr.bf16.mxu0 0
    %497 = vmatpush1.bf16.msra.mxu0 0
    %498 = vmatprep.subr.bf16.mxu0 0
    %499 = vmatpush1.bf16.msra.mxu0 0
    %500 = vmatprep.subr.bf16.mxu0 0
    %501 = vmatpush1.bf16.msra.mxu0 0
    %502 = vmatprep.subr.bf16.mxu0 0
    %503 = vmatpush1.bf16.msra.mxu0 0
    %504 = vmatprep.subr.bf16.mxu0 0
    %505 = vmatpush1.bf16.msra.mxu0 0
    %506 = vmatprep.subr.bf16.mxu0 0
    %507 = vmatpush1.bf16.msra.mxu0 0
    %508 = vmatprep.mubr.bf16.mxu0 0
    %509 = vmatmul.mubr.bf16.gmra.mrb[0].mxu0 %v462
    %v510 = vpop.f32.mrb[0].mxu0
    %v511 = vadd.f32 0.0, %v510
    %v512 = vpop.f32.mrb[0].mxu0
    %v513 = vadd.f32 0.0, %v512
    %v514 = vpop.f32.mrb[0].mxu0
    %v515 = vadd.f32 0.0, %v514
    %v516 = vpop.f32.mrb[0].mxu0
    %v517 = vadd.f32 0.0, %v516
    %518 = vmatprep.mubr.bf16.mxu0 0
    %519 = vmatmul.mubr.bf16.gmra.mrb[0].mxu0 %v465
    %v520 = vpop.f32.mrb[0].mxu0
    %v521 = vadd.f32 0.0, %v520
    %v522 = vpop.f32.mrb[0].mxu0
    %v523 = vadd.f32 0.0, %v522
    %v524 = vpop.f32.mrb[0].mxu0
    %v525 = vadd.f32 0.0, %v524
    %v526 = vpop.f32.mrb[0].mxu0
    %v527 = vadd.f32 0.0, %v526
    %528 = vmatprep.mubr.bf16.mxu0 0
    %529 = vmatmul.mubr.bf16.gmra.mrb[0].mxu0 %v468
    %v530 = vpop.f32.mrb[0].mxu0
    %v531 = vadd.f32 0.0, %v530
    %v532 = vpop.f32.mrb[0].mxu0
    %v533 = vadd.f32 0.0, %v532
    %v534 = vpop.f32.mrb[0].mxu0
    %v535 = vpop.f32.mrb[0].mxu0
    %536 = vdwg.mxu0
    %v537 = vadd.f32 %v370, %v511
    %v538 = vadd.f32 %v372, %v513
    %v539 = vadd.f32 %v374, %v515
    %v540 = vadd.f32 %v376, %v517
    %v541 = vadd.f32 %v380, %v521
    %v542 = vadd.f32 %v382, %v523
    %v543 = vadd.f32 %v384, %v525
    %v544 = vadd.f32 %v386, %v527
    %v545 = vadd.f32 %v390, %v531
    %v546 = vadd.f32 %v392, %v533
    %v547 = vld [vmem:[%s4] sm:$0x3]
    %v549 = vlaneseq
    %v550 = vshrl.u32 %v549, 7
    %v551 = vsub.s32 0, %v550
    %v552 = vrot.slane %v547, %v551
    %v553 = vlaneseq
    %v554 = vshrl.u32 %v553, 7
    %v555 = vsub.s32 1, %v554
    %v556 = vrot.slane %v547, %v555
    %v559 = vmul.f32 %v537, %v552
    %v560 = vmul.f32 %v538, %v556
    %v561 = vmul.f32 %v539, %v552
    %v562 = vmul.f32 %v540, %v556
    %v563 = vmul.f32 %v541, %v552
    %v564 = vmul.f32 %v542, %v556
    %v565 = vmul.f32 %v543, %v552
    %v566 = vmul.f32 %v544, %v556
    %v567 = vmul.f32 %v545, %v552
    %v568 = vmul.f32 %v546, %v556
    %v569 = vld [vmem:[%s5] sm:$0x3]
    %v571 = vlaneseq
    %v572 = vshrl.u32 %v571, 7
    %v573 = vsub.s32 0, %v572
    %v574 = vrot.slane %v569, %v573
    %v575 = vlaneseq
    %v576 = vshrl.u32 %v575, 7
    %v577 = vsub.s32 1, %v576
    %v578 = vrot.slane %v569, %v577
    %v581 = vadd.f32 %v559, %v574
    %v582 = vadd.f32 %v560, %v578
    %v583 = vadd.f32 %v561, %v574
    %v584 = vadd.f32 %v562, %v578
    %v585 = vadd.f32 %v563, %v574
    %v586 = vadd.f32 %v564, %v578
    %v587 = vadd.f32 %v565, %v574
    %v588 = vadd.f32 %v566, %v578
    %v589 = vadd.f32 %v567, %v574
    %v590 = vadd.f32 %v568, %v578
    %v591 = vmax.f32 %v581, 0.0
    %v592 = vmax.f32 %v582, 0.0
    %v593 = vmax.f32 %v583, 0.0
    %v594 = vmax.f32 %v584, 0.0
    %v595 = vmax.f32 %v585, 0.0
    %v596 = vmax.f32 %v586, 0.0
    %v597 = vmax.f32 %v587, 0.0
    %v598 = vmax.f32 %v588, 0.0
    %v599 = vmax.f32 %v589, 0.0
    %v600 = vmax.f32 %v590, 0.0
    %602 = vset.pattern.permute.xlu0 0
    %603 = vperm.xlu0 %602, %v84
    %v604 = vpop.permute.xlu0 %603
    %607 = vset.pattern.permute.xlu0 0
    %608 = vperm.xlu0 %607, %v85
    %v609 = vpop.permute.xlu0 %608
    %612 = vset.pattern.permute.xlu0 0
    %613 = vperm.xlu0 %612, %v86
    %v614 = vpop.permute.xlu0 %613
    %617 = vset.pattern.permute.xlu0 0
    %618 = vperm.xlu0 %617, %v87
    %v619 = vpop.permute.xlu0 %618
    %622 = vset.pattern.permute.xlu0 0
    %623 = vperm.xlu0 %622, %v88
    %v624 = vpop.permute.xlu0 %623
    %v626 = vmul.f32 %v591, %v604
    %v627 = vmul.f32 %v592, %v604
    %v628 = vmul.f32 %v593, %v609
    %v629 = vmul.f32 %v594, %v609
    %v630 = vmul.f32 %v595, %v614
    %v631 = vmul.f32 %v596, %v614
    %v632 = vmul.f32 %v597, %v619
    %v633 = vmul.f32 %v598, %v619
    %v634 = vmul.f32 %v599, %v624
    %v635 = vmul.f32 %v600, %v624
    %vm646 = vcmask 1040384
    %v647 = vrot.slane %v626, 7
    %v648 = vrot.slane %v627, 7
    %v649 = vrot.slane %v628, 7
    %v650 = vsel %vm646, %v647, %v649
    %v651 = vrot.slane %v629, 7
    %v652 = vsel %vm646, %v648, %v651
    %v653 = vrot.slane %v630, 7
    %v654 = vsel %vm646, %v649, %v653
    %v655 = vrot.slane %v631, 7
    %v656 = vsel %vm646, %v651, %v655
    %v657 = vrot.slane %v632, 7
    %v658 = vsel %vm646, %v653, %v657
    %v659 = vrot.slane %v633, 7
    %v660 = vsel %vm646, %v655, %v659
    %v661 = vrot.slane %v634, 7
    %v662 = vsel %vm646, %v657, %v661
    %v663 = vrot.slane %v635, 7
    %v664 = vsel %vm646, %v659, %v663
    %675 = vst [vmem:[#allocation2] sm:$0xfe] %v647
    %676 = vst [vmem:[#allocation2 + $0x8] sm:$0xfe] %v648
    %677 = vst [vmem:[#allocation2 + $0x18] sm:$0xff] %v650
    %678 = vst [vmem:[#allocation2 + $0x20] sm:$0xff] %v652
    %679 = vst [vmem:[#allocation2 + $0x30] sm:$0xff] %v654
    %680 = vst [vmem:[#allocation2 + $0x38] sm:$0xff] %v656
    %681 = vst [vmem:[#allocation2 + $0x48] sm:$0xff] %v658
    %682 = vst [vmem:[#allocation2 + $0x50] sm:$0xff] %v660
    %683 = vst [vmem:[#allocation2 + $0x60] sm:$0x7] %v662
    %684 = vst [vmem:[#allocation2 + $0x68] sm:$0x7] %v664
    %v685 = vld [vmem:[#allocation2] sm:$0xff]
    %v686 = vld [vmem:[#allocation2 + $0x8] sm:$0xff]
    %v687 = vld [vmem:[#allocation2 + $0x10] sm:$0xff]
    %v688 = vld [vmem:[#allocation2 + $0x18] sm:$0xff]
    %v689 = vld [vmem:[#allocation2 + $0x20] sm:$0xff]
    %v690 = vld [vmem:[#allocation2 + $0x28] sm:$0xff]
    %v691 = vld [vmem:[#allocation2 + $0x30] sm:$0xff]
    %v692 = vld [vmem:[#allocation2 + $0x38] sm:$0xff]
    %v693 = vld [vmem:[#allocation2 + $0x40] sm:$0xff]
    %v694 = vld [vmem:[#allocation2 + $0x48] sm:$0xff]
    %v695 = vld [vmem:[#allocation2 + $0x50] sm:$0xff]
    %v696 = vld [vmem:[#allocation2 + $0x58] sm:$0xff]
    %v697 = vld [vmem:[#allocation2 + $0x60] sm:$0x3]
    %v698 = vld [vmem:[#allocation2 + $0x68] sm:$0x3]
    %v699 = vld [vmem:[#allocation2 + $0x70] sm:$0x3]
    %v700 = vpack.c.bf16 %v688, %v685
    %v701 = vpack.c.bf16 %v689, %v686
    %v702 = vpack.c.bf16 %v690, %v687
    %v703 = vpack.c.bf16 %v694, %v691
    %v704 = vpack.c.bf16 %v695, %v692
    %v705 = vpack.c.bf16 %v696, %v693
    %v706 = vpack.c.bf16 %v697, %v697
    %v707 = vpack.c.bf16 %v698, %v698
    %v708 = vpack.c.bf16 %v699, %v699
    %v709 = vld [vmem:[#allocation3] sm:$0xff]
    %v710 = vld [vmem:[#allocation3 + $0x8] sm:$0xff]
    %v711 = vld [vmem:[#allocation3 + $0x10] sm:$0xff]
    %v712 = vld [vmem:[#allocation3 + $0x18] sm:$0xff]
    %v713 = vld [vmem:[#allocation3 + $0x20] sm:$0xff]
    %v714 = vld [vmem:[#allocation3 + $0x28] sm:$0xff]
    %v715 = vld [vmem:[#allocation3 + $0x30] sm:$0xff]
    %v716 = vld [vmem:[#allocation3 + $0x38] sm:$0xff]
    %v717 = vld [vmem:[#allocation3 + $0x40] sm:$0xff]
    %v718 = vld [vmem:[#allocation3 + $0x48] sm:$0xff]
    %v719 = vld [vmem:[#allocation3 + $0x50] sm:$0xff]
    %v720 = vld [vmem:[#allocation3 + $0x58] sm:$0xff]
    %v721 = vld [vmem:[#allocation3 + $0x60] sm:$0xff]
    %v722 = vld [vmem:[#allocation3 + $0x68] sm:$0xff]
    %v723 = vld [vmem:[#allocation3 + $0x70] sm:$0xff]
    %v724 = vld [vmem:[#allocation3 + $0x78] sm:$0xff]
    %v725 = vld [vmem:[#allocation3 + $0x80] sm:$0xff]
    %v726 = vld [vmem:[#allocation3 + $0x88] sm:$0xff]
    %v727 = vld [vmem:[#allocation3 + $0x90] sm:$0xff]
    %v728 = vld [vmem:[#allocation3 + $0x98] sm:$0xff]
    %v729 = vld [vmem:[#allocation3 + $0xa0] sm:$0xff]
    %v730 = vld [vmem:[#allocation3 + $0xa8] sm:$0xff]
    %v731 = vld [vmem:[#allocation3 + $0xb0] sm:$0xff]
    %v732 = vld [vmem:[#allocation3 + $0xb8] sm:$0xff]
    %v733 = vld [vmem:[#allocation3 + $0xc0] sm:$0xff]
    %v734 = vld [vmem:[#allocation3 + $0xc8] sm:$0xff]
    %v735 = vld [vmem:[#allocation3 + $0xd0] sm:$0xff]
    %v736 = vld [vmem:[#allocation3 + $0xd8] sm:$0xff]
    %v737 = vld [vmem:[#allocation3 + $0xe0] sm:$0xff]
    %v738 = vld [vmem:[#allocation3 + $0xe8] sm:$0xff]
    %v739 = vld [vmem:[#allocation3 + $0xf0] sm:$0xff]
    %v740 = vld [vmem:[#allocation3 + $0xf8] sm:$0xff]
    %v741 = vld [vmem:[#allocation3 + $0x100] sm:$0xff]
    %v742 = vld [vmem:[#allocation3 + $0x108] sm:$0xff]
    %v743 = vld [vmem:[#allocation3 + $0x110] sm:$0xff]
    %v744 = vld [vmem:[#allocation3 + $0x118] sm:$0xff]
    %v745 = vld [vmem:[#allocation2] sm:$0xfe]
    %v746 = vld [vmem:[#allocation2 + $0x8] sm:$0xfe]
    %v747 = vld [vmem:[#allocation2 + $0x10] sm:$0xfe]
    %v748 = vld [vmem:[#allocation2 + $0x60] sm:$0x7]
    %v749 = vld [vmem:[#allocation2 + $0x68] sm:$0x7]
    %v750 = vld [vmem:[#allocation2 + $0x70] sm:$0x7]
    %v751 = vpack.c.bf16 %v688, %v745
    %v752 = vpack.c.bf16 %v689, %v746
    %v753 = vpack.c.bf16 %v690, %v747
    %v754 = vpack.c.bf16 %v748, %v748
    %v755 = vpack.c.bf16 %v749, %v749
    %v756 = vpack.c.bf16 %v750, %v750
    %s757 = scalar_lea.vmem [#allocation3], 288
    %v758 = vld [vmem:[%s757] sm:$0xff]
    %v759 = vld [vmem:[%s757 + $0x8] sm:$0xff]
    %v760 = vld [vmem:[%s757 + $0x10] sm:$0xff]
    %v761 = vld [vmem:[%s757 + $0x18] sm:$0xff]
    %v762 = vld [vmem:[%s757 + $0x20] sm:$0xff]
    %v763 = vld [vmem:[%s757 + $0x28] sm:$0xff]
    %v764 = vld [vmem:[%s757 + $0x30] sm:$0xff]
    %v765 = vld [vmem:[%s757 + $0x38] sm:$0xff]
    %v766 = vld [vmem:[%s757 + $0x40] sm:$0xff]
    %v767 = vld [vmem:[%s757 + $0x48] sm:$0xff]
    %v768 = vld [vmem:[%s757 + $0x50] sm:$0xff]
    %v769 = vld [vmem:[%s757 + $0x58] sm:$0xff]
    %v770 = vld [vmem:[%s757 + $0x60] sm:$0xff]
    %v771 = vld [vmem:[%s757 + $0x68] sm:$0xff]
    %v772 = vld [vmem:[%s757 + $0x70] sm:$0xff]
    %v773 = vld [vmem:[%s757 + $0x78] sm:$0xff]
    %v774 = vld [vmem:[%s757 + $0x80] sm:$0xff]
    %v775 = vld [vmem:[%s757 + $0x88] sm:$0xff]
    %v776 = vld [vmem:[%s757 + $0x90] sm:$0xff]
    %v777 = vld [vmem:[%s757 + $0x98] sm:$0xff]
    %v778 = vld [vmem:[%s757 + $0xa0] sm:$0xff]
    %v779 = vld [vmem:[%s757 + $0xa8] sm:$0xff]
    %v780 = vld [vmem:[%s757 + $0xb0] sm:$0xff]
    %v781 = vld [vmem:[%s757 + $0xb8] sm:$0xff]
    %v782 = vld [vmem:[%s757 + $0xc0] sm:$0xff]
    %v783 = vld [vmem:[%s757 + $0xc8] sm:$0xff]
    %v784 = vld [vmem:[%s757 + $0xd0] sm:$0xff]
    %v785 = vld [vmem:[%s757 + $0xd8] sm:$0xff]
    %v786 = vld [vmem:[%s757 + $0xe0] sm:$0xff]
    %v787 = vld [vmem:[%s757 + $0xe8] sm:$0xff]
    %v788 = vld [vmem:[%s757 + $0xf0] sm:$0xff]
    %v789 = vld [vmem:[%s757 + $0xf8] sm:$0xff]
    %v790 = vld [vmem:[%s757 + $0x100] sm:$0xff]
    %v791 = vld [vmem:[%s757 + $0x108] sm:$0xff]
    %v792 = vld [vmem:[%s757 + $0x110] sm:$0xff]
    %v793 = vld [vmem:[%s757 + $0x118] sm:$0xff]
    %v795 = vshrl.u32 %v751, 16
    %v797 = vshll.u32 %v751, 16
    %v799 = vrot.slane %v797, 1
    %v800 = vor.u32 %v795, %v799
    %v802 = vshll.u32 %v703, 16
    %v804 = vrot.slane %v802, 1
    %v805 = vsel %vm127, %v800, %v804
    %v807 = vshrl.u32 %v752, 16
    %v809 = vshll.u32 %v752, 16
    %v811 = vrot.slane %v809, 1
    %v812 = vor.u32 %v807, %v811
    %v814 = vshll.u32 %v704, 16
    %v816 = vrot.slane %v814, 1
    %v817 = vsel %vm127, %v812, %v816
    %v819 = vshrl.u32 %v753, 16
    %v821 = vshll.u32 %v753, 16
    %v823 = vrot.slane %v821, 1
    %v824 = vor.u32 %v819, %v823
    %v826 = vshll.u32 %v705, 16
    %v828 = vrot.slane %v826, 1
    %v829 = vsel %vm127, %v824, %v828
    %v830 = vshrl.u32 %v703, 16
    %v832 = vor.u32 %v830, %v804
    %v834 = vshll.u32 %v754, 16
    %v836 = vrot.slane %v834, 1
    %v837 = vsel %vm127, %v832, %v836
    %v838 = vshrl.u32 %v704, 16
    %v840 = vor.u32 %v838, %v816
    %v842 = vshll.u32 %v755, 16
    %v844 = vrot.slane %v842, 1
    %v845 = vsel %vm127, %v840, %v844
    %v846 = vshrl.u32 %v705, 16
    %v848 = vor.u32 %v846, %v828
    %v850 = vshll.u32 %v756, 16
    %v852 = vrot.slane %v850, 1
    %v853 = vsel %vm127, %v848, %v852
    %v854 = vshrl.u32 %v754, 16
    %v856 = vor.u32 %v854, %v836
    %v857 = vshrl.u32 %v755, 16
    %v859 = vor.u32 %v857, %v844
    %v860 = vshrl.u32 %v756, 16
    %v862 = vor.u32 %v860, %v852
    %v905 = vunpack.c.l.b16 %v758
    %v906 = vunpack.c.h.b16 %v758
    %v907 = vunpack.c.l.b16 %v759
    %v908 = vunpack.c.h.b16 %v759
    %v909 = vunpack.c.l.b16 %v760
    %v910 = vunpack.c.h.b16 %v760
    %v911 = vunpack.c.l.b16 %v761
    %v912 = vunpack.c.h.b16 %v761
    %v913 = vunpack.c.l.b16 %v762
    %v914 = vunpack.c.h.b16 %v762
    %v915 = vunpack.c.l.b16 %v763
    %v916 = vunpack.c.h.b16 %v763
    %v917 = vunpack.c.l.b16 %v764
    %v918 = vunpack.c.h.b16 %v764
    %v919 = vunpack.c.l.b16 %v765
    %v920 = vunpack.c.h.b16 %v765
    %v921 = vunpack.c.l.b16 %v766
    %v922 = vunpack.c.h.b16 %v766
    %v923 = vunpack.c.l.b16 %v767
    %v924 = vunpack.c.h.b16 %v767
    %v925 = vunpack.c.l.b16 %v768
    %v926 = vunpack.c.h.b16 %v768
    %v927 = vunpack.c.l.b16 %v769
    %v928 = vunpack.c.h.b16 %v769
    %v929 = vunpack.c.l.b16 %v770
    %v930 = vunpack.c.h.b16 %v770
    %v931 = vunpack.c.l.b16 %v771
    %v932 = vunpack.c.h.b16 %v771
    %v933 = vunpack.c.l.b16 %v772
    %v934 = vunpack.c.h.b16 %v772
    %v935 = vunpack.c.l.b16 %v773
    %v936 = vunpack.c.h.b16 %v773
    %v937 = vunpack.c.l.b16 %v774
    %v938 = vunpack.c.h.b16 %v774
    %v939 = vunpack.c.l.b16 %v775
    %v940 = vunpack.c.h.b16 %v775
    %v941 = vunpack.c.l.b16 %v776
    %v942 = vunpack.c.h.b16 %v776
    %v943 = vunpack.c.l.b16 %v777
    %v944 = vunpack.c.h.b16 %v777
    %v945 = vunpack.c.l.b16 %v778
    %v946 = vunpack.c.h.b16 %v778
    %v947 = vunpack.c.l.b16 %v779
    %v948 = vunpack.c.h.b16 %v779
    %v949 = vunpack.c.l.b16 %v780
    %v950 = vunpack.c.h.b16 %v780
    %v951 = vunpack.c.l.b16 %v781
    %v952 = vunpack.c.h.b16 %v781
    %v953 = vunpack.c.l.b16 %v782
    %v954 = vunpack.c.h.b16 %v782
    %v955 = vunpack.c.l.b16 %v783
    %v956 = vunpack.c.h.b16 %v783
    %v957 = vunpack.c.l.b16 %v784
    %v958 = vunpack.c.h.b16 %v784
    %v959 = vunpack.c.l.b16 %v785
    %v960 = vunpack.c.h.b16 %v785
    %v961 = vunpack.c.l.b16 %v786
    %v962 = vunpack.c.h.b16 %v786
    %v963 = vunpack.c.l.b16 %v787
    %v964 = vunpack.c.h.b16 %v787
    %v965 = vunpack.c.l.b16 %v788
    %v966 = vunpack.c.h.b16 %v788
    %v967 = vunpack.c.l.b16 %v789
    %v968 = vunpack.c.h.b16 %v789
    %v969 = vunpack.c.l.b16 %v790
    %v970 = vunpack.c.h.b16 %v790
    %v971 = vunpack.c.l.b16 %v791
    %v972 = vunpack.c.h.b16 %v791
    %v973 = vunpack.c.l.b16 %v792
    %v974 = vunpack.c.h.b16 %v792
    %v975 = vunpack.c.l.b16 %v793
    %v976 = vunpack.c.h.b16 %v793
    %v977 = vpack.c.b16 %v907, %v905
    %v978 = vpack.c.b16 %v908, %v906
    %v979 = vpack.c.b16 %v911, %v909
    %v980 = vpack.c.b16 %v912, %v910
    %v981 = vpack.c.b16 %v915, %v913
    %v982 = vpack.c.b16 %v916, %v914
    %v983 = vpack.c.b16 %v919, %v917
    %v984 = vpack.c.b16 %v920, %v918
    %v985 = vpack.c.b16 %v923, %v921
    %v986 = vpack.c.b16 %v924, %v922
    %v987 = vpack.c.b16 %v927, %v925
    %v988 = vpack.c.b16 %v928, %v926
    %v989 = vpack.c.b16 %v931, %v929
    %v990 = vpack.c.b16 %v932, %v930
    %v991 = vpack.c.b16 %v935, %v933
    %v992 = vpack.c.b16 %v936, %v934
    %v993 = vpack.c.b16 %v939, %v937
    %v994 = vpack.c.b16 %v940, %v938
    %v995 = vpack.c.b16 %v943, %v941
    %v996 = vpack.c.b16 %v944, %v942
    %v997 = vpack.c.b16 %v947, %v945
    %v998 = vpack.c.b16 %v948, %v946
    %v999 = vpack.c.b16 %v951, %v949
    %v1000 = vpack.c.b16 %v952, %v950
    %v1001 = vpack.c.b16 %v955, %v953
    %v1002 = vpack.c.b16 %v956, %v954
    %v1003 = vpack.c.b16 %v959, %v957
    %v1004 = vpack.c.b16 %v960, %v958
    %v1005 = vpack.c.b16 %v963, %v961
    %v1006 = vpack.c.b16 %v964, %v962
    %v1007 = vpack.c.b16 %v967, %v965
    %v1008 = vpack.c.b16 %v968, %v966
    %v1009 = vpack.c.b16 %v971, %v969
    %v1010 = vpack.c.b16 %v972, %v970
    %v1011 = vpack.c.b16 %v975, %v973
    %v1012 = vpack.c.b16 %v976, %v974
    %v1050 = vsel %vm69, %v829, 0
    %v1053 = vsel %vm69, %v853, 0
    %v1056 = vsel %vm69, %v862, 0
    %1058 = vmatprep.subr.bf16.mxu0 %v978
    %1059 = vmatpush1.bf16.msra.mxu0 %v977
    %1060 = vmatprep.subr.bf16.mxu0 %v980
    %1061 = vmatpush1.bf16.msra.mxu0 %v979
    %1062 = vmatprep.subr.bf16.mxu0 %v982
    %1063 = vmatpush1.bf16.msra.mxu0 %v981
    %1064 = vmatprep.subr.bf16.mxu0 %v984
    %1065 = vmatpush1.bf16.msra.mxu0 %v983
    %1066 = vmatprep.subr.bf16.mxu0 %v986
    %1067 = vmatpush1.bf16.msra.mxu0 %v985
    %1068 = vmatprep.subr.bf16.mxu0 %v988
    %1069 = vmatpush1.bf16.msra.mxu0 %v987
    %1070 = vmatprep.subr.bf16.mxu0 %v990
    %1071 = vmatpush1.bf16.msra.mxu0 %v989
    %1072 = vmatprep.subr.bf16.mxu0 %v992
    %1073 = vmatpush1.bf16.msra.mxu0 %v991
    %1074 = vmatprep.subr.bf16.mxu0 %v994
    %1075 = vmatpush1.bf16.msra.mxu0 %v993
    %1076 = vmatprep.subr.bf16.mxu0 %v996
    %1077 = vmatpush1.bf16.msra.mxu0 %v995
    %1078 = vmatprep.subr.bf16.mxu0 %v998
    %1079 = vmatpush1.bf16.msra.mxu0 %v997
    %1080 = vmatprep.subr.bf16.mxu0 %v1000
    %1081 = vmatpush1.bf16.msra.mxu0 %v999
    %1082 = vmatprep.subr.bf16.mxu0 %v1002
    %1083 = vmatpush1.bf16.msra.mxu0 %v1001
    %1084 = vmatprep.subr.bf16.mxu0 %v1004
    %1085 = vmatpush1.bf16.msra.mxu0 %v1003
    %1086 = vmatprep.subr.bf16.mxu0 %v1006
    %1087 = vmatpush1.bf16.msra.mxu0 %v1005
    %1088 = vmatprep.subr.bf16.mxu0 %v1008
    %1089 = vmatpush1.bf16.msra.mxu0 %v1007
    %1090 = vmatprep.mubr.bf16.mxu0 %v817
    %1091 = vmatmul.mubr.bf16.gmra.mrb[0].mxu0 %v805
    %v1092 = vpop.f32.mrb[0].mxu0
    %v1093 = vadd.f32 0.0, %v1092
    %v1094 = vpop.f32.mrb[0].mxu0
    %v1095 = vadd.f32 0.0, %v1094
    %v1096 = vpop.f32.mrb[0].mxu0
    %v1097 = vadd.f32 0.0, %v1096
    %v1098 = vpop.f32.mrb[0].mxu0
    %v1099 = vadd.f32 0.0, %v1098
    %1100 = vmatprep.mubr.bf16.mxu0 %v845
    %1101 = vmatmul.mubr.bf16.gmra.mrb[0].mxu0 %v837
    %v1102 = vpop.f32.mrb[0].mxu0
    %v1103 = vadd.f32 0.0, %v1102
    %v1104 = vpop.f32.mrb[0].mxu0
    %v1105 = vadd.f32 0.0, %v1104
    %v1106 = vpop.f32.mrb[0].mxu0
    %v1107 = vadd.f32 0.0, %v1106
    %v1108 = vpop.f32.mrb[0].mxu0
    %v1109 = vadd.f32 0.0, %v1108
    %1110 = vmatprep.mubr.bf16.mxu0 %v859
    %1111 = vmatmul.mubr.bf16.gmra.mrb[0].mxu0 %v856
    %v1112 = vpop.f32.mrb[0].mxu0
    %v1113 = vadd.f32 0.0, %v1112
    %v1114 = vpop.f32.mrb[0].mxu0
    %v1115 = vadd.f32 0.0, %v1114
    %v1116 = vpop.f32.mrb[0].mxu0
    %v1117 = vpop.f32.mrb[0].mxu0
    %1118 = vdwg.mxu0
    %1119 = vmatprep.subr.bf16.mxu0 %v1010
    %1120 = vmatpush1.bf16.msra.mxu0 %v1009
    %1121 = vmatprep.subr.bf16.mxu0 %v1012
    %1122 = vmatpush1.bf16.msra.mxu0 %v1011
    %1123 = vmatprep.subr.bf16.mxu0 0
    %1124 = vmatpush1.bf16.msra.mxu0 0
    %1125 = vmatprep.subr.bf16.mxu0 0
    %1126 = vmatpush1.bf16.msra.mxu0 0
    %1127 = vmatprep.subr.bf16.mxu0 0
    %1128 = vmatpush1.bf16.msra.mxu0 0
    %1129 = vmatprep.subr.bf16.mxu0 0
    %1130 = vmatpush1.bf16.msra.mxu0 0
    %1131 = vmatprep.subr.bf16.mxu0 0
    %1132 = vmatpush1.bf16.msra.mxu0 0
    %1133 = vmatprep.subr.bf16.mxu0 0
    %1134 = vmatpush1.bf16.msra.mxu0 0
    %1135 = vmatprep.subr.bf16.mxu0 0
    %1136 = vmatpush1.bf16.msra.mxu0 0
    %1137 = vmatprep.subr.bf16.mxu0 0
    %1138 = vmatpush1.bf16.msra.mxu0 0
    %1139 = vmatprep.subr.bf16.mxu0 0
    %1140 = vmatpush1.bf16.msra.mxu0 0
    %1141 = vmatprep.subr.bf16.mxu0 0
    %1142 = vmatpush1.bf16.msra.mxu0 0
    %1143 = vmatprep.subr.bf16.mxu0 0
    %1144 = vmatpush1.bf16.msra.mxu0 0
    %1145 = vmatprep.subr.bf16.mxu0 0
    %1146 = vmatpush1.bf16.msra.mxu0 0
    %1147 = vmatprep.subr.bf16.mxu0 0
    %1148 = vmatpush1.bf16.msra.mxu0 0
    %1149 = vmatprep.subr.bf16.mxu0 0
    %1150 = vmatpush1.bf16.msra.mxu0 0
    %1151 = vmatprep.mubr.bf16.mxu0 0
    %1152 = vmatmul.mubr.bf16.gmra.mrb[0].mxu0 %v1050
    %v1153 = vpop.f32.mrb[0].mxu0
    %v1154 = vadd.f32 %v1093, %v1153
    %v1155 = vpop.f32.mrb[0].mxu0
    %v1156 = vadd.f32 %v1095, %v1155
    %v1157 = vpop.f32.mrb[0].mxu0
    %v1158 = vadd.f32 %v1097, %v1157
    %v1159 = vpop.f32.mrb[0].mxu0
    %v1160 = vadd.f32 %v1099, %v1159
    %1161 = vmatprep.mubr.bf16.mxu0 0
    %1162 = vmatmul.mubr.bf16.gmra.mrb[0].mxu0 %v1053
    %v1163 = vpop.f32.mrb[0].mxu0
    %v1164 = vadd.f32 %v1103, %v1163
    %v1165 = vpop.f32.mrb[0].mxu0
    %v1166 = vadd.f32 %v1105, %v1165
    %v1167 = vpop.f32.mrb[0].mxu0
    %v1168 = vadd.f32 %v1107, %v1167
    %v1169 = vpop.f32.mrb[0].mxu0
    %v1170 = vadd.f32 %v1109, %v1169
    %1171 = vmatprep.mubr.bf16.mxu0 0
    %1172 = vmatmul.mubr.bf16.gmra.mrb[0].mxu0 %v1056
    %v1173 = vpop.f32.mrb[0].mxu0
    %v1174 = vadd.f32 %v1113, %v1173
    %v1175 = vpop.f32.mrb[0].mxu0
    %v1176 = vadd.f32 %v1115, %v1175
    %v1177 = vpop.f32.mrb[0].mxu0
    %v1178 = vpop.f32.mrb[0].mxu0
    %1179 = vdwg.mxu0
    %v1216 = vunpack.c.l.b16 %v709
    %v1217 = vunpack.c.h.b16 %v709
    %v1218 = vunpack.c.l.b16 %v710
    %v1219 = vunpack.c.h.b16 %v710
    %v1220 = vunpack.c.l.b16 %v711
    %v1221 = vunpack.c.h.b16 %v711
    %v1222 = vunpack.c.l.b16 %v712
    %v1223 = vunpack.c.h.b16 %v712
    %v1224 = vunpack.c.l.b16 %v713
    %v1225 = vunpack.c.h.b16 %v713
    %v1226 = vunpack.c.l.b16 %v714
    %v1227 = vunpack.c.h.b16 %v714
    %v1228 = vunpack.c.l.b16 %v715
    %v1229 = vunpack.c.h.b16 %v715
    %v1230 = vunpack.c.l.b16 %v716
    %v1231 = vunpack.c.h.b16 %v716
    %v1232 = vunpack.c.l.b16 %v717
    %v1233 = vunpack.c.h.b16 %v717
    %v1234 = vunpack.c.l.b16 %v718
    %v1235 = vunpack.c.h.b16 %v718
    %v1236 = vunpack.c.l.b16 %v719
    %v1237 = vunpack.c.h.b16 %v719
    %v1238 = vunpack.c.l.b16 %v720
    %v1239 = vunpack.c.h.b16 %v720
    %v1240 = vunpack.c.l.b16 %v721
    %v1241 = vunpack.c.h.b16 %v721
    %v1242 = vunpack.c.l.b16 %v722
    %v1243 = vunpack.c.h.b16 %v722
    %v1244 = vunpack.c.l.b16 %v723
    %v1245 = vunpack.c.h.b16 %v723
    %v1246 = vunpack.c.l.b16 %v724
    %v1247 = vunpack.c.h.b16 %v724
    %v1248 = vunpack.c.l.b16 %v725
    %v1249 = vunpack.c.h.b16 %v725
    %v1250 = vunpack.c.l.b16 %v726
    %v1251 = vunpack.c.h.b16 %v726
    %v1252 = vunpack.c.l.b16 %v727
    %v1253 = vunpack.c.h.b16 %v727
    %v1254 = vunpack.c.l.b16 %v728
    %v1255 = vunpack.c.h.b16 %v728
    %v1256 = vunpack.c.l.b16 %v729
    %v1257 = vunpack.c.h.b16 %v729
    %v1258 = vunpack.c.l.b16 %v730
    %v1259 = vunpack.c.h.b16 %v730
    %v1260 = vunpack.c.l.b16 %v731
    %v1261 = vunpack.c.h.b16 %v731
    %v1262 = vunpack.c.l.b16 %v732
    %v1263 = vunpack.c.h.b16 %v732
    %v1264 = vunpack.c.l.b16 %v733
    %v1265 = vunpack.c.h.b16 %v733
    %v1266 = vunpack.c.l.b16 %v734
    %v1267 = vunpack.c.h.b16 %v734
    %v1268 = vunpack.c.l.b16 %v735
    %v1269 = vunpack.c.h.b16 %v735
    %v1270 = vunpack.c.l.b16 %v736
    %v1271 = vunpack.c.h.b16 %v736
    %v1272 = vunpack.c.l.b16 %v737
    %v1273 = vunpack.c.h.b16 %v737
    %v1274 = vunpack.c.l.b16 %v738
    %v1275 = vunpack.c.h.b16 %v738
    %v1276 = vunpack.c.l.b16 %v739
    %v1277 = vunpack.c.h.b16 %v739
    %v1278 = vunpack.c.l.b16 %v740
    %v1279 = vunpack.c.h.b16 %v740
    %v1280 = vunpack.c.l.b16 %v741
    %v1281 = vunpack.c.h.b16 %v741
    %v1282 = vunpack.c.l.b16 %v742
    %v1283 = vunpack.c.h.b16 %v742
    %v1284 = vunpack.c.l.b16 %v743
    %v1285 = vunpack.c.h.b16 %v743
    %v1286 = vunpack.c.l.b16 %v744
    %v1287 = vunpack.c.h.b16 %v744
    %v1288 = vpack.c.b16 %v1218, %v1216
    %v1289 = vpack.c.b16 %v1219, %v1217
    %v1290 = vpack.c.b16 %v1222, %v1220
    %v1291 = vpack.c.b16 %v1223, %v1221
    %v1292 = vpack.c.b16 %v1226, %v1224
    %v1293 = vpack.c.b16 %v1227, %v1225
    %v1294 = vpack.c.b16 %v1230, %v1228
    %v1295 = vpack.c.b16 %v1231, %v1229
    %v1296 = vpack.c.b16 %v1234, %v1232
    %v1297 = vpack.c.b16 %v1235, %v1233
    %v1298 = vpack.c.b16 %v1238, %v1236
    %v1299 = vpack.c.b16 %v1239, %v1237
    %v1300 = vpack.c.b16 %v1242, %v1240
    %v1301 = vpack.c.b16 %v1243, %v1241
    %v1302 = vpack.c.b16 %v1246, %v1244
    %v1303 = vpack.c.b16 %v1247, %v1245
    %v1304 = vpack.c.b16 %v1250, %v1248
    %v1305 = vpack.c.b16 %v1251, %v1249
    %v1306 = vpack.c.b16 %v1254, %v1252
    %v1307 = vpack.c.b16 %v1255, %v1253
    %v1308 = vpack.c.b16 %v1258, %v1256
    %v1309 = vpack.c.b16 %v1259, %v1257
    %v1310 = vpack.c.b16 %v1262, %v1260
    %v1311 = vpack.c.b16 %v1263, %v1261
    %v1312 = vpack.c.b16 %v1266, %v1264
    %v1313 = vpack.c.b16 %v1267, %v1265
    %v1314 = vpack.c.b16 %v1270, %v1268
    %v1315 = vpack.c.b16 %v1271, %v1269
    %v1316 = vpack.c.b16 %v1274, %v1272
    %v1317 = vpack.c.b16 %v1275, %v1273
    %v1318 = vpack.c.b16 %v1278, %v1276
    %v1319 = vpack.c.b16 %v1279, %v1277
    %v1320 = vpack.c.b16 %v1282, %v1280
    %v1321 = vpack.c.b16 %v1283, %v1281
    %v1322 = vpack.c.b16 %v1286, %v1284
    %v1323 = vpack.c.b16 %v1287, %v1285
    %v1361 = vsel %vm69, %v702, 0
    %v1363 = vsel %vm69, %v705, 0
    %v1366 = vsel %vm69, %v708, 0
    %1368 = vmatprep.subr.bf16.mxu0 %v1289
    %1369 = vmatpush1.bf16.msra.mxu0 %v1288
    %1370 = vmatprep.subr.bf16.mxu0 %v1291
    %1371 = vmatpush1.bf16.msra.mxu0 %v1290
    %1372 = vmatprep.subr.bf16.mxu0 %v1293
    %1373 = vmatpush1.bf16.msra.mxu0 %v1292
    %1374 = vmatprep.subr.bf16.mxu0 %v1295
    %1375 = vmatpush1.bf16.msra.mxu0 %v1294
    %1376 = vmatprep.subr.bf16.mxu0 %v1297
    %1377 = vmatpush1.bf16.msra.mxu0 %v1296
    %1378 = vmatprep.subr.bf16.mxu0 %v1299
    %1379 = vmatpush1.bf16.msra.mxu0 %v1298
    %1380 = vmatprep.subr.bf16.mxu0 %v1301
    %1381 = vmatpush1.bf16.msra.mxu0 %v1300
    %1382 = vmatprep.subr.bf16.mxu0 %v1303
    %1383 = vmatpush1.bf16.msra.mxu0 %v1302
    %1384 = vmatprep.subr.bf16.mxu0 %v1305
    %1385 = vmatpush1.bf16.msra.mxu0 %v1304
    %1386 = vmatprep.subr.bf16.mxu0 %v1307
    %1387 = vmatpush1.bf16.msra.mxu0 %v1306
    %1388 = vmatprep.subr.bf16.mxu0 %v1309
    %1389 = vmatpush1.bf16.msra.mxu0 %v1308
    %1390 = vmatprep.subr.bf16.mxu0 %v1311
    %1391 = vmatpush1.bf16.msra.mxu0 %v1310
    %1392 = vmatprep.subr.bf16.mxu0 %v1313
    %1393 = vmatpush1.bf16.msra.mxu0 %v1312
    %1394 = vmatprep.subr.bf16.mxu0 %v1315
    %1395 = vmatpush1.bf16.msra.mxu0 %v1314
    %1396 = vmatprep.subr.bf16.mxu0 %v1317
    %1397 = vmatpush1.bf16.msra.mxu0 %v1316
    %1398 = vmatprep.subr.bf16.mxu0 %v1319
    %1399 = vmatpush1.bf16.msra.mxu0 %v1318
    %1400 = vmatprep.mubr.bf16.mxu0 %v701
    %1401 = vmatmul.mubr.bf16.gmra.mrb[0].mxu0 %v700
    %v1402 = vpop.f32.mrb[0].mxu0
    %v1403 = vadd.f32 %v1154, %v1402
    %v1404 = vpop.f32.mrb[0].mxu0
    %v1405 = vadd.f32 %v1156, %v1404
    %v1406 = vpop.f32.mrb[0].mxu0
    %v1407 = vadd.f32 %v1158, %v1406
    %v1408 = vpop.f32.mrb[0].mxu0
    %v1409 = vadd.f32 %v1160, %v1408
    %1410 = vmatprep.mubr.bf16.mxu0 %v704
    %1411 = vmatmul.mubr.bf16.gmra.mrb[0].mxu0 %v703
    %v1412 = vpop.f32.mrb[0].mxu0
    %v1413 = vadd.f32 %v1164, %v1412
    %v1414 = vpop.f32.mrb[0].mxu0
    %v1415 = vadd.f32 %v1166, %v1414
    %v1416 = vpop.f32.mrb[0].mxu0
    %v1417 = vadd.f32 %v1168, %v1416
    %v1418 = vpop.f32.mrb[0].mxu0
    %v1419 = vadd.f32 %v1170, %v1418
    %1420 = vmatprep.mubr.bf16.mxu0 %v707
    %1421 = vmatmul.mubr.bf16.gmra.mrb[0].mxu0 %v706
    %v1422 = vpop.f32.mrb[0].mxu0
    %v1423 = vadd.f32 %v1174, %v1422
    %v1424 = vpop.f32.mrb[0].mxu0
    %v1425 = vadd.f32 %v1176, %v1424
    %v1426 = vpop.f32.mrb[0].mxu0
    %v1427 = vpop.f32.mrb[0].mxu0
    %1428 = vdwg.mxu0
    %1429 = vmatprep.subr.bf16.mxu0 %v1321
    %1430 = vmatpush1.bf16.msra.mxu0 %v1320
    %1431 = vmatprep.subr.bf16.mxu0 %v1323
    %1432 = vmatpush1.bf16.msra.mxu0 %v1322
    %1433 = vmatprep.subr.bf16.mxu0 0
    %1434 = vmatpush1.bf16.msra.mxu0 0
    %1435 = vmatprep.subr.bf16.mxu0 0
    %1436 = vmatpush1.bf16.msra.mxu0 0
    %1437 = vmatprep.subr.bf16.mxu0 0
    %1438 = vmatpush1.bf16.msra.mxu0 0
    %1439 = vmatprep.subr.bf16.mxu0 0
    %1440 = vmatpush1.bf16.msra.mxu0 0
    %1441 = vmatprep.subr.bf16.mxu0 0
    %1442 = vmatpush1.bf16.msra.mxu0 0
    %1443 = vmatprep.subr.bf16.mxu0 0
    %1444 = vmatpush1.bf16.msra.mxu0 0
    %1445 = vmatprep.subr.bf16.mxu0 0
    %1446 = vmatpush1.bf16.msra.mxu0 0
    %1447 = vmatprep.subr.bf16.mxu0 0
    %1448 = vmatpush1.bf16.msra.mxu0 0
    %1449 = vmatprep.subr.bf16.mxu0 0
    %1450 = vmatpush1.bf16.msra.mxu0 0
    %1451 = vmatprep.subr.bf16.mxu0 0
    %1452 = vmatpush1.bf16.msra.mxu0 0
    %1453 = vmatprep.subr.bf16.mxu0 0
    %1454 = vmatpush1.bf16.msra.mxu0 0
    %1455 = vmatprep.subr.bf16.mxu0 0
    %1456 = vmatpush1.bf16.msra.mxu0 0
    %1457 = vmatprep.subr.bf16.mxu0 0
    %1458 = vmatpush1.bf16.msra.mxu0 0
    %1459 = vmatprep.subr.bf16.mxu0 0
    %1460 = vmatpush1.bf16.msra.mxu0 0
    %1461 = vmatprep.mubr.bf16.mxu0 0
    %1462 = vmatmul.mubr.bf16.gmra.mrb[0].mxu0 %v1361
    %v1463 = vpop.f32.mrb[0].mxu0
    %v1464 = vadd.f32 %v1403, %v1463
    %v1465 = vpop.f32.mrb[0].mxu0
    %v1466 = vadd.f32 %v1405, %v1465
    %v1467 = vpop.f32.mrb[0].mxu0
    %v1468 = vadd.f32 %v1407, %v1467
    %v1469 = vpop.f32.mrb[0].mxu0
    %v1470 = vadd.f32 %v1409, %v1469
    %1471 = vmatprep.mubr.bf16.mxu0 0
    %1472 = vmatmul.mubr.bf16.gmra.mrb[0].mxu0 %v1363
    %v1473 = vpop.f32.mrb[0].mxu0
    %v1474 = vadd.f32 %v1413, %v1473
    %v1475 = vpop.f32.mrb[0].mxu0
    %v1476 = vadd.f32 %v1415, %v1475
    %v1477 = vpop.f32.mrb[0].mxu0
    %v1478 = vadd.f32 %v1417, %v1477
    %v1479 = vpop.f32.mrb[0].mxu0
    %v1480 = vadd.f32 %v1419, %v1479
    %1481 = vmatprep.mubr.bf16.mxu0 0
    %1482 = vmatmul.mubr.bf16.gmra.mrb[0].mxu0 %v1366
    %v1483 = vpop.f32.mrb[0].mxu0
    %v1484 = vadd.f32 %v1423, %v1483
    %v1485 = vpop.f32.mrb[0].mxu0
    %v1486 = vadd.f32 %v1425, %v1485
    %v1487 = vpop.f32.mrb[0].mxu0
    %v1488 = vpop.f32.mrb[0].mxu0
    %1489 = vdwg.mxu0
    %v1490 = vld [vmem:[#allocation2] sm:$0xfc]
    %v1491 = vld [vmem:[#allocation2 + $0x8] sm:$0xfc]
    %v1492 = vld [vmem:[#allocation2 + $0x10] sm:$0xfc]
    %v1493 = vld [vmem:[#allocation2 + $0x60] sm:$0xf]
    %v1494 = vld [vmem:[#allocation2 + $0x68] sm:$0xf]
    %v1495 = vld [vmem:[#allocation2 + $0x70] sm:$0xf]
    %v1496 = vpack.c.bf16 %v688, %v1490
    %v1497 = vpack.c.bf16 %v689, %v1491
    %v1498 = vpack.c.bf16 %v690, %v1492
    %v1499 = vpack.c.bf16 %v1493, %v1493
    %v1500 = vpack.c.bf16 %v1494, %v1494
    %v1501 = vpack.c.bf16 %v1495, %v1495
    %s1502 = scalar_lea.vmem [#allocation3], 576
    %v1503 = vld [vmem:[%s1502] sm:$0xff]
    %v1504 = vld [vmem:[%s1502 + $0x8] sm:$0xff]
    %v1505 = vld [vmem:[%s1502 + $0x10] sm:$0xff]
    %v1506 = vld [vmem:[%s1502 + $0x18] sm:$0xff]
    %v1507 = vld [vmem:[%s1502 + $0x20] sm:$0xff]
    %v1508 = vld [vmem:[%s1502 + $0x28] sm:$0xff]
    %v1509 = vld [vmem:[%s1502 + $0x30] sm:$0xff]
    %v1510 = vld [vmem:[%s1502 + $0x38] sm:$0xff]
    %v1511 = vld [vmem:[%s1502 + $0x40] sm:$0xff]
    %v1512 = vld [vmem:[%s1502 + $0x48] sm:$0xff]
    %v1513 = vld [vmem:[%s1502 + $0x50] sm:$0xff]
    %v1514 = vld [vmem:[%s1502 + $0x58] sm:$0xff]
    %v1515 = vld [vmem:[%s1502 + $0x60] sm:$0xff]
    %v1516 = vld [vmem:[%s1502 + $0x68] sm:$0xff]
    %v1517 = vld [vmem:[%s1502 + $0x70] sm:$0xff]
    %v1518 = vld [vmem:[%s1502 + $0x78] sm:$0xff]
    %v1519 = vld [vmem:[%s1502 + $0x80] sm:$0xff]
    %v1520 = vld [vmem:[%s1502 + $0x88] sm:$0xff]
    %v1521 = vld [vmem:[%s1502 + $0x90] sm:$0xff]
    %v1522 = vld [vmem:[%s1502 + $0x98] sm:$0xff]
    %v1523 = vld [vmem:[%s1502 + $0xa0] sm:$0xff]
    %v1524 = vld [vmem:[%s1502 + $0xa8] sm:$0xff]
    %v1525 = vld [vmem:[%s1502 + $0xb0] sm:$0xff]
    %v1526 = vld [vmem:[%s1502 + $0xb8] sm:$0xff]
    %v1527 = vld [vmem:[%s1502 + $0xc0] sm:$0xff]
    %v1528 = vld [vmem:[%s1502 + $0xc8] sm:$0xff]
    %v1529 = vld [vmem:[%s1502 + $0xd0] sm:$0xff]
    %v1530 = vld [vmem:[%s1502 + $0xd8] sm:$0xff]
    %v1531 = vld [vmem:[%s1502 + $0xe0] sm:$0xff]
    %v1532 = vld [vmem:[%s1502 + $0xe8] sm:$0xff]
    %v1533 = vld [vmem:[%s1502 + $0xf0] sm:$0xff]
    %v1534 = vld [vmem:[%s1502 + $0xf8] sm:$0xff]
    %v1535 = vld [vmem:[%s1502 + $0x100] sm:$0xff]
    %v1536 = vld [vmem:[%s1502 + $0x108] sm:$0xff]
    %v1537 = vld [vmem:[%s1502 + $0x110] sm:$0xff]
    %v1538 = vld [vmem:[%s1502 + $0x118] sm:$0xff]
    %v1548 = vrot.slane %v1496, 1
    %v1549 = vrot.slane %v703, 1
    %v1550 = vsel %vm410, %v1548, %v1549
    %v1551 = vrot.slane %v1497, 1
    %v1552 = vrot.slane %v704, 1
    %v1553 = vsel %vm410, %v1551, %v1552
    %v1554 = vrot.slane %v1498, 1
    %v1555 = vrot.slane %v705, 1
    %v1556 = vsel %vm410, %v1554, %v1555
    %v1557 = vrot.slane %v1499, 1
    %v1558 = vsel %vm410, %v1549, %v1557
    %v1559 = vrot.slane %v1500, 1
    %v1560 = vsel %vm410, %v1552, %v1559
    %v1561 = vrot.slane %v1501, 1
    %v1562 = vsel %vm410, %v1555, %v1561
    %v1605 = vunpack.c.l.b16 %v1503
    %v1606 = vunpack.c.h.b16 %v1503
    %v1607 = vunpack.c.l.b16 %v1504
    %v1608 = vunpack.c.h.b16 %v1504
    %v1609 = vunpack.c.l.b16 %v1505
    %v1610 = vunpack.c.h.b16 %v1505
    %v1611 = vunpack.c.l.b16 %v1506
    %v1612 = vunpack.c.h.b16 %v1506
    %v1613 = vunpack.c.l.b16 %v1507
    %v1614 = vunpack.c.h.b16 %v1507
    %v1615 = vunpack.c.l.b16 %v1508
    %v1616 = vunpack.c.h.b16 %v1508
    %v1617 = vunpack.c.l.b16 %v1509
    %v1618 = vunpack.c.h.b16 %v1509
    %v1619 = vunpack.c.l.b16 %v1510
    %v1620 = vunpack.c.h.b16 %v1510
    %v1621 = vunpack.c.l.b16 %v1511
    %v1622 = vunpack.c.h.b16 %v1511
    %v1623 = vunpack.c.l.b16 %v1512
    %v1624 = vunpack.c.h.b16 %v1512
    %v1625 = vunpack.c.l.b16 %v1513
    %v1626 = vunpack.c.h.b16 %v1513
    %v1627 = vunpack.c.l.b16 %v1514
    %v1628 = vunpack.c.h.b16 %v1514
    %v1629 = vunpack.c.l.b16 %v1515
    %v1630 = vunpack.c.h.b16 %v1515
    %v1631 = vunpack.c.l.b16 %v1516
    %v1632 = vunpack.c.h.b16 %v1516
    %v1633 = vunpack.c.l.b16 %v1517
    %v1634 = vunpack.c.h.b16 %v1517
    %v1635 = vunpack.c.l.b16 %v1518
    %v1636 = vunpack.c.h.b16 %v1518
    %v1637 = vunpack.c.l.b16 %v1519
    %v1638 = vunpack.c.h.b16 %v1519
    %v1639 = vunpack.c.l.b16 %v1520
    %v1640 = vunpack.c.h.b16 %v1520
    %v1641 = vunpack.c.l.b16 %v1521
    %v1642 = vunpack.c.h.b16 %v1521
    %v1643 = vunpack.c.l.b16 %v1522
    %v1644 = vunpack.c.h.b16 %v1522
    %v1645 = vunpack.c.l.b16 %v1523
    %v1646 = vunpack.c.h.b16 %v1523
    %v1647 = vunpack.c.l.b16 %v1524
    %v1648 = vunpack.c.h.b16 %v1524
    %v1649 = vunpack.c.l.b16 %v1525
    %v1650 = vunpack.c.h.b16 %v1525
    %v1651 = vunpack.c.l.b16 %v1526
    %v1652 = vunpack.c.h.b16 %v1526
    %v1653 = vunpack.c.l.b16 %v1527
    %v1654 = vunpack.c.h.b16 %v1527
    %v1655 = vunpack.c.l.b16 %v1528
    %v1656 = vunpack.c.h.b16 %v1528
    %v1657 = vunpack.c.l.b16 %v1529
    %v1658 = vunpack.c.h.b16 %v1529
    %v1659 = vunpack.c.l.b16 %v1530
    %v1660 = vunpack.c.h.b16 %v1530
    %v1661 = vunpack.c.l.b16 %v1531
    %v1662 = vunpack.c.h.b16 %v1531
    %v1663 = vunpack.c.l.b16 %v1532
    %v1664 = vunpack.c.h.b16 %v1532
    %v1665 = vunpack.c.l.b16 %v1533
    %v1666 = vunpack.c.h.b16 %v1533
    %v1667 = vunpack.c.l.b16 %v1534
    %v1668 = vunpack.c.h.b16 %v1534
    %v1669 = vunpack.c.l.b16 %v1535
    %v1670 = vunpack.c.h.b16 %v1535
    %v1671 = vunpack.c.l.b16 %v1536
    %v1672 = vunpack.c.h.b16 %v1536
    %v1673 = vunpack.c.l.b16 %v1537
    %v1674 = vunpack.c.h.b16 %v1537
    %v1675 = vunpack.c.l.b16 %v1538
    %v1676 = vunpack.c.h.b16 %v1538
    %v1677 = vpack.c.b16 %v1607, %v1605
    %v1678 = vpack.c.b16 %v1608, %v1606
    %v1679 = vpack.c.b16 %v1611, %v1609
    %v1680 = vpack.c.b16 %v1612, %v1610
    %v1681 = vpack.c.b16 %v1615, %v1613
    %v1682 = vpack.c.b16 %v1616, %v1614
    %v1683 = vpack.c.b16 %v1619, %v1617
    %v1684 = vpack.c.b16 %v1620, %v1618
    %v1685 = vpack.c.b16 %v1623, %v1621
    %v1686 = vpack.c.b16 %v1624, %v1622
    %v1687 = vpack.c.b16 %v1627, %v1625
    %v1688 = vpack.c.b16 %v1628, %v1626
    %v1689 = vpack.c.b16 %v1631, %v1629
    %v1690 = vpack.c.b16 %v1632, %v1630
    %v1691 = vpack.c.b16 %v1635, %v1633
    %v1692 = vpack.c.b16 %v1636, %v1634
    %v1693 = vpack.c.b16 %v1639, %v1637
    %v1694 = vpack.c.b16 %v1640, %v1638
    %v1695 = vpack.c.b16 %v1643, %v1641
    %v1696 = vpack.c.b16 %v1644, %v1642
    %v1697 = vpack.c.b16 %v1647, %v1645
    %v1698 = vpack.c.b16 %v1648, %v1646
    %v1699 = vpack.c.b16 %v1651, %v1649
    %v1700 = vpack.c.b16 %v1652, %v1650
    %v1701 = vpack.c.b16 %v1655, %v1653
    %v1702 = vpack.c.b16 %v1656, %v1654
    %v1703 = vpack.c.b16 %v1659, %v1657
    %v1704 = vpack.c.b16 %v1660, %v1658
    %v1705 = vpack.c.b16 %v1663, %v1661
    %v1706 = vpack.c.b16 %v1664, %v1662
    %v1707 = vpack.c.b16 %v1667, %v1665
    %v1708 = vpack.c.b16 %v1668, %v1666
    %v1709 = vpack.c.b16 %v1671, %v1669
    %v1710 = vpack.c.b16 %v1672, %v1670
    %v1711 = vpack.c.b16 %v1675, %v1673
    %v1712 = vpack.c.b16 %v1676, %v1674
    %v1750 = vsel %vm69, %v1556, 0
    %v1753 = vsel %vm69, %v1562, 0
    %v1756 = vsel %vm69, %v1561, 0
    %1758 = vmatprep.subr.bf16.mxu0 %v1678
    %1759 = vmatpush1.bf16.msra.mxu0 %v1677
    %1760 = vmatprep.subr.bf16.mxu0 %v1680
    %1761 = vmatpush1.bf16.msra.mxu0 %v1679
    %1762 = vmatprep.subr.bf16.mxu0 %v1682
    %1763 = vmatpush1.bf16.msra.mxu0 %v1681
    %1764 = vmatprep.subr.bf16.mxu0 %v1684
    %1765 = vmatpush1.bf16.msra.mxu0 %v1683
    %1766 = vmatprep.subr.bf16.mxu0 %v1686
    %1767 = vmatpush1.bf16.msra.mxu0 %v1685
    %1768 = vmatprep.subr.bf16.mxu0 %v1688
    %1769 = vmatpush1.bf16.msra.mxu0 %v1687
    %1770 = vmatprep.subr.bf16.mxu0 %v1690
    %1771 = vmatpush1.bf16.msra.mxu0 %v1689
    %1772 = vmatprep.subr.bf16.mxu0 %v1692
    %1773 = vmatpush1.bf16.msra.mxu0 %v1691
    %1774 = vmatprep.subr.bf16.mxu0 %v1694
    %1775 = vmatpush1.bf16.msra.mxu0 %v1693
    %1776 = vmatprep.subr.bf16.mxu0 %v1696
    %1777 = vmatpush1.bf16.msra.mxu0 %v1695
    %1778 = vmatprep.subr.bf16.mxu0 %v1698
    %1779 = vmatpush1.bf16.msra.mxu0 %v1697
    %1780 = vmatprep.subr.bf16.mxu0 %v1700
    %1781 = vmatpush1.bf16.msra.mxu0 %v1699
    %1782 = vmatprep.subr.bf16.mxu0 %v1702
    %1783 = vmatpush1.bf16.msra.mxu0 %v1701
    %1784 = vmatprep.subr.bf16.mxu0 %v1704
    %1785 = vmatpush1.bf16.msra.mxu0 %v1703
    %1786 = vmatprep.subr.bf16.mxu0 %v1706
    %1787 = vmatpush1.bf16.msra.mxu0 %v1705
    %1788 = vmatprep.subr.bf16.mxu0 %v1708
    %1789 = vmatpush1.bf16.msra.mxu0 %v1707
    %1790 = vmatprep.mubr.bf16.mxu0 %v1553
    %1791 = vmatmul.mubr.bf16.gmra.mrb[0].mxu0 %v1550
    %v1792 = vpop.f32.mrb[0].mxu0
    %v1793 = vadd.f32 0.0, %v1792
    %v1794 = vpop.f32.mrb[0].mxu0
    %v1795 = vadd.f32 0.0, %v1794
    %v1796 = vpop.f32.mrb[0].mxu0
    %v1797 = vadd.f32 0.0, %v1796
    %v1798 = vpop.f32.mrb[0].mxu0
    %v1799 = vadd.f32 0.0, %v1798
    %1800 = vmatprep.mubr.bf16.mxu0 %v1560
    %1801 = vmatmul.mubr.bf16.gmra.mrb[0].mxu0 %v1558
    %v1802 = vpop.f32.mrb[0].mxu0
    %v1803 = vadd.f32 0.0, %v1802
    %v1804 = vpop.f32.mrb[0].mxu0
    %v1805 = vadd.f32 0.0, %v1804
    %v1806 = vpop.f32.mrb[0].mxu0
    %v1807 = vadd.f32 0.0, %v1806
    %v1808 = vpop.f32.mrb[0].mxu0
    %v1809 = vadd.f32 0.0, %v1808
    %1810 = vmatprep.mubr.bf16.mxu0 %v1559
    %1811 = vmatmul.mubr.bf16.gmra.mrb[0].mxu0 %v1557
    %v1812 = vpop.f32.mrb[0].mxu0
    %v1813 = vadd.f32 0.0, %v1812
    %v1814 = vpop.f32.mrb[0].mxu0
    %v1815 = vadd.f32 0.0, %v1814
    %v1816 = vpop.f32.mrb[0].mxu0
    %v1817 = vpop.f32.mrb[0].mxu0
    %1818 = vdwg.mxu0
    %1819 = vmatprep.subr.bf16.mxu0 %v1710
    %1820 = vmatpush1.bf16.msra.mxu0 %v1709
    %1821 = vmatprep.subr.bf16.mxu0 %v1712
    %1822 = vmatpush1.bf16.msra.mxu0 %v1711
    %1823 = vmatprep.subr.bf16.mxu0 0
    %1824 = vmatpush1.bf16.msra.mxu0 0
    %1825 = vmatprep.subr.bf16.mxu0 0
    %1826 = vmatpush1.bf16.msra.mxu0 0
    %1827 = vmatprep.subr.bf16.mxu0 0
    %1828 = vmatpush1.bf16.msra.mxu0 0
    %1829 = vmatprep.subr.bf16.mxu0 0
    %1830 = vmatpush1.bf16.msra.mxu0 0
    %1831 = vmatprep.subr.bf16.mxu0 0
    %1832 = vmatpush1.bf16.msra.mxu0 0
    %1833 = vmatprep.subr.bf16.mxu0 0
    %1834 = vmatpush1.bf16.msra.mxu0 0
    %1835 = vmatprep.subr.bf16.mxu0 0
    %1836 = vmatpush1.bf16.msra.mxu0 0
    %1837 = vmatprep.subr.bf16.mxu0 0
    %1838 = vmatpush1.bf16.msra.mxu0 0
    %1839 = vmatprep.subr.bf16.mxu0 0
    %1840 = vmatpush1.bf16.msra.mxu0 0
    %1841 = vmatprep.subr.bf16.mxu0 0
    %1842 = vmatpush1.bf16.msra.mxu0 0
    %1843 = vmatprep.subr.bf16.mxu0 0
    %1844 = vmatpush1.bf16.msra.mxu0 0
    %1845 = vmatprep.subr.bf16.mxu0 0
    %1846 = vmatpush1.bf16.msra.mxu0 0
    %1847 = vmatprep.subr.bf16.mxu0 0
    %1848 = vmatpush1.bf16.msra.mxu0 0
    %1849 = vmatprep.subr.bf16.mxu0 0
    %1850 = vmatpush1.bf16.msra.mxu0 0
    %1851 = vmatprep.mubr.bf16.mxu0 0
    %1852 = vmatmul.mubr.bf16.gmra.mrb[0].mxu0 %v1750
    %v1853 = vpop.f32.mrb[0].mxu0
    %v1854 = vadd.f32 %v1793, %v1853
    %v1855 = vpop.f32.mrb[0].mxu0
    %v1856 = vadd.f32 %v1795, %v1855
    %v1857 = vpop.f32.mrb[0].mxu0
    %v1858 = vadd.f32 %v1797, %v1857
    %v1859 = vpop.f32.mrb[0].mxu0
    %v1860 = vadd.f32 %v1799, %v1859
    %1861 = vmatprep.mubr.bf16.mxu0 0
    %1862 = vmatmul.mubr.bf16.gmra.mrb[0].mxu0 %v1753
    %v1863 = vpop.f32.mrb[0].mxu0
    %v1864 = vadd.f32 %v1803, %v1863
    %v1865 = vpop.f32.mrb[0].mxu0
    %v1866 = vadd.f32 %v1805, %v1865
    %v1867 = vpop.f32.mrb[0].mxu0
    %v1868 = vadd.f32 %v1807, %v1867
    %v1869 = vpop.f32.mrb[0].mxu0
    %v1870 = vadd.f32 %v1809, %v1869
    %1871 = vmatprep.mubr.bf16.mxu0 0
    %1872 = vmatmul.mubr.bf16.gmra.mrb[0].mxu0 %v1756
    %v1873 = vpop.f32.mrb[0].mxu0
    %v1874 = vadd.f32 %v1813, %v1873
    %v1875 = vpop.f32.mrb[0].mxu0
    %v1876 = vadd.f32 %v1815, %v1875
    %v1877 = vpop.f32.mrb[0].mxu0
    %v1878 = vpop.f32.mrb[0].mxu0
    %1879 = vdwg.mxu0
    %v1880 = vadd.f32 %v1464, %v1854
    %v1881 = vadd.f32 %v1466, %v1856
    %v1882 = vadd.f32 %v1468, %v1858
    %v1883 = vadd.f32 %v1470, %v1860
    %v1884 = vadd.f32 %v1474, %v1864
    %v1885 = vadd.f32 %v1476, %v1866
    %v1886 = vadd.f32 %v1478, %v1868
    %v1887 = vadd.f32 %v1480, %v1870
    %v1888 = vadd.f32 %v1484, %v1874
    %v1889 = vadd.f32 %v1486, %v1876
    %s1890 = scalar_lea.vmem %s4, 2
    %v1891 = vld [vmem:[%s1890] sm:$0x3]
    %v1893 = vlaneseq
    %v1894 = vshrl.u32 %v1893, 7
    %v1895 = vsub.s32 0, %v1894
    %v1896 = vrot.slane %v1891, %v1895
    %v1897 = vlaneseq
    %v1898 = vshrl.u32 %v1897, 7
    %v1899 = vsub.s32 1, %v1898
    %v1900 = vrot.slane %v1891, %v1899
    %v1903 = vmul.f32 %v1880, %v1896
    %v1904 = vmul.f32 %v1881, %v1900
    %v1905 = vmul.f32 %v1882, %v1896
    %v1906 = vmul.f32 %v1883, %v1900
    %v1907 = vmul.f32 %v1884, %v1896
    %v1908 = vmul.f32 %v1885, %v1900
    %v1909 = vmul.f32 %v1886, %v1896
    %v1910 = vmul.f32 %v1887, %v1900
    %v1911 = vmul.f32 %v1888, %v1896
    %v1912 = vmul.f32 %v1889, %v1900
    %s1913 = scalar_lea.vmem %s5, 2
    %v1914 = vld [vmem:[%s1913] sm:$0x3]
    %v1916 = vlaneseq
    %v1917 = vshrl.u32 %v1916, 7
    %v1918 = vsub.s32 0, %v1917
    %v1919 = vrot.slane %v1914, %v1918
    %v1920 = vlaneseq
    %v1921 = vshrl.u32 %v1920, 7
    %v1922 = vsub.s32 1, %v1921
    %v1923 = vrot.slane %v1914, %v1922
    %v1926 = vadd.f32 %v1903, %v1919
    %v1927 = vadd.f32 %v1904, %v1923
    %v1928 = vadd.f32 %v1905, %v1919
    %v1929 = vadd.f32 %v1906, %v1923
    %v1930 = vadd.f32 %v1907, %v1919
    %v1931 = vadd.f32 %v1908, %v1923
    %v1932 = vadd.f32 %v1909, %v1919
    %v1933 = vadd.f32 %v1910, %v1923
    %v1934 = vadd.f32 %v1911, %v1919
    %v1935 = vadd.f32 %v1912, %v1923
    %v1936 = vmax.f32 %v1926, 0.0
    %v1937 = vmax.f32 %v1927, 0.0
    %v1938 = vmax.f32 %v1928, 0.0
    %v1939 = vmax.f32 %v1929, 0.0
    %v1940 = vmax.f32 %v1930, 0.0
    %v1941 = vmax.f32 %v1931, 0.0
    %v1942 = vmax.f32 %v1932, 0.0
    %v1943 = vmax.f32 %v1933, 0.0
    %v1944 = vmax.f32 %v1934, 0.0
    %v1945 = vmax.f32 %v1935, 0.0
    %v1946 = vmul.f32 %v1936, %v604
    %v1947 = vmul.f32 %v1937, %v604
    %v1948 = vmul.f32 %v1938, %v609
    %v1949 = vmul.f32 %v1939, %v609
    %v1950 = vmul.f32 %v1940, %v614
    %v1951 = vmul.f32 %v1941, %v614
    %v1952 = vmul.f32 %v1942, %v619
    %v1953 = vmul.f32 %v1943, %v619
    %v1954 = vmul.f32 %v1944, %v624
    %v1955 = vmul.f32 %v1945, %v624
    %v1966 = vrot.slane %v1946, 7
    %v1967 = vrot.slane %v1947, 7
    %v1968 = vrot.slane %v1948, 7
    %v1969 = vsel %vm646, %v1966, %v1968
    %v1970 = vrot.slane %v1949, 7
    %v1971 = vsel %vm646, %v1967, %v1970
    %v1972 = vrot.slane %v1950, 7
    %v1973 = vsel %vm646, %v1968, %v1972
    %v1974 = vrot.slane %v1951, 7
    %v1975 = vsel %vm646, %v1970, %v1974
    %v1976 = vrot.slane %v1952, 7
    %v1977 = vsel %vm646, %v1972, %v1976
    %v1978 = vrot.slane %v1953, 7
    %v1979 = vsel %vm646, %v1974, %v1978
    %v1980 = vrot.slane %v1954, 7
    %v1981 = vsel %vm646, %v1976, %v1980
    %v1982 = vrot.slane %v1955, 7
    %v1983 = vsel %vm646, %v1978, %v1982
    %1994 = vst [vmem:[#allocation2] sm:$0xfe] %v1966
    %1995 = vst [vmem:[#allocation2 + $0x8] sm:$0xfe] %v1967
    %1996 = vst [vmem:[#allocation2 + $0x18] sm:$0xff] %v1969
    %1997 = vst [vmem:[#allocation2 + $0x20] sm:$0xff] %v1971
    %1998 = vst [vmem:[#allocation2 + $0x30] sm:$0xff] %v1973
    %1999 = vst [vmem:[#allocation2 + $0x38] sm:$0xff] %v1975
    %2000 = vst [vmem:[#allocation2 + $0x48] sm:$0xff] %v1977
    %2001 = vst [vmem:[#allocation2 + $0x50] sm:$0xff] %v1979
    %2002 = vst [vmem:[#allocation2 + $0x60] sm:$0x7] %v1981
    %2003 = vst [vmem:[#allocation2 + $0x68] sm:$0x7] %v1983
    %v2004 = vld [vmem:[#allocation2] sm:$0xff]
    %v2005 = vld [vmem:[#allocation2 + $0x8] sm:$0xff]
    %v2006 = vld [vmem:[#allocation2 + $0x10] sm:$0xff]
    %v2007 = vld [vmem:[#allocation2 + $0x18] sm:$0xff]
    %v2008 = vld [vmem:[#allocation2 + $0x20] sm:$0xff]
    %v2009 = vld [vmem:[#allocation2 + $0x28] sm:$0xff]
    %v2010 = vld [vmem:[#allocation2 + $0x30] sm:$0xff]
    %v2011 = vld [vmem:[#allocation2 + $0x38] sm:$0xff]
    %v2012 = vld [vmem:[#allocation2 + $0x40] sm:$0xff]
    %v2013 = vld [vmem:[#allocation2 + $0x48] sm:$0xff]
    %v2014 = vld [vmem:[#allocation2 + $0x50] sm:$0xff]
    %v2015 = vld [vmem:[#allocation2 + $0x58] sm:$0xff]
    %v2016 = vld [vmem:[#allocation2 + $0x60] sm:$0x3]
    %v2017 = vld [vmem:[#allocation2 + $0x68] sm:$0x3]
    %v2018 = vld [vmem:[#allocation2 + $0x70] sm:$0x3]
    %v2019 = vpack.c.bf16 %v2007, %v2004
    %v2020 = vpack.c.bf16 %v2008, %v2005
    %v2021 = vpack.c.bf16 %v2009, %v2006
    %v2022 = vpack.c.bf16 %v2013, %v2010
    %v2023 = vpack.c.bf16 %v2014, %v2011
    %v2024 = vpack.c.bf16 %v2015, %v2012
    %v2025 = vpack.c.bf16 %v2016, %v2016
    %v2026 = vpack.c.bf16 %v2017, %v2017
    %v2027 = vpack.c.bf16 %v2018, %v2018
    %v2028 = vld [vmem:[#allocation5] sm:$0xff]
    %v2029 = vld [vmem:[#allocation5 + $0x8] sm:$0xff]
    %v2030 = vld [vmem:[#allocation5 + $0x10] sm:$0xff]
    %v2031 = vld [vmem:[#allocation5 + $0x18] sm:$0xff]
    %v2032 = vld [vmem:[#allocation5 + $0x20] sm:$0xff]
    %v2033 = vld [vmem:[#allocation5 + $0x28] sm:$0xff]
    %v2034 = vld [vmem:[#allocation5 + $0x30] sm:$0xff]
    %v2035 = vld [vmem:[#allocation5 + $0x38] sm:$0xff]
    %v2036 = vld [vmem:[#allocation5 + $0x40] sm:$0xff]
    %v2037 = vld [vmem:[#allocation5 + $0x48] sm:$0xff]
    %v2038 = vld [vmem:[#allocation5 + $0x50] sm:$0xff]
    %v2039 = vld [vmem:[#allocation5 + $0x58] sm:$0xff]
    %v2040 = vld [vmem:[#allocation5 + $0x60] sm:$0xff]
    %v2041 = vld [vmem:[#allocation5 + $0x68] sm:$0xff]
    %v2042 = vld [vmem:[#allocation5 + $0x70] sm:$0xff]
    %v2043 = vld [vmem:[#allocation5 + $0x78] sm:$0xff]
    %v2044 = vld [vmem:[#allocation5 + $0x80] sm:$0xff]
    %v2045 = vld [vmem:[#allocation5 + $0x88] sm:$0xff]
    %v2046 = vld [vmem:[#allocation5 + $0x90] sm:$0xff]
    %v2047 = vld [vmem:[#allocation5 + $0x98] sm:$0xff]
    %v2048 = vld [vmem:[#allocation5 + $0xa0] sm:$0xff]
    %v2049 = vld [vmem:[#allocation5 + $0xa8] sm:$0xff]
    %v2050 = vld [vmem:[#allocation5 + $0xb0] sm:$0xff]
    %v2051 = vld [vmem:[#allocation5 + $0xb8] sm:$0xff]
    %v2052 = vld [vmem:[#allocation5 + $0xc0] sm:$0xff]
    %v2053 = vld [vmem:[#allocation5 + $0xc8] sm:$0xff]
    %v2054 = vld [vmem:[#allocation5 + $0xd0] sm:$0xff]
    %v2055 = vld [vmem:[#allocation5 + $0xd8] sm:$0xff]
    %v2056 = vld [vmem:[#allocation5 + $0xe0] sm:$0xff]
    %v2057 = vld [vmem:[#allocation5 + $0xe8] sm:$0xff]
    %v2058 = vld [vmem:[#allocation5 + $0xf0] sm:$0xff]
    %v2059 = vld [vmem:[#allocation5 + $0xf8] sm:$0xff]
    %v2060 = vld [vmem:[#allocation5 + $0x100] sm:$0xff]
    %v2061 = vld [vmem:[#allocation5 + $0x108] sm:$0xff]
    %v2062 = vld [vmem:[#allocation5 + $0x110] sm:$0xff]
    %v2063 = vld [vmem:[#allocation5 + $0x118] sm:$0xff]
    %v2064 = vld [vmem:[#allocation2] sm:$0xfe]
    %v2065 = vld [vmem:[#allocation2 + $0x8] sm:$0xfe]
    %v2066 = vld [vmem:[#allocation2 + $0x10] sm:$0xfe]
    %v2067 = vld [vmem:[#allocation2 + $0x60] sm:$0x7]
    %v2068 = vld [vmem:[#allocation2 + $0x68] sm:$0x7]
    %v2069 = vld [vmem:[#allocation2 + $0x70] sm:$0x7]
    %v2070 = vpack.c.bf16 %v2007, %v2064
    %v2071 = vpack.c.bf16 %v2008, %v2065
    %v2072 = vpack.c.bf16 %v2009, %v2066
    %v2073 = vpack.c.bf16 %v2067, %v2067
    %v2074 = vpack.c.bf16 %v2068, %v2068
    %v2075 = vpack.c.bf16 %v2069, %v2069
    %s2076 = scalar_lea.vmem [#allocation5], 288
    %v2077 = vld [vmem:[%s2076] sm:$0xff]
    %v2078 = vld [vmem:[%s2076 + $0x8] sm:$0xff]
    %v2079 = vld [vmem:[%s2076 + $0x10] sm:$0xff]
    %v2080 = vld [vmem:[%s2076 + $0x18] sm:$0xff]
    %v2081 = vld [vmem:[%s2076 + $0x20] sm:$0xff]
    %v2082 = vld [vmem:[%s2076 + $0x28] sm:$0xff]
    %v2083 = vld [vmem:[%s2076 + $0x30] sm:$0xff]
    %v2084 = vld [vmem:[%s2076 + $0x38] sm:$0xff]
    %v2085 = vld [vmem:[%s2076 + $0x40] sm:$0xff]
    %v2086 = vld [vmem:[%s2076 + $0x48] sm:$0xff]
    %v2087 = vld [vmem:[%s2076 + $0x50] sm:$0xff]
    %v2088 = vld [vmem:[%s2076 + $0x58] sm:$0xff]
    %v2089 = vld [vmem:[%s2076 + $0x60] sm:$0xff]
    %v2090 = vld [vmem:[%s2076 + $0x68] sm:$0xff]
    %v2091 = vld [vmem:[%s2076 + $0x70] sm:$0xff]
    %v2092 = vld [vmem:[%s2076 + $0x78] sm:$0xff]
    %v2093 = vld [vmem:[%s2076 + $0x80] sm:$0xff]
    %v2094 = vld [vmem:[%s2076 + $0x88] sm:$0xff]
    %v2095 = vld [vmem:[%s2076 + $0x90] sm:$0xff]
    %v2096 = vld [vmem:[%s2076 + $0x98] sm:$0xff]
    %v2097 = vld [vmem:[%s2076 + $0xa0] sm:$0xff]
    %v2098 = vld [vmem:[%s2076 + $0xa8] sm:$0xff]
    %v2099 = vld [vmem:[%s2076 + $0xb0] sm:$0xff]
    %v2100 = vld [vmem:[%s2076 + $0xb8] sm:$0xff]
    %v2101 = vld [vmem:[%s2076 + $0xc0] sm:$0xff]
    %v2102 = vld [vmem:[%s2076 + $0xc8] sm:$0xff]
    %v2103 = vld [vmem:[%s2076 + $0xd0] sm:$0xff]
    %v2104 = vld [vmem:[%s2076 + $0xd8] sm:$0xff]
    %v2105 = vld [vmem:[%s2076 + $0xe0] sm:$0xff]
    %v2106 = vld [vmem:[%s2076 + $0xe8] sm:$0xff]
    %v2107 = vld [vmem:[%s2076 + $0xf0] sm:$0xff]
    %v2108 = vld [vmem:[%s2076 + $0xf8] sm:$0xff]
    %v2109 = vld [vmem:[%s2076 + $0x100] sm:$0xff]
    %v2110 = vld [vmem:[%s2076 + $0x108] sm:$0xff]
    %v2111 = vld [vmem:[%s2076 + $0x110] sm:$0xff]
    %v2112 = vld [vmem:[%s2076 + $0x118] sm:$0xff]
    %v2114 = vshrl.u32 %v2070, 16
    %v2116 = vshll.u32 %v2070, 16
    %v2118 = vrot.slane %v2116, 1
    %v2119 = vor.u32 %v2114, %v2118
    %v2121 = vshll.u32 %v2022, 16
    %v2123 = vrot.slane %v2121, 1
    %v2124 = vsel %vm127, %v2119, %v2123
    %v2126 = vshrl.u32 %v2071, 16
    %v2128 = vshll.u32 %v2071, 16
    %v2130 = vrot.slane %v2128, 1
    %v2131 = vor.u32 %v2126, %v2130
    %v2133 = vshll.u32 %v2023, 16
    %v2135 = vrot.slane %v2133, 1
    %v2136 = vsel %vm127, %v2131, %v2135
    %v2138 = vshrl.u32 %v2072, 16
    %v2140 = vshll.u32 %v2072, 16
    %v2142 = vrot.slane %v2140, 1
    %v2143 = vor.u32 %v2138, %v2142
    %v2145 = vshll.u32 %v2024, 16
    %v2147 = vrot.slane %v2145, 1
    %v2148 = vsel %vm127, %v2143, %v2147
    %v2149 = vshrl.u32 %v2022, 16
    %v2151 = vor.u32 %v2149, %v2123
    %v2153 = vshll.u32 %v2073, 16
    %v2155 = vrot.slane %v2153, 1
    %v2156 = vsel %vm127, %v2151, %v2155
    %v2157 = vshrl.u32 %v2023, 16
    %v2159 = vor.u32 %v2157, %v2135
    %v2161 = vshll.u32 %v2074, 16
    %v2163 = vrot.slane %v2161, 1
    %v2164 = vsel %vm127, %v2159, %v2163
    %v2165 = vshrl.u32 %v2024, 16
    %v2167 = vor.u32 %v2165, %v2147
    %v2169 = vshll.u32 %v2075, 16
    %v2171 = vrot.slane %v2169, 1
    %v2172 = vsel %vm127, %v2167, %v2171
    %v2173 = vshrl.u32 %v2073, 16
    %v2175 = vor.u32 %v2173, %v2155
    %v2176 = vshrl.u32 %v2074, 16
    %v2178 = vor.u32 %v2176, %v2163
    %v2179 = vshrl.u32 %v2075, 16
    %v2181 = vor.u32 %v2179, %v2171
    %v2224 = vunpack.c.l.b16 %v2077
    %v2225 = vunpack.c.h.b16 %v2077
    %v2226 = vunpack.c.l.b16 %v2078
    %v2227 = vunpack.c.h.b16 %v2078
    %v2228 = vunpack.c.l.b16 %v2079
    %v2229 = vunpack.c.h.b16 %v2079
    %v2230 = vunpack.c.l.b16 %v2080
    %v2231 = vunpack.c.h.b16 %v2080
    %v2232 = vunpack.c.l.b16 %v2081
    %v2233 = vunpack.c.h.b16 %v2081
    %v2234 = vunpack.c.l.b16 %v2082
    %v2235 = vunpack.c.h.b16 %v2082
    %v2236 = vunpack.c.l.b16 %v2083
    %v2237 = vunpack.c.h.b16 %v2083
    %v2238 = vunpack.c.l.b16 %v2084
    %v2239 = vunpack.c.h.b16 %v2084
    %v2240 = vunpack.c.l.b16 %v2085
    %v2241 = vunpack.c.h.b16 %v2085
    %v2242 = vunpack.c.l.b16 %v2086
    %v2243 = vunpack.c.h.b16 %v2086
    %v2244 = vunpack.c.l.b16 %v2087
    %v2245 = vunpack.c.h.b16 %v2087
    %v2246 = vunpack.c.l.b16 %v2088
    %v2247 = vunpack.c.h.b16 %v2088
    %v2248 = vunpack.c.l.b16 %v2089
    %v2249 = vunpack.c.h.b16 %v2089
    %v2250 = vunpack.c.l.b16 %v2090
    %v2251 = vunpack.c.h.b16 %v2090
    %v2252 = vunpack.c.l.b16 %v2091
    %v2253 = vunpack.c.h.b16 %v2091
    %v2254 = vunpack.c.l.b16 %v2092
    %v2255 = vunpack.c.h.b16 %v2092
    %v2256 = vunpack.c.l.b16 %v2093
    %v2257 = vunpack.c.h.b16 %v2093
    %v2258 = vunpack.c.l.b16 %v2094
    %v2259 = vunpack.c.h.b16 %v2094
    %v2260 = vunpack.c.l.b16 %v2095
    %v2261 = vunpack.c.h.b16 %v2095
    %v2262 = vunpack.c.l.b16 %v2096
    %v2263 = vunpack.c.h.b16 %v2096
    %v2264 = vunpack.c.l.b16 %v2097
    %v2265 = vunpack.c.h.b16 %v2097
    %v2266 = vunpack.c.l.b16 %v2098
    %v2267 = vunpack.c.h.b16 %v2098
    %v2268 = vunpack.c.l.b16 %v2099
    %v2269 = vunpack.c.h.b16 %v2099
    %v2270 = vunpack.c.l.b16 %v2100
    %v2271 = vunpack.c.h.b16 %v2100
    %v2272 = vunpack.c.l.b16 %v2101
    %v2273 = vunpack.c.h.b16 %v2101
    %v2274 = vunpack.c.l.b16 %v2102
    %v2275 = vunpack.c.h.b16 %v2102
    %v2276 = vunpack.c.l.b16 %v2103
    %v2277 = vunpack.c.h.b16 %v2103
    %v2278 = vunpack.c.l.b16 %v2104
    %v2279 = vunpack.c.h.b16 %v2104
    %v2280 = vunpack.c.l.b16 %v2105
    %v2281 = vunpack.c.h.b16 %v2105
    %v2282 = vunpack.c.l.b16 %v2106
    %v2283 = vunpack.c.h.b16 %v2106
    %v2284 = vunpack.c.l.b16 %v2107
    %v2285 = vunpack.c.h.b16 %v2107
    %v2286 = vunpack.c.l.b16 %v2108
    %v2287 = vunpack.c.h.b16 %v2108
    %v2288 = vunpack.c.l.b16 %v2109
    %v2289 = vunpack.c.h.b16 %v2109
    %v2290 = vunpack.c.l.b16 %v2110
    %v2291 = vunpack.c.h.b16 %v2110
    %v2292 = vunpack.c.l.b16 %v2111
    %v2293 = vunpack.c.h.b16 %v2111
    %v2294 = vunpack.c.l.b16 %v2112
    %v2295 = vunpack.c.h.b16 %v2112
    %v2296 = vpack.c.b16 %v2226, %v2224
    %v2297 = vpack.c.b16 %v2227, %v2225
    %v2298 = vpack.c.b16 %v2230, %v2228
    %v2299 = vpack.c.b16 %v2231, %v2229
    %v2300 = vpack.c.b16 %v2234, %v2232
    %v2301 = vpack.c.b16 %v2235, %v2233
    %v2302 = vpack.c.b16 %v2238, %v2236
    %v2303 = vpack.c.b16 %v2239, %v2237
    %v2304 = vpack.c.b16 %v2242, %v2240
    %v2305 = vpack.c.b16 %v2243, %v2241
    %v2306 = vpack.c.b16 %v2246, %v2244
    %v2307 = vpack.c.b16 %v2247, %v2245
    %v2308 = vpack.c.b16 %v2250, %v2248
    %v2309 = vpack.c.b16 %v2251, %v2249
    %v2310 = vpack.c.b16 %v2254, %v2252
    %v2311 = vpack.c.b16 %v2255, %v2253
    %v2312 = vpack.c.b16 %v2258, %v2256
    %v2313 = vpack.c.b16 %v2259, %v2257
    %v2314 = vpack.c.b16 %v2262, %v2260
    %v2315 = vpack.c.b16 %v2263, %v2261
    %v2316 = vpack.c.b16 %v2266, %v2264
    %v2317 = vpack.c.b16 %v2267, %v2265
    %v2318 = vpack.c.b16 %v2270, %v2268
    %v2319 = vpack.c.b16 %v2271, %v2269
    %v2320 = vpack.c.b16 %v2274, %v2272
    %v2321 = vpack.c.b16 %v2275, %v2273
    %v2322 = vpack.c.b16 %v2278, %v2276
    %v2323 = vpack.c.b16 %v2279, %v2277
    %v2324 = vpack.c.b16 %v2282, %v2280
    %v2325 = vpack.c.b16 %v2283, %v2281
    %v2326 = vpack.c.b16 %v2286, %v2284
    %v2327 = vpack.c.b16 %v2287, %v2285
    %v2328 = vpack.c.b16 %v2290, %v2288
    %v2329 = vpack.c.b16 %v2291, %v2289
    %v2330 = vpack.c.b16 %v2294, %v2292
    %v2331 = vpack.c.b16 %v2295, %v2293
    %v2369 = vsel %vm69, %v2148, 0
    %v2372 = vsel %vm69, %v2172, 0
    %v2375 = vsel %vm69, %v2181, 0
    %2377 = vmatprep.subr.bf16.mxu0 %v2297
    %2378 = vmatpush1.bf16.msra.mxu0 %v2296
    %2379 = vmatprep.subr.bf16.mxu0 %v2299
    %2380 = vmatpush1.bf16.msra.mxu0 %v2298
    %2381 = vmatprep.subr.bf16.mxu0 %v2301
    %2382 = vmatpush1.bf16.msra.mxu0 %v2300
    %2383 = vmatprep.subr.bf16.mxu0 %v2303
    %2384 = vmatpush1.bf16.msra.mxu0 %v2302
    %2385 = vmatprep.subr.bf16.mxu0 %v2305
    %2386 = vmatpush1.bf16.msra.mxu0 %v2304
    %2387 = vmatprep.subr.bf16.mxu0 %v2307
    %2388 = vmatpush1.bf16.msra.mxu0 %v2306
    %2389 = vmatprep.subr.bf16.mxu0 %v2309
    %2390 = vmatpush1.bf16.msra.mxu0 %v2308
    %2391 = vmatprep.subr.bf16.mxu0 %v2311
    %2392 = vmatpush1.bf16.msra.mxu0 %v2310
    %2393 = vmatprep.subr.bf16.mxu0 %v2313
    %2394 = vmatpush1.bf16.msra.mxu0 %v2312
    %2395 = vmatprep.subr.bf16.mxu0 %v2315
    %2396 = vmatpush1.bf16.msra.mxu0 %v2314
    %2397 = vmatprep.subr.bf16.mxu0 %v2317
    %2398 = vmatpush1.bf16.msra.mxu0 %v2316
    %2399 = vmatprep.subr.bf16.mxu0 %v2319
    %2400 = vmatpush1.bf16.msra.mxu0 %v2318
    %2401 = vmatprep.subr.bf16.mxu0 %v2321
    %2402 = vmatpush1.bf16.msra.mxu0 %v2320
    %2403 = vmatprep.subr.bf16.mxu0 %v2323
    %2404 = vmatpush1.bf16.msra.mxu0 %v2322
    %2405 = vmatprep.subr.bf16.mxu0 %v2325
    %2406 = vmatpush1.bf16.msra.mxu0 %v2324
    %2407 = vmatprep.subr.bf16.mxu0 %v2327
    %2408 = vmatpush1.bf16.msra.mxu0 %v2326
    %2409 = vmatprep.mubr.bf16.mxu0 %v2136
    %2410 = vmatmul.mubr.bf16.gmra.mrb[0].mxu0 %v2124
    %v2411 = vpop.f32.mrb[0].mxu0
    %v2412 = vadd.f32 0.0, %v2411
    %v2413 = vpop.f32.mrb[0].mxu0
    %v2414 = vadd.f32 0.0, %v2413
    %v2415 = vpop.f32.mrb[0].mxu0
    %v2416 = vadd.f32 0.0, %v2415
    %v2417 = vpop.f32.mrb[0].mxu0
    %v2418 = vadd.f32 0.0, %v2417
    %2419 = vmatprep.mubr.bf16.mxu0 %v2164
    %2420 = vmatmul.mubr.bf16.gmra.mrb[0].mxu0 %v2156
    %v2421 = vpop.f32.mrb[0].mxu0
    %v2422 = vadd.f32 0.0, %v2421
    %v2423 = vpop.f32.mrb[0].mxu0
    %v2424 = vadd.f32 0.0, %v2423
    %v2425 = vpop.f32.mrb[0].mxu0
    %v2426 = vadd.f32 0.0, %v2425
    %v2427 = vpop.f32.mrb[0].mxu0
    %v2428 = vadd.f32 0.0, %v2427
    %2429 = vmatprep.mubr.bf16.mxu0 %v2178
    %2430 = vmatmul.mubr.bf16.gmra.mrb[0].mxu0 %v2175
    %v2431 = vpop.f32.mrb[0].mxu0
    %v2432 = vadd.f32 0.0, %v2431
    %v2433 = vpop.f32.mrb[0].mxu0
    %v2434 = vadd.f32 0.0, %v2433
    %v2435 = vpop.f32.mrb[0].mxu0
    %v2436 = vpop.f32.mrb[0].mxu0
    %2437 = vdwg.mxu0
    %2438 = vmatprep.subr.bf16.mxu0 %v2329
    %2439 = vmatpush1.bf16.msra.mxu0 %v2328
    %2440 = vmatprep.subr.bf16.mxu0 %v2331
    %2441 = vmatpush1.bf16.msra.mxu0 %v2330
    %2442 = vmatprep.subr.bf16.mxu0 0
    %2443 = vmatpush1.bf16.msra.mxu0 0
    %2444 = vmatprep.subr.bf16.mxu0 0
    %2445 = vmatpush1.bf16.msra.mxu0 0
    %2446 = vmatprep.subr.bf16.mxu0 0
    %2447 = vmatpush1.bf16.msra.mxu0 0
    %2448 = vmatprep.subr.bf16.mxu0 0
    %2449 = vmatpush1.bf16.msra.mxu0 0
    %2450 = vmatprep.subr.bf16.mxu0 0
    %2451 = vmatpush1.bf16.msra.mxu0 0
    %2452 = vmatprep.subr.bf16.mxu0 0
    %2453 = vmatpush1.bf16.msra.mxu0 0
    %2454 = vmatprep.subr.bf16.mxu0 0
    %2455 = vmatpush1.bf16.msra.mxu0 0
    %2456 = vmatprep.subr.bf16.mxu0 0
    %2457 = vmatpush1.bf16.msra.mxu0 0
    %2458 = vmatprep.subr.bf16.mxu0 0
    %2459 = vmatpush1.bf16.msra.mxu0 0
    %2460 = vmatprep.subr.bf16.mxu0 0
    %2461 = vmatpush1.bf16.msra.mxu0 0
    %2462 = vmatprep.subr.bf16.mxu0 0
    %2463 = vmatpush1.bf16.msra.mxu0 0
    %2464 = vmatprep.subr.bf16.mxu0 0
    %2465 = vmatpush1.bf16.msra.mxu0 0
    %2466 = vmatprep.subr.bf16.mxu0 0
    %2467 = vmatpush1.bf16.msra.mxu0 0
    %2468 = vmatprep.subr.bf16.mxu0 0
    %2469 = vmatpush1.bf16.msra.mxu0 0
    %2470 = vmatprep.mubr.bf16.mxu0 0
    %2471 = vmatmul.mubr.bf16.gmra.mrb[0].mxu0 %v2369
    %v2472 = vpop.f32.mrb[0].mxu0
    %v2473 = vadd.f32 %v2412, %v2472
    %v2474 = vpop.f32.mrb[0].mxu0
    %v2475 = vadd.f32 %v2414, %v2474
    %v2476 = vpop.f32.mrb[0].mxu0
    %v2477 = vadd.f32 %v2416, %v2476
    %v2478 = vpop.f32.mrb[0].mxu0
    %v2479 = vadd.f32 %v2418, %v2478
    %2480 = vmatprep.mubr.bf16.mxu0 0
    %2481 = vmatmul.mubr.bf16.gmra.mrb[0].mxu0 %v2372
    %v2482 = vpop.f32.mrb[0].mxu0
    %v2483 = vadd.f32 %v2422, %v2482
    %v2484 = vpop.f32.mrb[0].mxu0
    %v2485 = vadd.f32 %v2424, %v2484
    %v2486 = vpop.f32.mrb[0].mxu0
    %v2487 = vadd.f32 %v2426, %v2486
    %v2488 = vpop.f32.mrb[0].mxu0
    %v2489 = vadd.f32 %v2428, %v2488
    %2490 = vmatprep.mubr.bf16.mxu0 0
    %2491 = vmatmul.mubr.bf16.gmra.mrb[0].mxu0 %v2375
    %v2492 = vpop.f32.mrb[0].mxu0
    %v2493 = vadd.f32 %v2432, %v2492
    %v2494 = vpop.f32.mrb[0].mxu0
    %v2495 = vadd.f32 %v2434, %v2494
    %v2496 = vpop.f32.mrb[0].mxu0
    %v2497 = vpop.f32.mrb[0].mxu0
    %2498 = vdwg.mxu0
    %v2535 = vunpack.c.l.b16 %v2028
    %v2536 = vunpack.c.h.b16 %v2028
    %v2537 = vunpack.c.l.b16 %v2029
    %v2538 = vunpack.c.h.b16 %v2029
    %v2539 = vunpack.c.l.b16 %v2030
    %v2540 = vunpack.c.h.b16 %v2030
    %v2541 = vunpack.c.l.b16 %v2031
    %v2542 = vunpack.c.h.b16 %v2031
    %v2543 = vunpack.c.l.b16 %v2032
    %v2544 = vunpack.c.h.b16 %v2032
    %v2545 = vunpack.c.l.b16 %v2033
    %v2546 = vunpack.c.h.b16 %v2033
    %v2547 = vunpack.c.l.b16 %v2034
    %v2548 = vunpack.c.h.b16 %v2034
    %v2549 = vunpack.c.l.b16 %v2035
    %v2550 = vunpack.c.h.b16 %v2035
    %v2551 = vunpack.c.l.b16 %v2036
    %v2552 = vunpack.c.h.b16 %v2036
    %v2553 = vunpack.c.l.b16 %v2037
    %v2554 = vunpack.c.h.b16 %v2037
    %v2555 = vunpack.c.l.b16 %v2038
    %v2556 = vunpack.c.h.b16 %v2038
    %v2557 = vunpack.c.l.b16 %v2039
    %v2558 = vunpack.c.h.b16 %v2039
    %v2559 = vunpack.c.l.b16 %v2040
    %v2560 = vunpack.c.h.b16 %v2040
    %v2561 = vunpack.c.l.b16 %v2041
    %v2562 = vunpack.c.h.b16 %v2041
    %v2563 = vunpack.c.l.b16 %v2042
    %v2564 = vunpack.c.h.b16 %v2042
    %v2565 = vunpack.c.l.b16 %v2043
    %v2566 = vunpack.c.h.b16 %v2043
    %v2567 = vunpack.c.l.b16 %v2044
    %v2568 = vunpack.c.h.b16 %v2044
    %v2569 = vunpack.c.l.b16 %v2045
    %v2570 = vunpack.c.h.b16 %v2045
    %v2571 = vunpack.c.l.b16 %v2046
    %v2572 = vunpack.c.h.b16 %v2046
    %v2573 = vunpack.c.l.b16 %v2047
    %v2574 = vunpack.c.h.b16 %v2047
    %v2575 = vunpack.c.l.b16 %v2048
    %v2576 = vunpack.c.h.b16 %v2048
    %v2577 = vunpack.c.l.b16 %v2049
    %v2578 = vunpack.c.h.b16 %v2049
    %v2579 = vunpack.c.l.b16 %v2050
    %v2580 = vunpack.c.h.b16 %v2050
    %v2581 = vunpack.c.l.b16 %v2051
    %v2582 = vunpack.c.h.b16 %v2051
    %v2583 = vunpack.c.l.b16 %v2052
    %v2584 = vunpack.c.h.b16 %v2052
    %v2585 = vunpack.c.l.b16 %v2053
    %v2586 = vunpack.c.h.b16 %v2053
    %v2587 = vunpack.c.l.b16 %v2054
    %v2588 = vunpack.c.h.b16 %v2054
    %v2589 = vunpack.c.l.b16 %v2055
    %v2590 = vunpack.c.h.b16 %v2055
    %v2591 = vunpack.c.l.b16 %v2056
    %v2592 = vunpack.c.h.b16 %v2056
    %v2593 = vunpack.c.l.b16 %v2057
    %v2594 = vunpack.c.h.b16 %v2057
    %v2595 = vunpack.c.l.b16 %v2058
    %v2596 = vunpack.c.h.b16 %v2058
    %v2597 = vunpack.c.l.b16 %v2059
    %v2598 = vunpack.c.h.b16 %v2059
    %v2599 = vunpack.c.l.b16 %v2060
    %v2600 = vunpack.c.h.b16 %v2060
    %v2601 = vunpack.c.l.b16 %v2061
    %v2602 = vunpack.c.h.b16 %v2061
    %v2603 = vunpack.c.l.b16 %v2062
    %v2604 = vunpack.c.h.b16 %v2062
    %v2605 = vunpack.c.l.b16 %v2063
    %v2606 = vunpack.c.h.b16 %v2063
    %v2607 = vpack.c.b16 %v2537, %v2535
    %v2608 = vpack.c.b16 %v2538, %v2536
    %v2609 = vpack.c.b16 %v2541, %v2539
    %v2610 = vpack.c.b16 %v2542, %v2540
    %v2611 = vpack.c.b16 %v2545, %v2543
    %v2612 = vpack.c.b16 %v2546, %v2544
    %v2613 = vpack.c.b16 %v2549, %v2547
    %v2614 = vpack.c.b16 %v2550, %v2548
    %v2615 = vpack.c.b16 %v2553, %v2551
    %v2616 = vpack.c.b16 %v2554, %v2552
    %v2617 = vpack.c.b16 %v2557, %v2555
    %v2618 = vpack.c.b16 %v2558, %v2556
    %v2619 = vpack.c.b16 %v2561, %v2559
    %v2620 = vpack.c.b16 %v2562, %v2560
    %v2621 = vpack.c.b16 %v2565, %v2563
    %v2622 = vpack.c.b16 %v2566, %v2564
    %v2623 = vpack.c.b16 %v2569, %v2567
    %v2624 = vpack.c.b16 %v2570, %v2568
    %v2625 = vpack.c.b16 %v2573, %v2571
    %v2626 = vpack.c.b16 %v2574, %v2572
    %v2627 = vpack.c.b16 %v2577, %v2575
    %v2628 = vpack.c.b16 %v2578, %v2576
    %v2629 = vpack.c.b16 %v2581, %v2579
    %v2630 = vpack.c.b16 %v2582, %v2580
    %v2631 = vpack.c.b16 %v2585, %v2583
    %v2632 = vpack.c.b16 %v2586, %v2584
    %v2633 = vpack.c.b16 %v2589, %v2587
    %v2634 = vpack.c.b16 %v2590, %v2588
    %v2635 = vpack.c.b16 %v2593, %v2591
    %v2636 = vpack.c.b16 %v2594, %v2592
    %v2637 = vpack.c.b16 %v2597, %v2595
    %v2638 = vpack.c.b16 %v2598, %v2596
    %v2639 = vpack.c.b16 %v2601, %v2599
    %v2640 = vpack.c.b16 %v2602, %v2600
    %v2641 = vpack.c.b16 %v2605, %v2603
    %v2642 = vpack.c.b16 %v2606, %v2604
    %v2680 = vsel %vm69, %v2021, 0
    %v2682 = vsel %vm69, %v2024, 0
    %v2685 = vsel %vm69, %v2027, 0
    %2687 = vmatprep.subr.bf16.mxu0 %v2608
    %2688 = vmatpush1.bf16.msra.mxu0 %v2607
    %2689 = vmatprep.subr.bf16.mxu0 %v2610
    %2690 = vmatpush1.bf16.msra.mxu0 %v2609
    %2691 = vmatprep.subr.bf16.mxu0 %v2612
    %2692 = vmatpush1.bf16.msra.mxu0 %v2611
    %2693 = vmatprep.subr.bf16.mxu0 %v2614
    %2694 = vmatpush1.bf16.msra.mxu0 %v2613
    %2695 = vmatprep.subr.bf16.mxu0 %v2616
    %2696 = vmatpush1.bf16.msra.mxu0 %v2615
    %2697 = vmatprep.subr.bf16.mxu0 %v2618
    %2698 = vmatpush1.bf16.msra.mxu0 %v2617
    %2699 = vmatprep.subr.bf16.mxu0 %v2620
    %2700 = vmatpush1.bf16.msra.mxu0 %v2619
    %2701 = vmatprep.subr.bf16.mxu0 %v2622
    %2702 = vmatpush1.bf16.msra.mxu0 %v2621
    %2703 = vmatprep.subr.bf16.mxu0 %v2624
    %2704 = vmatpush1.bf16.msra.mxu0 %v2623
    %2705 = vmatprep.subr.bf16.mxu0 %v2626
    %2706 = vmatpush1.bf16.msra.mxu0 %v2625
    %2707 = vmatprep.subr.bf16.mxu0 %v2628
    %2708 = vmatpush1.bf16.msra.mxu0 %v2627
    %2709 = vmatprep.subr.bf16.mxu0 %v2630
    %2710 = vmatpush1.bf16.msra.mxu0 %v2629
    %2711 = vmatprep.subr.bf16.mxu0 %v2632
    %2712 = vmatpush1.bf16.msra.mxu0 %v2631
    %2713 = vmatprep.subr.bf16.mxu0 %v2634
    %2714 = vmatpush1.bf16.msra.mxu0 %v2633
    %2715 = vmatprep.subr.bf16.mxu0 %v2636
    %2716 = vmatpush1.bf16.msra.mxu0 %v2635
    %2717 = vmatprep.subr.bf16.mxu0 %v2638
    %2718 = vmatpush1.bf16.msra.mxu0 %v2637
    %2719 = vmatprep.mubr.bf16.mxu0 %v2020
    %2720 = vmatmul.mubr.bf16.gmra.mrb[0].mxu0 %v2019
    %v2721 = vpop.f32.mrb[0].mxu0
    %v2722 = vadd.f32 %v2473, %v2721
    %v2723 = vpop.f32.mrb[0].mxu0
    %v2724 = vadd.f32 %v2475, %v2723
    %v2725 = vpop.f32.mrb[0].mxu0
    %v2726 = vadd.f32 %v2477, %v2725
    %v2727 = vpop.f32.mrb[0].mxu0
    %v2728 = vadd.f32 %v2479, %v2727
    %2729 = vmatprep.mubr.bf16.mxu0 %v2023
    %2730 = vmatmul.mubr.bf16.gmra.mrb[0].mxu0 %v2022
    %v2731 = vpop.f32.mrb[0].mxu0
    %v2732 = vadd.f32 %v2483, %v2731
    %v2733 = vpop.f32.mrb[0].mxu0
    %v2734 = vadd.f32 %v2485, %v2733
    %v2735 = vpop.f32.mrb[0].mxu0
    %v2736 = vadd.f32 %v2487, %v2735
    %v2737 = vpop.f32.mrb[0].mxu0
    %v2738 = vadd.f32 %v2489, %v2737
    %2739 = vmatprep.mubr.bf16.mxu0 %v2026
    %2740 = vmatmul.mubr.bf16.gmra.mrb[0].mxu0 %v2025
    %v2741 = vpop.f32.mrb[0].mxu0
    %v2742 = vadd.f32 %v2493, %v2741
    %v2743 = vpop.f32.mrb[0].mxu0
    %v2744 = vadd.f32 %v2495, %v2743
    %v2745 = vpop.f32.mrb[0].mxu0
    %v2746 = vpop.f32.mrb[0].mxu0
    %2747 = vdwg.mxu0
    %2748 = vmatprep.subr.bf16.mxu0 %v2640
    %2749 = vmatpush1.bf16.msra.mxu0 %v2639
    %2750 = vmatprep.subr.bf16.mxu0 %v2642
    %2751 = vmatpush1.bf16.msra.mxu0 %v2641
    %2752 = vmatprep.subr.bf16.mxu0 0
    %2753 = vmatpush1.bf16.msra.mxu0 0
    %2754 = vmatprep.subr.bf16.mxu0 0
    %2755 = vmatpush1.bf16.msra.mxu0 0
    %2756 = vmatprep.subr.bf16.mxu0 0
    %2757 = vmatpush1.bf16.msra.mxu0 0
    %2758 = vmatprep.subr.bf16.mxu0 0
    %2759 = vmatpush1.bf16.msra.mxu0 0
    %2760 = vmatprep.subr.bf16.mxu0 0
    %2761 = vmatpush1.bf16.msra.mxu0 0
    %2762 = vmatprep.subr.bf16.mxu0 0
    %2763 = vmatpush1.bf16.msra.mxu0 0
    %2764 = vmatprep.subr.bf16.mxu0 0
    %2765 = vmatpush1.bf16.msra.mxu0 0
    %2766 = vmatprep.subr.bf16.mxu0 0
    %2767 = vmatpush1.bf16.msra.mxu0 0
    %2768 = vmatprep.subr.bf16.mxu0 0
    %2769 = vmatpush1.bf16.msra.mxu0 0
    %2770 = vmatprep.subr.bf16.mxu0 0
    %2771 = vmatpush1.bf16.msra.mxu0 0
    %2772 = vmatprep.subr.bf16.mxu0 0
    %2773 = vmatpush1.bf16.msra.mxu0 0
    %2774 = vmatprep.subr.bf16.mxu0 0
    %2775 = vmatpush1.bf16.msra.mxu0 0
    %2776 = vmatprep.subr.bf16.mxu0 0
    %2777 = vmatpush1.bf16.msra.mxu0 0
    %2778 = vmatprep.subr.bf16.mxu0 0
    %2779 = vmatpush1.bf16.msra.mxu0 0
    %2780 = vmatprep.mubr.bf16.mxu0 0
    %2781 = vmatmul.mubr.bf16.gmra.mrb[0].mxu0 %v2680
    %v2782 = vpop.f32.mrb[0].mxu0
    %v2783 = vadd.f32 %v2722, %v2782
    %v2784 = vpop.f32.mrb[0].mxu0
    %v2785 = vadd.f32 %v2724, %v2784
    %v2786 = vpop.f32.mrb[0].mxu0
    %v2787 = vadd.f32 %v2726, %v2786
    %v2788 = vpop.f32.mrb[0].mxu0
    %v2789 = vadd.f32 %v2728, %v2788
    %2790 = vmatprep.mubr.bf16.mxu0 0
    %2791 = vmatmul.mubr.bf16.gmra.mrb[0].mxu0 %v2682
    %v2792 = vpop.f32.mrb[0].mxu0
    %v2793 = vadd.f32 %v2732, %v2792
    %v2794 = vpop.f32.mrb[0].mxu0
    %v2795 = vadd.f32 %v2734, %v2794
    %v2796 = vpop.f32.mrb[0].mxu0
    %v2797 = vadd.f32 %v2736, %v2796
    %v2798 = vpop.f32.mrb[0].mxu0
    %v2799 = vadd.f32 %v2738, %v2798
    %2800 = vmatprep.mubr.bf16.mxu0 0
    %2801 = vmatmul.mubr.bf16.gmra.mrb[0].mxu0 %v2685
    %v2802 = vpop.f32.mrb[0].mxu0
    %v2803 = vadd.f32 %v2742, %v2802
    %v2804 = vpop.f32.mrb[0].mxu0
    %v2805 = vadd.f32 %v2744, %v2804
    %v2806 = vpop.f32.mrb[0].mxu0
    %v2807 = vpop.f32.mrb[0].mxu0
    %2808 = vdwg.mxu0
    %v2809 = vld [vmem:[#allocation2] sm:$0xfc]
    %v2810 = vld [vmem:[#allocation2 + $0x8] sm:$0xfc]
    %v2811 = vld [vmem:[#allocation2 + $0x10] sm:$0xfc]
    %v2812 = vld [vmem:[#allocation2 + $0x60] sm:$0xf]
    %v2813 = vld [vmem:[#allocation2 + $0x68] sm:$0xf]
    %v2814 = vld [vmem:[#allocation2 + $0x70] sm:$0xf]
    %v2815 = vpack.c.bf16 %v2007, %v2809
    %v2816 = vpack.c.bf16 %v2008, %v2810
    %v2817 = vpack.c.bf16 %v2009, %v2811
    %v2818 = vpack.c.bf16 %v2812, %v2812
    %v2819 = vpack.c.bf16 %v2813, %v2813
    %v2820 = vpack.c.bf16 %v2814, %v2814
    %s2821 = scalar_lea.vmem [#allocation5], 576
    %v2822 = vld [vmem:[%s2821] sm:$0xff]
    %v2823 = vld [vmem:[%s2821 + $0x8] sm:$0xff]
    %v2824 = vld [vmem:[%s2821 + $0x10] sm:$0xff]
    %v2825 = vld [vmem:[%s2821 + $0x18] sm:$0xff]
    %v2826 = vld [vmem:[%s2821 + $0x20] sm:$0xff]
    %v2827 = vld [vmem:[%s2821 + $0x28] sm:$0xff]
    %v2828 = vld [vmem:[%s2821 + $0x30] sm:$0xff]
    %v2829 = vld [vmem:[%s2821 + $0x38] sm:$0xff]
    %v2830 = vld [vmem:[%s2821 + $0x40] sm:$0xff]
    %v2831 = vld [vmem:[%s2821 + $0x48] sm:$0xff]
    %v2832 = vld [vmem:[%s2821 + $0x50] sm:$0xff]
    %v2833 = vld [vmem:[%s2821 + $0x58] sm:$0xff]
    %v2834 = vld [vmem:[%s2821 + $0x60] sm:$0xff]
    %v2835 = vld [vmem:[%s2821 + $0x68] sm:$0xff]
    %v2836 = vld [vmem:[%s2821 + $0x70] sm:$0xff]
    %v2837 = vld [vmem:[%s2821 + $0x78] sm:$0xff]
    %v2838 = vld [vmem:[%s2821 + $0x80] sm:$0xff]
    %v2839 = vld [vmem:[%s2821 + $0x88] sm:$0xff]
    %v2840 = vld [vmem:[%s2821 + $0x90] sm:$0xff]
    %v2841 = vld [vmem:[%s2821 + $0x98] sm:$0xff]
    %v2842 = vld [vmem:[%s2821 + $0xa0] sm:$0xff]
    %v2843 = vld [vmem:[%s2821 + $0xa8] sm:$0xff]
    %v2844 = vld [vmem:[%s2821 + $0xb0] sm:$0xff]
    %v2845 = vld [vmem:[%s2821 + $0xb8] sm:$0xff]
    %v2846 = vld [vmem:[%s2821 + $0xc0] sm:$0xff]
    %v2847 = vld [vmem:[%s2821 + $0xc8] sm:$0xff]
    %v2848 = vld [vmem:[%s2821 + $0xd0] sm:$0xff]
    %v2849 = vld [vmem:[%s2821 + $0xd8] sm:$0xff]
    %v2850 = vld [vmem:[%s2821 + $0xe0] sm:$0xff]
    %v2851 = vld [vmem:[%s2821 + $0xe8] sm:$0xff]
    %v2852 = vld [vmem:[%s2821 + $0xf0] sm:$0xff]
    %v2853 = vld [vmem:[%s2821 + $0xf8] sm:$0xff]
    %v2854 = vld [vmem:[%s2821 + $0x100] sm:$0xff]
    %v2855 = vld [vmem:[%s2821 + $0x108] sm:$0xff]
    %v2856 = vld [vmem:[%s2821 + $0x110] sm:$0xff]
    %v2857 = vld [vmem:[%s2821 + $0x118] sm:$0xff]
    %v2867 = vrot.slane %v2815, 1
    %v2868 = vrot.slane %v2022, 1
    %v2869 = vsel %vm410, %v2867, %v2868
    %v2870 = vrot.slane %v2816, 1
    %v2871 = vrot.slane %v2023, 1
    %v2872 = vsel %vm410, %v2870, %v2871
    %v2873 = vrot.slane %v2817, 1
    %v2874 = vrot.slane %v2024, 1
    %v2875 = vsel %vm410, %v2873, %v2874
    %v2876 = vrot.slane %v2818, 1
    %v2877 = vsel %vm410, %v2868, %v2876
    %v2878 = vrot.slane %v2819, 1
    %v2879 = vsel %vm410, %v2871, %v2878
    %v2880 = vrot.slane %v2820, 1
    %v2881 = vsel %vm410, %v2874, %v2880
    %v2924 = vunpack.c.l.b16 %v2822
    %v2925 = vunpack.c.h.b16 %v2822
    %v2926 = vunpack.c.l.b16 %v2823
    %v2927 = vunpack.c.h.b16 %v2823
    %v2928 = vunpack.c.l.b16 %v2824
    %v2929 = vunpack.c.h.b16 %v2824
    %v2930 = vunpack.c.l.b16 %v2825
    %v2931 = vunpack.c.h.b16 %v2825
    %v2932 = vunpack.c.l.b16 %v2826
    %v2933 = vunpack.c.h.b16 %v2826
    %v2934 = vunpack.c.l.b16 %v2827
    %v2935 = vunpack.c.h.b16 %v2827
    %v2936 = vunpack.c.l.b16 %v2828
    %v2937 = vunpack.c.h.b16 %v2828
    %v2938 = vunpack.c.l.b16 %v2829
    %v2939 = vunpack.c.h.b16 %v2829
    %v2940 = vunpack.c.l.b16 %v2830
    %v2941 = vunpack.c.h.b16 %v2830
    %v2942 = vunpack.c.l.b16 %v2831
    %v2943 = vunpack.c.h.b16 %v2831
    %v2944 = vunpack.c.l.b16 %v2832
    %v2945 = vunpack.c.h.b16 %v2832
    %v2946 = vunpack.c.l.b16 %v2833
    %v2947 = vunpack.c.h.b16 %v2833
    %v2948 = vunpack.c.l.b16 %v2834
    %v2949 = vunpack.c.h.b16 %v2834
    %v2950 = vunpack.c.l.b16 %v2835
    %v2951 = vunpack.c.h.b16 %v2835
    %v2952 = vunpack.c.l.b16 %v2836
    %v2953 = vunpack.c.h.b16 %v2836
    %v2954 = vunpack.c.l.b16 %v2837
    %v2955 = vunpack.c.h.b16 %v2837
    %v2956 = vunpack.c.l.b16 %v2838
    %v2957 = vunpack.c.h.b16 %v2838
    %v2958 = vunpack.c.l.b16 %v2839
    %v2959 = vunpack.c.h.b16 %v2839
    %v2960 = vunpack.c.l.b16 %v2840
    %v2961 = vunpack.c.h.b16 %v2840
    %v2962 = vunpack.c.l.b16 %v2841
    %v2963 = vunpack.c.h.b16 %v2841
    %v2964 = vunpack.c.l.b16 %v2842
    %v2965 = vunpack.c.h.b16 %v2842
    %v2966 = vunpack.c.l.b16 %v2843
    %v2967 = vunpack.c.h.b16 %v2843
    %v2968 = vunpack.c.l.b16 %v2844
    %v2969 = vunpack.c.h.b16 %v2844
    %v2970 = vunpack.c.l.b16 %v2845
    %v2971 = vunpack.c.h.b16 %v2845
    %v2972 = vunpack.c.l.b16 %v2846
    %v2973 = vunpack.c.h.b16 %v2846
    %v2974 = vunpack.c.l.b16 %v2847
    %v2975 = vunpack.c.h.b16 %v2847
    %v2976 = vunpack.c.l.b16 %v2848
    %v2977 = vunpack.c.h.b16 %v2848
    %v2978 = vunpack.c.l.b16 %v2849
    %v2979 = vunpack.c.h.b16 %v2849
    %v2980 = vunpack.c.l.b16 %v2850
    %v2981 = vunpack.c.h.b16 %v2850
    %v2982 = vunpack.c.l.b16 %v2851
    %v2983 = vunpack.c.h.b16 %v2851
    %v2984 = vunpack.c.l.b16 %v2852
    %v2985 = vunpack.c.h.b16 %v2852
    %v2986 = vunpack.c.l.b16 %v2853
    %v2987 = vunpack.c.h.b16 %v2853
    %v2988 = vunpack.c.l.b16 %v2854
    %v2989 = vunpack.c.h.b16 %v2854
    %v2990 = vunpack.c.l.b16 %v2855
    %v2991 = vunpack.c.h.b16 %v2855
    %v2992 = vunpack.c.l.b16 %v2856
    %v2993 = vunpack.c.h.b16 %v2856
    %v2994 = vunpack.c.l.b16 %v2857
    %v2995 = vunpack.c.h.b16 %v2857
    %v2996 = vpack.c.b16 %v2926, %v2924
    %v2997 = vpack.c.b16 %v2927, %v2925
    %v2998 = vpack.c.b16 %v2930, %v2928
    %v2999 = vpack.c.b16 %v2931, %v2929
    %v3000 = vpack.c.b16 %v2934, %v2932
    %v3001 = vpack.c.b16 %v2935, %v2933
    %v3002 = vpack.c.b16 %v2938, %v2936
    %v3003 = vpack.c.b16 %v2939, %v2937
    %v3004 = vpack.c.b16 %v2942, %v2940
    %v3005 = vpack.c.b16 %v2943, %v2941
    %v3006 = vpack.c.b16 %v2946, %v2944
    %v3007 = vpack.c.b16 %v2947, %v2945
    %v3008 = vpack.c.b16 %v2950, %v2948
    %v3009 = vpack.c.b16 %v2951, %v2949
    %v3010 = vpack.c.b16 %v2954, %v2952
    %v3011 = vpack.c.b16 %v2955, %v2953
    %v3012 = vpack.c.b16 %v2958, %v2956
    %v3013 = vpack.c.b16 %v2959, %v2957
    %v3014 = vpack.c.b16 %v2962, %v2960
    %v3015 = vpack.c.b16 %v2963, %v2961
    %v3016 = vpack.c.b16 %v2966, %v2964
    %v3017 = vpack.c.b16 %v2967, %v2965
    %v3018 = vpack.c.b16 %v2970, %v2968
    %v3019 = vpack.c.b16 %v2971, %v2969
    %v3020 = vpack.c.b16 %v2974, %v2972
    %v3021 = vpack.c.b16 %v2975, %v2973
    %v3022 = vpack.c.b16 %v2978, %v2976
    %v3023 = vpack.c.b16 %v2979, %v2977
    %v3024 = vpack.c.b16 %v2982, %v2980
    %v3025 = vpack.c.b16 %v2983, %v2981
    %v3026 = vpack.c.b16 %v2986, %v2984
    %v3027 = vpack.c.b16 %v2987, %v2985
    %v3028 = vpack.c.b16 %v2990, %v2988
    %v3029 = vpack.c.b16 %v2991, %v2989
    %v3030 = vpack.c.b16 %v2994, %v2992
    %v3031 = vpack.c.b16 %v2995, %v2993
    %v3069 = vsel %vm69, %v2875, 0
    %v3072 = vsel %vm69, %v2881, 0
    %v3075 = vsel %vm69, %v2880, 0
    %3077 = vmatprep.subr.bf16.mxu0 %v2997
    %3078 = vmatpush1.bf16.msra.mxu0 %v2996
    %3079 = vmatprep.subr.bf16.mxu0 %v2999
    %3080 = vmatpush1.bf16.msra.mxu0 %v2998
    %3081 = vmatprep.subr.bf16.mxu0 %v3001
    %3082 = vmatpush1.bf16.msra.mxu0 %v3000
    %3083 = vmatprep.subr.bf16.mxu0 %v3003
    %3084 = vmatpush1.bf16.msra.mxu0 %v3002
    %3085 = vmatprep.subr.bf16.mxu0 %v3005
    %3086 = vmatpush1.bf16.msra.mxu0 %v3004
    %3087 = vmatprep.subr.bf16.mxu0 %v3007
    %3088 = vmatpush1.bf16.msra.mxu0 %v3006
    %3089 = vmatprep.subr.bf16.mxu0 %v3009
    %3090 = vmatpush1.bf16.msra.mxu0 %v3008
    %3091 = vmatprep.subr.bf16.mxu0 %v3011
    %3092 = vmatpush1.bf16.msra.mxu0 %v3010
    %3093 = vmatprep.subr.bf16.mxu0 %v3013
    %3094 = vmatpush1.bf16.msra.mxu0 %v3012
    %3095 = vmatprep.subr.bf16.mxu0 %v3015
    %3096 = vmatpush1.bf16.msra.mxu0 %v3014
    %3097 = vmatprep.subr.bf16.mxu0 %v3017
    %3098 = vmatpush1.bf16.msra.mxu0 %v3016
    %3099 = vmatprep.subr.bf16.mxu0 %v3019
    %3100 = vmatpush1.bf16.msra.mxu0 %v3018
    %3101 = vmatprep.subr.bf16.mxu0 %v3021
    %3102 = vmatpush1.bf16.msra.mxu0 %v3020
    %3103 = vmatprep.subr.bf16.mxu0 %v3023
    %3104 = vmatpush1.bf16.msra.mxu0 %v3022
    %3105 = vmatprep.subr.bf16.mxu0 %v3025
    %3106 = vmatpush1.bf16.msra.mxu0 %v3024
    %3107 = vmatprep.subr.bf16.mxu0 %v3027
    %3108 = vmatpush1.bf16.msra.mxu0 %v3026
    %3109 = vmatprep.mubr.bf16.mxu0 %v2872
    %3110 = vmatmul.mubr.bf16.gmra.mrb[0].mxu0 %v2869
    %v3111 = vpop.f32.mrb[0].mxu0
    %v3112 = vadd.f32 0.0, %v3111
    %v3113 = vpop.f32.mrb[0].mxu0
    %v3114 = vadd.f32 0.0, %v3113
    %v3115 = vpop.f32.mrb[0].mxu0
    %v3116 = vadd.f32 0.0, %v3115
    %v3117 = vpop.f32.mrb[0].mxu0
    %v3118 = vadd.f32 0.0, %v3117
    %3119 = vmatprep.mubr.bf16.mxu0 %v2879
    %3120 = vmatmul.mubr.bf16.gmra.mrb[0].mxu0 %v2877
    %v3121 = vpop.f32.mrb[0].mxu0
    %v3122 = vadd.f32 0.0, %v3121
    %v3123 = vpop.f32.mrb[0].mxu0
    %v3124 = vadd.f32 0.0, %v3123
    %v3125 = vpop.f32.mrb[0].mxu0
    %v3126 = vadd.f32 0.0, %v3125
    %v3127 = vpop.f32.mrb[0].mxu0
    %v3128 = vadd.f32 0.0, %v3127
    %3129 = vmatprep.mubr.bf16.mxu0 %v2878
    %3130 = vmatmul.mubr.bf16.gmra.mrb[0].mxu0 %v2876
    %v3131 = vpop.f32.mrb[0].mxu0
    %v3132 = vadd.f32 0.0, %v3131
    %v3133 = vpop.f32.mrb[0].mxu0
    %v3134 = vadd.f32 0.0, %v3133
    %v3135 = vpop.f32.mrb[0].mxu0
    %v3136 = vpop.f32.mrb[0].mxu0
    %3137 = vdwg.mxu0
    %3138 = vmatprep.subr.bf16.mxu0 %v3029
    %3139 = vmatpush1.bf16.msra.mxu0 %v3028
    %3140 = vmatprep.subr.bf16.mxu0 %v3031
    %3141 = vmatpush1.bf16.msra.mxu0 %v3030
    %3142 = vmatprep.subr.bf16.mxu0 0
    %3143 = vmatpush1.bf16.msra.mxu0 0
    %3144 = vmatprep.subr.bf16.mxu0 0
    %3145 = vmatpush1.bf16.msra.mxu0 0
    %3146 = vmatprep.subr.bf16.mxu0 0
    %3147 = vmatpush1.bf16.msra.mxu0 0
    %3148 = vmatprep.subr.bf16.mxu0 0
    %3149 = vmatpush1.bf16.msra.mxu0 0
    %3150 = vmatprep.subr.bf16.mxu0 0
    %3151 = vmatpush1.bf16.msra.mxu0 0
    %3152 = vmatprep.subr.bf16.mxu0 0
    %3153 = vmatpush1.bf16.msra.mxu0 0
    %3154 = vmatprep.subr.bf16.mxu0 0
    %3155 = vmatpush1.bf16.msra.mxu0 0
    %3156 = vmatprep.subr.bf16.mxu0 0
    %3157 = vmatpush1.bf16.msra.mxu0 0
    %3158 = vmatprep.subr.bf16.mxu0 0
    %3159 = vmatpush1.bf16.msra.mxu0 0
    %3160 = vmatprep.subr.bf16.mxu0 0
    %3161 = vmatpush1.bf16.msra.mxu0 0
    %3162 = vmatprep.subr.bf16.mxu0 0
    %3163 = vmatpush1.bf16.msra.mxu0 0
    %3164 = vmatprep.subr.bf16.mxu0 0
    %3165 = vmatpush1.bf16.msra.mxu0 0
    %3166 = vmatprep.subr.bf16.mxu0 0
    %3167 = vmatpush1.bf16.msra.mxu0 0
    %3168 = vmatprep.subr.bf16.mxu0 0
    %3169 = vmatpush1.bf16.msra.mxu0 0
    %3170 = vmatprep.mubr.bf16.mxu0 0
    %3171 = vmatmul.mubr.bf16.gmra.mrb[0].mxu0 %v3069
    %v3172 = vpop.f32.mrb[0].mxu0
    %v3173 = vadd.f32 %v3112, %v3172
    %v3174 = vpop.f32.mrb[0].mxu0
    %v3175 = vadd.f32 %v3114, %v3174
    %v3176 = vpop.f32.mrb[0].mxu0
    %v3177 = vadd.f32 %v3116, %v3176
    %v3178 = vpop.f32.mrb[0].mxu0
    %v3179 = vadd.f32 %v3118, %v3178
    %3180 = vmatprep.mubr.bf16.mxu0 0
    %3181 = vmatmul.mubr.bf16.gmra.mrb[0].mxu0 %v3072
    %v3182 = vpop.f32.mrb[0].mxu0
    %v3183 = vadd.f32 %v3122, %v3182
    %v3184 = vpop.f32.mrb[0].mxu0
    %v3185 = vadd.f32 %v3124, %v3184
    %v3186 = vpop.f32.mrb[0].mxu0
    %v3187 = vadd.f32 %v3126, %v3186
    %v3188 = vpop.f32.mrb[0].mxu0
    %v3189 = vadd.f32 %v3128, %v3188
    %3190 = vmatprep.mubr.bf16.mxu0 0
    %3191 = vmatmul.mubr.bf16.gmra.mrb[0].mxu0 %v3075
    %v3192 = vpop.f32.mrb[0].mxu0
    %v3193 = vadd.f32 %v3132, %v3192
    %v3194 = vpop.f32.mrb[0].mxu0
    %v3195 = vadd.f32 %v3134, %v3194
    %v3196 = vpop.f32.mrb[0].mxu0
    %v3197 = vpop.f32.mrb[0].mxu0
    %3198 = vdwg.mxu0
    %v3199 = vadd.f32 %v2783, %v3173
    %v3200 = vadd.f32 %v2785, %v3175
    %v3201 = vadd.f32 %v2787, %v3177
    %v3202 = vadd.f32 %v2789, %v3179
    %v3203 = vadd.f32 %v2793, %v3183
    %v3204 = vadd.f32 %v2795, %v3185
    %v3205 = vadd.f32 %v2797, %v3187
    %v3206 = vadd.f32 %v2799, %v3189
    %v3207 = vadd.f32 %v2803, %v3193
    %v3208 = vadd.f32 %v2805, %v3195
    %s3209 = scalar_lea.vmem %s4, 4
    %v3210 = vld [vmem:[%s3209] sm:$0x3]
    %v3212 = vlaneseq
    %v3213 = vshrl.u32 %v3212, 7
    %v3214 = vsub.s32 0, %v3213
    %v3215 = vrot.slane %v3210, %v3214
    %v3216 = vlaneseq
    %v3217 = vshrl.u32 %v3216, 7
    %v3218 = vsub.s32 1, %v3217
    %v3219 = vrot.slane %v3210, %v3218
    %v3222 = vmul.f32 %v3199, %v3215
    %v3223 = vmul.f32 %v3200, %v3219
    %v3224 = vmul.f32 %v3201, %v3215
    %v3225 = vmul.f32 %v3202, %v3219
    %v3226 = vmul.f32 %v3203, %v3215
    %v3227 = vmul.f32 %v3204, %v3219
    %v3228 = vmul.f32 %v3205, %v3215
    %v3229 = vmul.f32 %v3206, %v3219
    %v3230 = vmul.f32 %v3207, %v3215
    %v3231 = vmul.f32 %v3208, %v3219
    %s3232 = scalar_lea.vmem %s5, 4
    %v3233 = vld [vmem:[%s3232] sm:$0x3]
    %v3235 = vlaneseq
    %v3236 = vshrl.u32 %v3235, 7
    %v3237 = vsub.s32 0, %v3236
    %v3238 = vrot.slane %v3233, %v3237
    %v3239 = vlaneseq
    %v3240 = vshrl.u32 %v3239, 7
    %v3241 = vsub.s32 1, %v3240
    %v3242 = vrot.slane %v3233, %v3241
    %v3245 = vadd.f32 %v3222, %v3238
    %v3246 = vadd.f32 %v3223, %v3242
    %v3247 = vadd.f32 %v3224, %v3238
    %v3248 = vadd.f32 %v3225, %v3242
    %v3249 = vadd.f32 %v3226, %v3238
    %v3250 = vadd.f32 %v3227, %v3242
    %v3251 = vadd.f32 %v3228, %v3238
    %v3252 = vadd.f32 %v3229, %v3242
    %v3253 = vadd.f32 %v3230, %v3238
    %v3254 = vadd.f32 %v3231, %v3242
    %v3255 = vadd.f32 %v3245, %v591
    %v3256 = vadd.f32 %v3246, %v592
    %v3257 = vadd.f32 %v3247, %v593
    %v3258 = vadd.f32 %v3248, %v594
    %v3259 = vadd.f32 %v3249, %v595
    %v3260 = vadd.f32 %v3250, %v596
    %v3261 = vadd.f32 %v3251, %v597
    %v3262 = vadd.f32 %v3252, %v598
    %v3263 = vadd.f32 %v3253, %v599
    %v3264 = vadd.f32 %v3254, %v600
    %v3265 = vmax.f32 %v3255, 0.0
    %v3266 = vmax.f32 %v3256, 0.0
    %v3267 = vmax.f32 %v3257, 0.0
    %v3268 = vmax.f32 %v3258, 0.0
    %v3269 = vmax.f32 %v3259, 0.0
    %v3270 = vmax.f32 %v3260, 0.0
    %v3271 = vmax.f32 %v3261, 0.0
    %v3272 = vmax.f32 %v3262, 0.0
    %v3273 = vmax.f32 %v3263, 0.0
    %v3274 = vmax.f32 %v3264, 0.0
    %v3275 = vld [vmem:[%s7] sm:$0x3]
    %vm3276 = vcmask 277504
    %v3278 = vsel %vm3276, %v3275, 0
    %vm3280 = vcmask 1041408
    %v3282 = vsel %vm3280, %v3273, 0
    %v3285 = vsel %vm3280, %v3274, 0
    %3287 = vmatprep.subr.mxu0 %v3266
    %3288 = vmatpush1.msra.mxu0 %v3265
    %3289 = vmatprep.subr.mxu0 %v3268
    %3290 = vmatpush1.msra.mxu0 %v3267
    %3291 = vmatprep.subr.mxu0 %v3270
    %3292 = vmatpush1.msra.mxu0 %v3269
    %3293 = vmatprep.subr.mxu0 %v3272
    %3294 = vmatpush1.msra.mxu0 %v3271
    %3295 = vmatprep.subr.mxu0 %v3285
    %3296 = vmatpush1.msra.mxu0 %v3282
    %3297 = vmatprep.subr.mxu0 0.0
    %3298 = vmatpush1.msra.mxu0 0.0
    %3299 = vmatprep.subr.mxu0 0.0
    %3300 = vmatpush1.msra.mxu0 0.0
    %3301 = vmatprep.subr.mxu0 0.0
    %3302 = vmatpush1.msra.mxu0 0.0
    %3303 = vmatprep.subr.mxu0 0.0
    %3304 = vmatpush1.msra.mxu0 0.0
    %3305 = vmatprep.subr.mxu0 0.0
    %3306 = vmatpush1.msra.mxu0 0.0
    %3307 = vmatprep.subr.mxu0 0.0
    %3308 = vmatpush1.msra.mxu0 0.0
    %3309 = vmatprep.subr.mxu0 0.0
    %3310 = vmatpush1.msra.mxu0 0.0
    %3311 = vmatprep.subr.mxu0 0.0
    %3312 = vmatpush1.msra.mxu0 0.0
    %3313 = vmatprep.subr.mxu0 0.0
    %3314 = vmatpush1.msra.mxu0 0.0
    %3315 = vmatprep.subr.mxu0 0.0
    %3316 = vmatpush1.msra.mxu0 0.0
    %3317 = vmatprep.subr.mxu0 0.0
    %3318 = vmatpush1.msra.mxu0 0.0
    %3319 = vmatprep.subr.mxu0 0.0
    %3320 = vmatpush1.msra.mxu0 0.0
    %3321 = vmatprep.subr.mxu0 0.0
    %3322 = vmatpush1.msra.mxu0 0.0
    %3323 = vmatprep.subr.mxu0 0.0
    %3324 = vmatpush1.msra.mxu0 0.0
    %3325 = vmatprep.subr.mxu0 0.0
    %3326 = vmatpush1.msra.mxu0 0.0
    %3327 = vmatprep.subr.mxu0 0.0
    %3328 = vmatpush1.msra.mxu0 0.0
    %3329 = vmatprep.subr.mxu0 0.0
    %3330 = vmatpush1.msra.mxu0 0.0
    %3331 = vmatprep.subr.mxu0 0.0
    %3332 = vmatpush1.msra.mxu0 0.0
    %3333 = vmatprep.subr.mxu0 0.0
    %3334 = vmatpush1.msra.mxu0 0.0
    %3335 = vmatprep.subr.mxu0 0.0
    %3336 = vmatpush1.msra.mxu0 0.0
    %3337 = vmatprep.subr.mxu0 0.0
    %3338 = vmatpush1.msra.mxu0 0.0
    %3339 = vmatprep.subr.mxu0 0.0
    %3340 = vmatpush1.msra.mxu0 0.0
    %3341 = vmatprep.subr.mxu0 0.0
    %3342 = vmatpush1.msra.mxu0 0.0
    %3343 = vmatprep.subr.mxu0 0.0
    %3344 = vmatpush1.msra.mxu0 0.0
    %3345 = vmatprep.subr.mxu0 0.0
    %3346 = vmatpush1.msra.mxu0 0.0
    %3347 = vmatprep.subr.mxu0 0.0
    %3348 = vmatpush1.msra.mxu0 0.0
    %3349 = vmatprep.subr.mxu0 0.0
    %3350 = vmatpush1.msra.mxu0 0.0
    %3351 = vmatprep.mubr.f32.mxu0 0.0
    %3352 = vmatmul.mubr.f32.gmra.mrb[0].mxu0 %v3278
    %v3353 = vpop.f32.mrb[0].mxu0
    %v3354 = vadd.f32 0.0, %v3353
    %v3355 = vpop.f32.mrb[0].mxu0
    %v3356 = vadd.f32 0.0, %v3355
    %3357 = vdwg.mxu0
    %v3358 = vld [vmem:[%s8] sm:$0xff]
    %v3359 = vld [vmem:[%s8 + $0x8] sm:$0xff]
    %v3360 = vld [vmem:[%s8 + $0x10] sm:$0xff]
    %v3361 = vld [vmem:[%s8 + $0x18] sm:$0xff]
    %v3362 = vld [vmem:[%s8 + $0x20] sm:$0xff]
    %v3363 = vld [vmem:[%s8 + $0x28] sm:$0xff]
    %v3364 = vld [vmem:[%s8 + $0x30] sm:$0xff]
    %v3365 = vld [vmem:[%s8 + $0x38] sm:$0xff]
    %v3366 = vld [vmem:[%s8 + $0x40] sm:$0xff]
    %v3367 = vld [vmem:[%s8 + $0x48] sm:$0xff]
    %v3368 = vld [vmem:[%s8 + $0x50] sm:$0xff]
    %v3369 = vld [vmem:[%s8 + $0x58] sm:$0xff]
    %v3370 = vld [vmem:[%s8 + $0x60] sm:$0xff]
    %v3371 = vld [vmem:[%s8 + $0x68] sm:$0xff]
    %v3372 = vld [vmem:[%s8 + $0x70] sm:$0xff]
    %v3373 = vld [vmem:[%s8 + $0x78] sm:$0xff]
    %v3374 = vld [vmem:[%s8 + $0x80] sm:$0xff]
    %v3375 = vld [vmem:[%s8 + $0x88] sm:$0xff]
    %v3376 = vld [vmem:[%s8 + $0x90] sm:$0xff]
    %v3377 = vld [vmem:[%s8 + $0x98] sm:$0xff]
    %v3378 = vld [vmem:[%s8 + $0xa0] sm:$0xff]
    %v3379 = vld [vmem:[%s8 + $0xa8] sm:$0xff]
    %v3380 = vld [vmem:[%s8 + $0xb0] sm:$0xff]
    %v3381 = vld [vmem:[%s8 + $0xb8] sm:$0xff]
    %v3382 = vld [vmem:[%s8 + $0xc0] sm:$0xff]
    %v3383 = vld [vmem:[%s8 + $0xc8] sm:$0xff]
    %v3384 = vld [vmem:[%s8 + $0xd0] sm:$0xff]
    %v3385 = vld [vmem:[%s8 + $0xd8] sm:$0xff]
    %v3386 = vld [vmem:[%s8 + $0xe0] sm:$0xff]
    %v3387 = vld [vmem:[%s8 + $0xe8] sm:$0xff]
    %v3388 = vld [vmem:[%s8 + $0xf0] sm:$0xff]
    %v3389 = vld [vmem:[%s8 + $0xf8] sm:$0xff]
    %3390 = vmatprep.subr.mxu0 0.0
    %3391 = vmatpush1.msra.mxu0 %v3358
    %3392 = vmatprep.subr.mxu0 0.0
    %3393 = vmatpush1.msra.mxu0 %v3359
    %3394 = vmatprep.subr.mxu0 0.0
    %3395 = vmatpush1.msra.mxu0 %v3360
    %3396 = vmatprep.subr.mxu0 0.0
    %3397 = vmatpush1.msra.mxu0 %v3361
    %3398 = vmatprep.subr.mxu0 0.0
    %3399 = vmatpush1.msra.mxu0 %v3362
    %3400 = vmatprep.subr.mxu0 0.0
    %3401 = vmatpush1.msra.mxu0 %v3363
    %3402 = vmatprep.subr.mxu0 0.0
    %3403 = vmatpush1.msra.mxu0 %v3364
    %3404 = vmatprep.subr.mxu0 0.0
    %3405 = vmatpush1.msra.mxu0 %v3365
    %3406 = vmatprep.subr.mxu0 0.0
    %3407 = vmatpush1.msra.mxu0 %v3366
    %3408 = vmatprep.subr.mxu0 0.0
    %3409 = vmatpush1.msra.mxu0 %v3367
    %3410 = vmatprep.subr.mxu0 0.0
    %3411 = vmatpush1.msra.mxu0 %v3368
    %3412 = vmatprep.subr.mxu0 0.0
    %3413 = vmatpush1.msra.mxu0 %v3369
    %3414 = vmatprep.subr.mxu0 0.0
    %3415 = vmatpush1.msra.mxu0 %v3370
    %3416 = vmatprep.subr.mxu0 0.0
    %3417 = vmatpush1.msra.mxu0 %v3371
    %3418 = vmatprep.subr.mxu0 0.0
    %3419 = vmatpush1.msra.mxu0 %v3372
    %3420 = vmatprep.subr.mxu0 0.0
    %3421 = vmatpush1.msra.mxu0 %v3373
    %3422 = vmatprep.subr.mxu0 0.0
    %3423 = vmatpush1.msra.mxu0 %v3374
    %3424 = vmatprep.subr.mxu0 0.0
    %3425 = vmatpush1.msra.mxu0 %v3375
    %3426 = vmatprep.subr.mxu0 0.0
    %3427 = vmatpush1.msra.mxu0 %v3376
    %3428 = vmatprep.subr.mxu0 0.0
    %3429 = vmatpush1.msra.mxu0 %v3377
    %3430 = vmatprep.subr.mxu0 0.0
    %3431 = vmatpush1.msra.mxu0 %v3378
    %3432 = vmatprep.subr.mxu0 0.0
    %3433 = vmatpush1.msra.mxu0 %v3379
    %3434 = vmatprep.subr.mxu0 0.0
    %3435 = vmatpush1.msra.mxu0 %v3380
    %3436 = vmatprep.subr.mxu0 0.0
    %3437 = vmatpush1.msra.mxu0 %v3381
    %3438 = vmatprep.subr.mxu0 0.0
    %3439 = vmatpush1.msra.mxu0 %v3382
    %3440 = vmatprep.subr.mxu0 0.0
    %3441 = vmatpush1.msra.mxu0 %v3383
    %3442 = vmatprep.subr.mxu0 0.0
    %3443 = vmatpush1.msra.mxu0 %v3384
    %3444 = vmatprep.subr.mxu0 0.0
    %3445 = vmatpush1.msra.mxu0 %v3385
    %3446 = vmatprep.subr.mxu0 0.0
    %3447 = vmatpush1.msra.mxu0 %v3386
    %3448 = vmatprep.subr.mxu0 0.0
    %3449 = vmatpush1.msra.mxu0 %v3387
    %3450 = vmatprep.subr.mxu0 0.0
    %3451 = vmatpush1.msra.mxu0 %v3388
    %3452 = vmatprep.subr.mxu0 0.0
    %3453 = vmatpush1.msra.mxu0 %v3389
    %3454 = vmatprep.mubr.f32.mxu0 %v3356
    %3455 = vmatmul.mubr.f32.gmra.mrb[0].mxu0 %v3354
    %v3456 = vpop.f32.mrb[0].mxu0
    %v3457 = vadd.f32 0.0, %v3456
    %v3458 = vpop.f32.mrb[0].mxu0
    %3459 = vdwg.mxu0
    %v3460 = vld [vmem:[%s9] sm:$0xff]
    %v3461 = vld [vmem:[%s9 + $0x8] sm:$0xff]
    %v3462 = vld [vmem:[%s10] sm:$0x1]
    %v3464 = vlaneseq
    %v3465 = vshrl.u32 %v3464, 7
    %v3466 = vsub.s32 0, %v3465
    %v3467 = vrot.slane %v3462, %v3466
    %vm3469 = vcmask 130048
    %v3471 = vsel %vm3469, %v3457, 0
    %3473 = vmatprep.subr.mxu0 0.0
    %3474 = vmatpush1.msra.mxu0 %v3460
    %3475 = vmatprep.subr.mxu0 0.0
    %3476 = vmatpush1.msra.mxu0 %v3461
    %3477 = vmatprep.subr.mxu0 0.0
    %3478 = vmatpush1.msra.mxu0 0.0
    %3479 = vmatprep.subr.mxu0 0.0
    %3480 = vmatpush1.msra.mxu0 0.0
    %3481 = vmatprep.subr.mxu0 0.0
    %3482 = vmatpush1.msra.mxu0 0.0
    %3483 = vmatprep.subr.mxu0 0.0
    %3484 = vmatpush1.msra.mxu0 0.0
    %3485 = vmatprep.subr.mxu0 0.0
    %3486 = vmatpush1.msra.mxu0 0.0
    %3487 = vmatprep.subr.mxu0 0.0
    %3488 = vmatpush1.msra.mxu0 0.0
    %3489 = vmatprep.subr.mxu0 0.0
    %3490 = vmatpush1.msra.mxu0 0.0
    %3491 = vmatprep.subr.mxu0 0.0
    %3492 = vmatpush1.msra.mxu0 0.0
    %3493 = vmatprep.subr.mxu0 0.0
    %3494 = vmatpush1.msra.mxu0 0.0
    %3495 = vmatprep.subr.mxu0 0.0
    %3496 = vmatpush1.msra.mxu0 0.0
    %3497 = vmatprep.subr.mxu0 0.0
    %3498 = vmatpush1.msra.mxu0 0.0
    %3499 = vmatprep.subr.mxu0 0.0
    %3500 = vmatpush1.msra.mxu0 0.0
    %3501 = vmatprep.subr.mxu0 0.0
    %3502 = vmatpush1.msra.mxu0 0.0
    %3503 = vmatprep.subr.mxu0 0.0
    %3504 = vmatpush1.msra.mxu0 0.0
    %3505 = vmatprep.subr.mxu0 0.0
    %3506 = vmatpush1.msra.mxu0 0.0
    %3507 = vmatprep.subr.mxu0 0.0
    %3508 = vmatpush1.msra.mxu0 0.0
    %3509 = vmatprep.subr.mxu0 0.0
    %3510 = vmatpush1.msra.mxu0 0.0
    %3511 = vmatprep.subr.mxu0 0.0
    %3512 = vmatpush1.msra.mxu0 0.0
    %3513 = vmatprep.subr.mxu0 0.0
    %3514 = vmatpush1.msra.mxu0 0.0
    %3515 = vmatprep.subr.mxu0 0.0
    %3516 = vmatpush1.msra.mxu0 0.0
    %3517 = vmatprep.subr.mxu0 0.0
    %3518 = vmatpush1.msra.mxu0 0.0
    %3519 = vmatprep.subr.mxu0 0.0
    %3520 = vmatpush1.msra.mxu0 0.0
    %3521 = vmatprep.subr.mxu0 0.0
    %3522 = vmatpush1.msra.mxu0 0.0
    %3523 = vmatprep.subr.mxu0 0.0
    %3524 = vmatpush1.msra.mxu0 0.0
    %3525 = vmatprep.subr.mxu0 0.0
    %3526 = vmatpush1.msra.mxu0 0.0
    %3527 = vmatprep.subr.mxu0 0.0
    %3528 = vmatpush1.msra.mxu0 0.0
    %3529 = vmatprep.subr.mxu0 0.0
    %3530 = vmatpush1.msra.mxu0 0.0
    %3531 = vmatprep.subr.mxu0 0.0
    %3532 = vmatpush1.msra.mxu0 0.0
    %3533 = vmatprep.subr.mxu0 0.0
    %3534 = vmatpush1.msra.mxu0 0.0
    %3535 = vmatprep.subr.mxu0 0.0
    %3536 = vmatpush1.msra.mxu0 0.0
    %3537 = vmatprep.mubr.f32.mxu0 0.0
    %3538 = vmatmul.mubr.f32.gmra.mrb[0].mxu0 %v3471
    %v3539 = vpop.f32.mrb[0].mxu0
    %v3540 = vadd.f32 %v3467, %v3539
    %v3541 = vpop.f32.mrb[0].mxu0
    %3542 = vdwg.mxu0
    %3543 = vst [vmem:[%s11] sm:$0x3] %v3540
    // Predicated region
    $region54: #{_fused_forward.1} parent=1 // pred_check
      _
    $region55: #{_fused_forward.1} parent=1 // pred_check_branch
      %3545 = sbr.rel (0) target = $region57
    $region56: #{_fused_forward.1} parent=1 // pred_region
      _
    $region57: #{_fused_forward.1} parent=1 // pred_fallthru
      _
    // Predicated region
    $region58: #{_fused_forward.1} parent=1 // pred_check
      _
    $region59: #{_fused_forward.1} parent=1 // pred_check_branch
      %3547 = sbr.rel (0) target = $region61
    $region60: #{_fused_forward.1} parent=1 // pred_region
      _
    $region61: #{_fused_forward.1} parent=1 // pred_fallthru
      _
    %3548 = vsyncpa [#allocation4], 1
    %3549 = vsyncpa [#allocation6], 1

</llo_original>
